<compile_context>
chip_gen: v7x
topology: tpu7x:2x2x1
jax: 0.10.0
libtpu: 0.0.40
codegen_flags: <defaults>
</compile_context>

<pallas_src>
import functools

import jax
import jax.numpy as jnp
from jax import lax
from jax.experimental import pallas as pl
from jax.experimental.pallas import tpu as pltpu


def _leaky_relu(x, alpha):
    return jnp.where(x > 0, x, alpha * x)


def _elu(x):
    return jnp.where(x > 0, x, jnp.exp(x) - 1.0)


def _softmax_rows(e):
    e = e - jnp.max(e, axis=1, keepdims=True)
    p = jnp.exp(e)
    # exact reciprocal (approx=True is too coarse for the 1e-4 check over T recurrent steps)
    return p * pl.reciprocal(jnp.sum(p, axis=1, keepdims=True))


def rpat_kernel(x_ref, wall_ref, a1bd_ref, a2bdT_ref, wout_ref, a1o_ref, a2oT_ref,
                out_ref, *, alpha, n_heads, f_hid):
    T, N, D = x_ref.shape

    def pat_layer(x, l):
        # x: (N, D) float32; l: static layer index (0=PAT_x, 1=PAT_h, 2=PAT_y)
        Wall = wall_ref[l]      # (D, H*F_hid)   all head projections batched
        A1 = a1bd_ref[l]        # (H*F_hid, H)   block-diagonal a1's
        A2T = a2bdT_ref[l]      # (H, H*F_hid)   block-diagonal a2's, pre-transposed
        Wout = wout_ref[l]      # (H*F_hid, D)
        a1o = a1o_ref[l]        # (D, 1)
        a2oT = a2oT_ref[l]      # (1, D)

        # One wide matmul for all heads.
        Wh = jnp.dot(x, Wall, preferred_element_type=jnp.float32)        # (N, H*F_hid)
        # All per-head attention logits in two matmuls (column form + row form).
        E1 = jnp.dot(Wh, A1, preferred_element_type=jnp.float32)         # (N, H)
        E2T = lax.dot_general(A2T, Wh, (((1,), (1,)), ((), ())),
                              preferred_element_type=jnp.float32)        # (H, N)

        heads = []
        for h in range(n_heads):                                          # static unroll
            e = _leaky_relu(E1[:, h:h + 1] + E2T[h:h + 1, :], alpha)      # (N, N)
            att = _softmax_rows(e)
            Wh_h = Wh[:, h * f_hid:(h + 1) * f_hid]                       # (N, F_hid)
            heads.append(_elu(jnp.dot(att, Wh_h,
                                      preferred_element_type=jnp.float32)))
        hcat = jnp.concatenate(heads, axis=1)                              # (N, H*F_hid)

        # Output attention layer back to width D.
        Who = jnp.dot(hcat, Wout, preferred_element_type=jnp.float32)      # (N, D)
        e1 = jnp.dot(Who, a1o, preferred_element_type=jnp.float32)         # (N, 1)
        e2 = lax.dot_general(a2oT, Who, (((1,), (1,)), ((), ())),
                             preferred_element_type=jnp.float32)           # (1, N)
        eo = _leaky_relu(e1 + e2, alpha)
        atto = _softmax_rows(eo)
        return _elu(jnp.dot(atto, Who, preferred_element_type=jnp.float32))  # (N, D)

    def step(t, h_prev):
        x_t = x_ref[t]                                                     # (N, D)
        h_t = pat_layer(x_t, 0) + pat_layer(h_prev, 1)                     # PAT_x + PAT_h
        y_t = pat_layer(h_t, 2)                                            # PAT_y
        out_ref[t] = x_t + y_t
        return h_t

    lax.fori_loop(0, T, step, jnp.zeros((N, D), jnp.float32))


def pack_pat_params(layers):
    """Pack raw per-head parameters of the 3 PAT layers into batched kernel operands."""
    W_all, A1_bd, A2_bdT, W_out, a1o, a2oT = [], [], [], [], [], []
    for p in layers:
        H, D, F = p["W_heads"].shape
        HF = H * F
        # (H, D, F) -> (D, H*F): column block h is head h's projection.
        W_all.append(jnp.transpose(p["W_heads"], (1, 0, 2)).reshape(D, HF))
        a1 = p["a_heads"][:, :F, 0]            # (H, F)
        a2 = p["a_heads"][:, F:, 0]            # (H, F)
        eye = jnp.eye(H, dtype=jnp.float32)
        A1_bd.append((a1[:, :, None] * eye[:, None, :]).reshape(HF, H))
        A2_bdT.append((a2[:, :, None] * eye[:, None, :]).reshape(HF, H).T)
        W_out.append(p["W_out"])
        a1o.append(p["a_out"][:D, :])          # (D, 1)
        a2oT.append(p["a_out"][D:, :].T)       # (1, D)
    return dict(W_all=jnp.stack(W_all), A1_bd=jnp.stack(A1_bd),
                A2_bdT=jnp.stack(A2_bdT), W_out=jnp.stack(W_out),
                a1_out=jnp.stack(a1o), a2_outT=jnp.stack(a2oT))


def rpat_forward(states, packed, alpha, n_heads, f_hid):
    T, N, D = states.shape
    kernel = functools.partial(rpat_kernel, alpha=alpha, n_heads=n_heads, f_hid=f_hid)
    vmem = pl.BlockSpec(memory_space=pltpu.MemorySpace.VMEM)   # whole array resident in VMEM
    return pl.pallas_call(
        kernel,
        out_shape=jax.ShapeDtypeStruct((T, N, D), jnp.float32),
        in_specs=[vmem] * 7,
        out_specs=vmem,
    )(states, packed["W_all"], packed["A1_bd"], packed["A2_bdT"],
      packed["W_out"], packed["a1_out"], packed["a2_outT"])


# ---------------------- pure-JAX reference (for verification) ----------------------
def _ref_att_layer(h, W, a1, a2, alpha):
    Wh = h @ W
    e = Wh @ a1 + (Wh @ a2).T
    e = jnp.where(e > 0, e, alpha * e)
    att = jax.nn.softmax(e, axis=1)
    hp = att @ Wh
    return jnp.where(hp > 0, hp, jnp.exp(hp) - 1.0)


def _ref_pat_layer(x, p, alpha):
    H, _, F = p["W_heads"].shape
    heads = [_ref_att_layer(x, p["W_heads"][h], p["a_heads"][h, :F, :],
                            p["a_heads"][h, F:, :], alpha) for h in range(H)]
    hcat = jnp.concatenate(heads, axis=1)
    D = p["W_out"].shape[1]
    return _ref_att_layer(hcat, p["W_out"], p["a_out"][:D, :], p["a_out"][D:, :], alpha)


def _ref_rpat(states, layers, alpha):
    T, N, D = states.shape
    h = jnp.zeros((N, D), jnp.float32)
    outs = []
    for t in range(T):
        h = _ref_pat_layer(states[t], layers[0], alpha) + _ref_pat_layer(h, layers[1], alpha)
        outs.append(states[t] + _ref_pat_layer(h, layers[2], alpha))
    return jnp.stack(outs)


if __name__ == "__main__":
    # Small shapes consistent with the module.
    N = 8          # num_particles
    DIM = 4        # dimension  -> state width D = 2*dimension (position+velocity)
    D = 2 * DIM
    F_HID = 32     # n_hidden_features
    H = 4          # n_heads
    T = 6          # number of states in the input sequence
    ALPHA = 0.2    # LeakyReLU negative slope
    GAIN = 1.414   # xavier gain
    # dropout: identity in eval mode -> omitted.

    key = jax.random.PRNGKey(0)
    keys = iter(jax.random.split(key, 1 + 3 * (2 * H + 2)))

    def xavier(k, shape):
        limit = GAIN * (6.0 / (shape[-1] + shape[-2])) ** 0.5
        return jax.random.uniform(k, shape, jnp.float32, -limit, limit)

    states = jax.random.normal(next(keys), (T, N, D), jnp.float32)

    layers = []
    for _ in range(3):   # PAT_x, PAT_h, PAT_y
        W_heads = jnp.stack([xavier(next(keys), (D, F_HID)) for _ in range(H)])
        a_heads = jnp.stack([xavier(next(keys), (2 * F_HID, 1)) for _ in range(H)])
        W_out = xavier(next(keys), (H * F_HID, D))
        a_out = xavier(next(keys), (2 * D, 1))
        layers.append(dict(W_heads=W_heads, a_heads=a_heads, W_out=W_out, a_out=a_out))

    packed = pack_pat_params(layers)

    y = rpat_forward(states, packed, ALPHA, H, F_HID)
    y = jax.block_until_ready(y)

    y_ref = _ref_rpat(states, layers, ALPHA)
    assert y.shape == (T, N, D)
    assert jnp.allclose(y, y_ref, rtol=1e-4, atol=1e-4), (y, y_ref)

    print("KERNEL_OK")
</pallas_src>

<mosaic_0001>
module attributes {stable_mosaic.version = 11 : i64} {
  func.func @rpat_kernel(%arg0: memref<6x8x8xf32, #tpu.memory_space<vmem>>, %arg1: memref<3x8x128xf32, #tpu.memory_space<vmem>>, %arg2: memref<3x128x4xf32, #tpu.memory_space<vmem>>, %arg3: memref<3x4x128xf32, #tpu.memory_space<vmem>>, %arg4: memref<3x128x8xf32, #tpu.memory_space<vmem>>, %arg5: memref<3x8x1xf32, #tpu.memory_space<vmem>>, %arg6: memref<3x1x8xf32, #tpu.memory_space<vmem>>, %arg7: memref<6x8x8xf32, #tpu.memory_space<vmem>>) attributes {dimension_semantics = [], scalar_prefetch = 0 : i64, scratch_operands = 0 : i64, tpu.core_type = #tpu.core_type<tc>} {
    %cst = arith.constant 0.000000e+00 : f32
    %0 = vector.broadcast %cst : f32 to vector<8x8xf32>
    %c0_i32 = arith.constant 0 : i32
    %c6_i32 = arith.constant 6 : i32
    %1 = arith.addi %c0_i32, %c6_i32 : i32
    %c1_i32 = arith.constant 1 : i32
    %2 = scf.for %arg8 = %c0_i32 to %1 step %c1_i32 iter_args(%arg9 = %0) -> (vector<8x8xf32>)  : i32 {
      %3 = arith.index_cast %arg8 : i32 to index
      %c0 = arith.constant 0 : index
      %c0_1 = arith.constant 0 : index
      %4 = vector.load %arg0[%3, %c0, %c0_1] : memref<6x8x8xf32, #tpu.memory_space<vmem>>, vector<1x8x8xf32>
      %5 = vector.shape_cast %4 : vector<1x8x8xf32> to vector<8x8xf32>
      %c0_2 = arith.constant 0 : index
      %c0_3 = arith.constant 0 : index
      %c0_4 = arith.constant 0 : index
      %6 = vector.load %arg1[%c0_2, %c0_3, %c0_4] : memref<3x8x128xf32, #tpu.memory_space<vmem>>, vector<1x8x128xf32>
      %7 = vector.shape_cast %6 : vector<1x8x128xf32> to vector<8x128xf32>
      %c0_5 = arith.constant 0 : index
      %c0_6 = arith.constant 0 : index
      %c0_7 = arith.constant 0 : index
      %8 = vector.load %arg2[%c0_5, %c0_6, %c0_7] : memref<3x128x4xf32, #tpu.memory_space<vmem>>, vector<1x128x4xf32>
      %9 = vector.shape_cast %8 : vector<1x128x4xf32> to vector<128x4xf32>
      %c0_8 = arith.constant 0 : index
      %c0_9 = arith.constant 0 : index
      %c0_10 = arith.constant 0 : index
      %10 = vector.load %arg3[%c0_8, %c0_9, %c0_10] : memref<3x4x128xf32, #tpu.memory_space<vmem>>, vector<1x4x128xf32>
      %11 = vector.shape_cast %10 : vector<1x4x128xf32> to vector<4x128xf32>
      %c0_11 = arith.constant 0 : index
      %c0_12 = arith.constant 0 : index
      %c0_13 = arith.constant 0 : index
      %12 = vector.load %arg4[%c0_11, %c0_12, %c0_13] : memref<3x128x8xf32, #tpu.memory_space<vmem>>, vector<1x128x8xf32>
      %13 = vector.shape_cast %12 : vector<1x128x8xf32> to vector<128x8xf32>
      %c0_14 = arith.constant 0 : index
      %c0_15 = arith.constant 0 : index
      %c0_16 = arith.constant 0 : index
      %14 = vector.load %arg5[%c0_14, %c0_15, %c0_16] : memref<3x8x1xf32, #tpu.memory_space<vmem>>, vector<1x8x1xf32>
      %15 = vector.shape_cast %14 : vector<1x8x1xf32> to vector<8x1xf32>
      %c0_17 = arith.constant 0 : index
      %c0_18 = arith.constant 0 : index
      %c0_19 = arith.constant 0 : index
      %16 = vector.load %arg6[%c0_17, %c0_18, %c0_19] : memref<3x1x8xf32, #tpu.memory_space<vmem>>, vector<1x1x8xf32>
      %17 = vector.shape_cast %16 : vector<1x1x8xf32> to vector<1x8xf32>
      %cst_20 = arith.constant dense<0.000000e+00> : vector<8x128xf32>
      %18 = tpu.matmul %5, %7, %cst_20 {dimension_numbers = #tpu.dot_dimension_numbers<[1], [0], [0], [1], [0, 0, 1, 1], [], []>} : vector<8x8xf32>, vector<8x128xf32>, vector<8x128xf32> -> vector<8x128xf32>
      %cst_21 = arith.constant dense<0.000000e+00> : vector<8x4xf32>
      %19 = tpu.matmul %18, %9, %cst_21 {dimension_numbers = #tpu.dot_dimension_numbers<[1], [0], [0], [1], [0, 0, 1, 1], [], []>} : vector<8x128xf32>, vector<128x4xf32>, vector<8x4xf32> -> vector<8x4xf32>
      %cst_22 = arith.constant dense<0.000000e+00> : vector<4x8xf32>
      %20 = tpu.matmul %11, %18, %cst_22 {dimension_numbers = #tpu.dot_dimension_numbers<[1], [1], [0], [0], [0, 0, 1, 0], [], []>} : vector<4x128xf32>, vector<8x128xf32>, vector<4x8xf32> -> vector<4x8xf32>
      %21 = vector.extract_strided_slice %19 {offsets = [0, 0], sizes = [8, 1], strides = [1, 1]} : vector<8x4xf32> to vector<8x1xf32>
      %22 = vector.extract_strided_slice %20 {offsets = [0, 0], sizes = [1, 8], strides = [1, 1]} : vector<4x8xf32> to vector<1x8xf32>
      %23 = vector.broadcast %21 : vector<8x1xf32> to vector<8x8xf32>
      %24 = vector.broadcast %22 : vector<1x8xf32> to vector<8x8xf32>
      %25 = arith.addf %23, %24 : vector<8x8xf32>
      %cst_23 = arith.constant 0.000000e+00 : f32
      %26 = vector.broadcast %cst_23 : f32 to vector<8x8xf32>
      %27 = arith.cmpf ogt, %25, %26 : vector<8x8xf32>
      %cst_24 = arith.constant 2.000000e-01 : f32
      %28 = vector.broadcast %cst_24 : f32 to vector<8x8xf32>
      %29 = arith.mulf %28, %25 : vector<8x8xf32>
      %30 = arith.select %27, %25, %29 : vector<8x8xi1>, vector<8x8xf32>
      %cst_25 = arith.constant dense<0xFF800000> : vector<8xf32>
      %31 = vector.multi_reduction <maximumf>, %30, %cst_25 [1] : vector<8x8xf32> to vector<8xf32>
      %32 = vector.shape_cast %31 : vector<8xf32> to vector<8x1xf32>
      %33 = vector.broadcast %32 : vector<8x1xf32> to vector<8x8xf32>
      %34 = arith.subf %30, %33 : vector<8x8xf32>
      %35 = math.exp %34 : vector<8x8xf32>
      %cst_26 = arith.constant dense<0.000000e+00> : vector<8xf32>
      %36 = vector.multi_reduction <add>, %35, %cst_26 [1] : vector<8x8xf32> to vector<8xf32>
      %37 = vector.shape_cast %36 : vector<8xf32> to vector<8x1xf32>
      %38 = tpu.reciprocal %37 : vector<8x1xf32> -> vector<8x1xf32>
      %39 = vector.broadcast %38 : vector<8x1xf32> to vector<8x8xf32>
      %40 = arith.mulf %35, %39 : vector<8x8xf32>
      %41 = vector.extract_strided_slice %18 {offsets = [0, 0], sizes = [8, 32], strides = [1, 1]} : vector<8x128xf32> to vector<8x32xf32>
      %cst_27 = arith.constant dense<0.000000e+00> : vector<8x32xf32>
      %42 = tpu.matmul %40, %41, %cst_27 {dimension_numbers = #tpu.dot_dimension_numbers<[1], [0], [0], [1], [0, 0, 1, 1], [], []>} : vector<8x8xf32>, vector<8x32xf32>, vector<8x32xf32> -> vector<8x32xf32>
      %cst_28 = arith.constant 0.000000e+00 : f32
      %43 = vector.broadcast %cst_28 : f32 to vector<8x32xf32>
      %44 = arith.cmpf ogt, %42, %43 : vector<8x32xf32>
      %45 = math.exp %42 : vector<8x32xf32>
      %cst_29 = arith.constant 1.000000e+00 : f32
      %46 = vector.broadcast %cst_29 : f32 to vector<8x32xf32>
      %47 = arith.subf %45, %46 : vector<8x32xf32>
      %48 = arith.select %44, %42, %47 : vector<8x32xi1>, vector<8x32xf32>
      %49 = vector.extract_strided_slice %19 {offsets = [0, 1], sizes = [8, 1], strides = [1, 1]} : vector<8x4xf32> to vector<8x1xf32>
      %50 = vector.extract_strided_slice %20 {offsets = [1, 0], sizes = [1, 8], strides = [1, 1]} : vector<4x8xf32> to vector<1x8xf32>
      %51 = vector.broadcast %49 : vector<8x1xf32> to vector<8x8xf32>
      %52 = vector.broadcast %50 : vector<1x8xf32> to vector<8x8xf32>
      %53 = arith.addf %51, %52 : vector<8x8xf32>
      %cst_30 = arith.constant 0.000000e+00 : f32
      %54 = vector.broadcast %cst_30 : f32 to vector<8x8xf32>
      %55 = arith.cmpf ogt, %53, %54 : vector<8x8xf32>
      %cst_31 = arith.constant 2.000000e-01 : f32
      %56 = vector.broadcast %cst_31 : f32 to vector<8x8xf32>
      %57 = arith.mulf %56, %53 : vector<8x8xf32>
      %58 = arith.select %55, %53, %57 : vector<8x8xi1>, vector<8x8xf32>
      %cst_32 = arith.constant dense<0xFF800000> : vector<8xf32>
      %59 = vector.multi_reduction <maximumf>, %58, %cst_32 [1] : vector<8x8xf32> to vector<8xf32>
      %60 = vector.shape_cast %59 : vector<8xf32> to vector<8x1xf32>
      %61 = vector.broadcast %60 : vector<8x1xf32> to vector<8x8xf32>
      %62 = arith.subf %58, %61 : vector<8x8xf32>
      %63 = math.exp %62 : vector<8x8xf32>
      %cst_33 = arith.constant dense<0.000000e+00> : vector<8xf32>
      %64 = vector.multi_reduction <add>, %63, %cst_33 [1] : vector<8x8xf32> to vector<8xf32>
      %65 = vector.shape_cast %64 : vector<8xf32> to vector<8x1xf32>
      %66 = tpu.reciprocal %65 : vector<8x1xf32> -> vector<8x1xf32>
      %67 = vector.broadcast %66 : vector<8x1xf32> to vector<8x8xf32>
      %68 = arith.mulf %63, %67 : vector<8x8xf32>
      %69 = vector.extract_strided_slice %18 {offsets = [0, 32], sizes = [8, 32], strides = [1, 1]} : vector<8x128xf32> to vector<8x32xf32>
      %cst_34 = arith.constant dense<0.000000e+00> : vector<8x32xf32>
      %70 = tpu.matmul %68, %69, %cst_34 {dimension_numbers = #tpu.dot_dimension_numbers<[1], [0], [0], [1], [0, 0, 1, 1], [], []>} : vector<8x8xf32>, vector<8x32xf32>, vector<8x32xf32> -> vector<8x32xf32>
      %cst_35 = arith.constant 0.000000e+00 : f32
      %71 = vector.broadcast %cst_35 : f32 to vector<8x32xf32>
      %72 = arith.cmpf ogt, %70, %71 : vector<8x32xf32>
      %73 = math.exp %70 : vector<8x32xf32>
      %cst_36 = arith.constant 1.000000e+00 : f32
      %74 = vector.broadcast %cst_36 : f32 to vector<8x32xf32>
      %75 = arith.subf %73, %74 : vector<8x32xf32>
      %76 = arith.select %72, %70, %75 : vector<8x32xi1>, vector<8x32xf32>
      %77 = vector.extract_strided_slice %19 {offsets = [0, 2], sizes = [8, 1], strides = [1, 1]} : vector<8x4xf32> to vector<8x1xf32>
      %78 = vector.extract_strided_slice %20 {offsets = [2, 0], sizes = [1, 8], strides = [1, 1]} : vector<4x8xf32> to vector<1x8xf32>
      %79 = vector.broadcast %77 : vector<8x1xf32> to vector<8x8xf32>
      %80 = vector.broadcast %78 : vector<1x8xf32> to vector<8x8xf32>
      %81 = arith.addf %79, %80 : vector<8x8xf32>
      %cst_37 = arith.constant 0.000000e+00 : f32
      %82 = vector.broadcast %cst_37 : f32 to vector<8x8xf32>
      %83 = arith.cmpf ogt, %81, %82 : vector<8x8xf32>
      %cst_38 = arith.constant 2.000000e-01 : f32
      %84 = vector.broadcast %cst_38 : f32 to vector<8x8xf32>
      %85 = arith.mulf %84, %81 : vector<8x8xf32>
      %86 = arith.select %83, %81, %85 : vector<8x8xi1>, vector<8x8xf32>
      %cst_39 = arith.constant dense<0xFF800000> : vector<8xf32>
      %87 = vector.multi_reduction <maximumf>, %86, %cst_39 [1] : vector<8x8xf32> to vector<8xf32>
      %88 = vector.shape_cast %87 : vector<8xf32> to vector<8x1xf32>
      %89 = vector.broadcast %88 : vector<8x1xf32> to vector<8x8xf32>
      %90 = arith.subf %86, %89 : vector<8x8xf32>
      %91 = math.exp %90 : vector<8x8xf32>
      %cst_40 = arith.constant dense<0.000000e+00> : vector<8xf32>
      %92 = vector.multi_reduction <add>, %91, %cst_40 [1] : vector<8x8xf32> to vector<8xf32>
      %93 = vector.shape_cast %92 : vector<8xf32> to vector<8x1xf32>
      %94 = tpu.reciprocal %93 : vector<8x1xf32> -> vector<8x1xf32>
      %95 = vector.broadcast %94 : vector<8x1xf32> to vector<8x8xf32>
      %96 = arith.mulf %91, %95 : vector<8x8xf32>
      %97 = vector.extract_strided_slice %18 {offsets = [0, 64], sizes = [8, 32], strides = [1, 1]} : vector<8x128xf32> to vector<8x32xf32>
      %cst_41 = arith.constant dense<0.000000e+00> : vector<8x32xf32>
      %98 = tpu.matmul %96, %97, %cst_41 {dimension_numbers = #tpu.dot_dimension_numbers<[1], [0], [0], [1], [0, 0, 1, 1], [], []>} : vector<8x8xf32>, vector<8x32xf32>, vector<8x32xf32> -> vector<8x32xf32>
      %cst_42 = arith.constant 0.000000e+00 : f32
      %99 = vector.broadcast %cst_42 : f32 to vector<8x32xf32>
      %100 = arith.cmpf ogt, %98, %99 : vector<8x32xf32>
      %101 = math.exp %98 : vector<8x32xf32>
      %cst_43 = arith.constant 1.000000e+00 : f32
      %102 = vector.broadcast %cst_43 : f32 to vector<8x32xf32>
      %103 = arith.subf %101, %102 : vector<8x32xf32>
      %104 = arith.select %100, %98, %103 : vector<8x32xi1>, vector<8x32xf32>
      %105 = vector.extract_strided_slice %19 {offsets = [0, 3], sizes = [8, 1], strides = [1, 1]} : vector<8x4xf32> to vector<8x1xf32>
      %106 = vector.extract_strided_slice %20 {offsets = [3, 0], sizes = [1, 8], strides = [1, 1]} : vector<4x8xf32> to vector<1x8xf32>
      %107 = vector.broadcast %105 : vector<8x1xf32> to vector<8x8xf32>
      %108 = vector.broadcast %106 : vector<1x8xf32> to vector<8x8xf32>
      %109 = arith.addf %107, %108 : vector<8x8xf32>
      %cst_44 = arith.constant 0.000000e+00 : f32
      %110 = vector.broadcast %cst_44 : f32 to vector<8x8xf32>
      %111 = arith.cmpf ogt, %109, %110 : vector<8x8xf32>
      %cst_45 = arith.constant 2.000000e-01 : f32
      %112 = vector.broadcast %cst_45 : f32 to vector<8x8xf32>
      %113 = arith.mulf %112, %109 : vector<8x8xf32>
      %114 = arith.select %111, %109, %113 : vector<8x8xi1>, vector<8x8xf32>
      %cst_46 = arith.constant dense<0xFF800000> : vector<8xf32>
      %115 = vector.multi_reduction <maximumf>, %114, %cst_46 [1] : vector<8x8xf32> to vector<8xf32>
      %116 = vector.shape_cast %115 : vector<8xf32> to vector<8x1xf32>
      %117 = vector.broadcast %116 : vector<8x1xf32> to vector<8x8xf32>
      %118 = arith.subf %114, %117 : vector<8x8xf32>
      %119 = math.exp %118 : vector<8x8xf32>
      %cst_47 = arith.constant dense<0.000000e+00> : vector<8xf32>
      %120 = vector.multi_reduction <add>, %119, %cst_47 [1] : vector<8x8xf32> to vector<8xf32>
      %121 = vector.shape_cast %120 : vector<8xf32> to vector<8x1xf32>
      %122 = tpu.reciprocal %121 : vector<8x1xf32> -> vector<8x1xf32>
      %123 = vector.broadcast %122 : vector<8x1xf32> to vector<8x8xf32>
      %124 = arith.mulf %119, %123 : vector<8x8xf32>
      %125 = vector.extract_strided_slice %18 {offsets = [0, 96], sizes = [8, 32], strides = [1, 1]} : vector<8x128xf32> to vector<8x32xf32>
      %cst_48 = arith.constant dense<0.000000e+00> : vector<8x32xf32>
      %126 = tpu.matmul %124, %125, %cst_48 {dimension_numbers = #tpu.dot_dimension_numbers<[1], [0], [0], [1], [0, 0, 1, 1], [], []>} : vector<8x8xf32>, vector<8x32xf32>, vector<8x32xf32> -> vector<8x32xf32>
      %cst_49 = arith.constant 0.000000e+00 : f32
      %127 = vector.broadcast %cst_49 : f32 to vector<8x32xf32>
      %128 = arith.cmpf ogt, %126, %127 : vector<8x32xf32>
      %129 = math.exp %126 : vector<8x32xf32>
      %cst_50 = arith.constant 1.000000e+00 : f32
      %130 = vector.broadcast %cst_50 : f32 to vector<8x32xf32>
      %131 = arith.subf %129, %130 : vector<8x32xf32>
      %132 = arith.select %128, %126, %131 : vector<8x32xi1>, vector<8x32xf32>
      %133 = tpu.concatenate %48, %76, %104, %132 in 1 : vector<8x32xf32>, vector<8x32xf32>, vector<8x32xf32>, vector<8x32xf32> -> vector<8x128xf32>
      %cst_51 = arith.constant dense<0.000000e+00> : vector<8x8xf32>
      %134 = tpu.matmul %133, %13, %cst_51 {dimension_numbers = #tpu.dot_dimension_numbers<[1], [0], [0], [1], [0, 0, 1, 1], [], []>} : vector<8x128xf32>, vector<128x8xf32>, vector<8x8xf32> -> vector<8x8xf32>
      %cst_52 = arith.constant dense<0.000000e+00> : vector<8x1xf32>
      %135 = tpu.matmul %134, %15, %cst_52 {dimension_numbers = #tpu.dot_dimension_numbers<[1], [0], [0], [1], [0, 0, 1, 1], [], []>} : vector<8x8xf32>, vector<8x1xf32>, vector<8x1xf32> -> vector<8x1xf32>
      %cst_53 = arith.constant dense<0.000000e+00> : vector<1x8xf32>
      %136 = tpu.matmul %17, %134, %cst_53 {dimension_numbers = #tpu.dot_dimension_numbers<[1], [1], [0], [0], [0, 0, 1, 0], [], []>} : vector<1x8xf32>, vector<8x8xf32>, vector<1x8xf32> -> vector<1x8xf32>
      %137 = vector.broadcast %135 : vector<8x1xf32> to vector<8x8xf32>
      %138 = vector.broadcast %136 : vector<1x8xf32> to vector<8x8xf32>
      %139 = arith.addf %137, %138 : vector<8x8xf32>
      %cst_54 = arith.constant 0.000000e+00 : f32
      %140 = vector.broadcast %cst_54 : f32 to vector<8x8xf32>
      %141 = arith.cmpf ogt, %139, %140 : vector<8x8xf32>
      %cst_55 = arith.constant 2.000000e-01 : f32
      %142 = vector.broadcast %cst_55 : f32 to vector<8x8xf32>
      %143 = arith.mulf %142, %139 : vector<8x8xf32>
      %144 = arith.select %141, %139, %143 : vector<8x8xi1>, vector<8x8xf32>
      %cst_56 = arith.constant dense<0xFF800000> : vector<8xf32>
      %145 = vector.multi_reduction <maximumf>, %144, %cst_56 [1] : vector<8x8xf32> to vector<8xf32>
      %146 = vector.shape_cast %145 : vector<8xf32> to vector<8x1xf32>
      %147 = vector.broadcast %146 : vector<8x1xf32> to vector<8x8xf32>
      %148 = arith.subf %144, %147 : vector<8x8xf32>
      %149 = math.exp %148 : vector<8x8xf32>
      %cst_57 = arith.constant dense<0.000000e+00> : vector<8xf32>
      %150 = vector.multi_reduction <add>, %149, %cst_57 [1] : vector<8x8xf32> to vector<8xf32>
      %151 = vector.shape_cast %150 : vector<8xf32> to vector<8x1xf32>
      %152 = tpu.reciprocal %151 : vector<8x1xf32> -> vector<8x1xf32>
      %153 = vector.broadcast %152 : vector<8x1xf32> to vector<8x8xf32>
      %154 = arith.mulf %149, %153 : vector<8x8xf32>
      %cst_58 = arith.constant dense<0.000000e+00> : vector<8x8xf32>
      %155 = tpu.matmul %154, %134, %cst_58 {dimension_numbers = #tpu.dot_dimension_numbers<[1], [0], [0], [1], [0, 0, 1, 1], [], []>} : vector<8x8xf32>, vector<8x8xf32>, vector<8x8xf32> -> vector<8x8xf32>
      %cst_59 = arith.constant 0.000000e+00 : f32
      %156 = vector.broadcast %cst_59 : f32 to vector<8x8xf32>
      %157 = arith.cmpf ogt, %155, %156 : vector<8x8xf32>
      %158 = math.exp %155 : vector<8x8xf32>
      %cst_60 = arith.constant 1.000000e+00 : f32
      %159 = vector.broadcast %cst_60 : f32 to vector<8x8xf32>
      %160 = arith.subf %158, %159 : vector<8x8xf32>
      %161 = arith.select %157, %155, %160 : vector<8x8xi1>, vector<8x8xf32>
      %c1 = arith.constant 1 : index
      %c0_61 = arith.constant 0 : index
      %c0_62 = arith.constant 0 : index
      %162 = vector.load %arg1[%c1, %c0_61, %c0_62] : memref<3x8x128xf32, #tpu.memory_space<vmem>>, vector<1x8x128xf32>
      %163 = vector.shape_cast %162 : vector<1x8x128xf32> to vector<8x128xf32>
      %c1_63 = arith.constant 1 : index
      %c0_64 = arith.constant 0 : index
      %c0_65 = arith.constant 0 : index
      %164 = vector.load %arg2[%c1_63, %c0_64, %c0_65] : memref<3x128x4xf32, #tpu.memory_space<vmem>>, vector<1x128x4xf32>
      %165 = vector.shape_cast %164 : vector<1x128x4xf32> to vector<128x4xf32>
      %c1_66 = arith.constant 1 : index
      %c0_67 = arith.constant 0 : index
      %c0_68 = arith.constant 0 : index
      %166 = vector.load %arg3[%c1_66, %c0_67, %c0_68] : memref<3x4x128xf32, #tpu.memory_space<vmem>>, vector<1x4x128xf32>
      %167 = vector.shape_cast %166 : vector<1x4x128xf32> to vector<4x128xf32>
      %c1_69 = arith.constant 1 : index
      %c0_70 = arith.constant 0 : index
      %c0_71 = arith.constant 0 : index
      %168 = vector.load %arg4[%c1_69, %c0_70, %c0_71] : memref<3x128x8xf32, #tpu.memory_space<vmem>>, vector<1x128x8xf32>
      %169 = vector.shape_cast %168 : vector<1x128x8xf32> to vector<128x8xf32>
      %c1_72 = arith.constant 1 : index
      %c0_73 = arith.constant 0 : index
      %c0_74 = arith.constant 0 : index
      %170 = vector.load %arg5[%c1_72, %c0_73, %c0_74] : memref<3x8x1xf32, #tpu.memory_space<vmem>>, vector<1x8x1xf32>
      %171 = vector.shape_cast %170 : vector<1x8x1xf32> to vector<8x1xf32>
      %c1_75 = arith.constant 1 : index
      %c0_76 = arith.constant 0 : index
      %c0_77 = arith.constant 0 : index
      %172 = vector.load %arg6[%c1_75, %c0_76, %c0_77] : memref<3x1x8xf32, #tpu.memory_space<vmem>>, vector<1x1x8xf32>
      %173 = vector.shape_cast %172 : vector<1x1x8xf32> to vector<1x8xf32>
      %cst_78 = arith.constant dense<0.000000e+00> : vector<8x128xf32>
      %174 = tpu.matmul %arg9, %163, %cst_78 {dimension_numbers = #tpu.dot_dimension_numbers<[1], [0], [0], [1], [0, 0, 1, 1], [], []>} : vector<8x8xf32>, vector<8x128xf32>, vector<8x128xf32> -> vector<8x128xf32>
      %cst_79 = arith.constant dense<0.000000e+00> : vector<8x4xf32>
      %175 = tpu.matmul %174, %165, %cst_79 {dimension_numbers = #tpu.dot_dimension_numbers<[1], [0], [0], [1], [0, 0, 1, 1], [], []>} : vector<8x128xf32>, vector<128x4xf32>, vector<8x4xf32> -> vector<8x4xf32>
      %cst_80 = arith.constant dense<0.000000e+00> : vector<4x8xf32>
      %176 = tpu.matmul %167, %174, %cst_80 {dimension_numbers = #tpu.dot_dimension_numbers<[1], [1], [0], [0], [0, 0, 1, 0], [], []>} : vector<4x128xf32>, vector<8x128xf32>, vector<4x8xf32> -> vector<4x8xf32>
      %177 = vector.extract_strided_slice %175 {offsets = [0, 0], sizes = [8, 1], strides = [1, 1]} : vector<8x4xf32> to vector<8x1xf32>
      %178 = vector.extract_strided_slice %176 {offsets = [0, 0], sizes = [1, 8], strides = [1, 1]} : vector<4x8xf32> to vector<1x8xf32>
      %179 = vector.broadcast %177 : vector<8x1xf32> to vector<8x8xf32>
      %180 = vector.broadcast %178 : vector<1x8xf32> to vector<8x8xf32>
      %181 = arith.addf %179, %180 : vector<8x8xf32>
      %cst_81 = arith.constant 0.000000e+00 : f32
      %182 = vector.broadcast %cst_81 : f32 to vector<8x8xf32>
      %183 = arith.cmpf ogt, %181, %182 : vector<8x8xf32>
      %cst_82 = arith.constant 2.000000e-01 : f32
      %184 = vector.broadcast %cst_82 : f32 to vector<8x8xf32>
      %185 = arith.mulf %184, %181 : vector<8x8xf32>
      %186 = arith.select %183, %181, %185 : vector<8x8xi1>, vector<8x8xf32>
      %cst_83 = arith.constant dense<0xFF800000> : vector<8xf32>
      %187 = vector.multi_reduction <maximumf>, %186, %cst_83 [1] : vector<8x8xf32> to vector<8xf32>
      %188 = vector.shape_cast %187 : vector<8xf32> to vector<8x1xf32>
      %189 = vector.broadcast %188 : vector<8x1xf32> to vector<8x8xf32>
      %190 = arith.subf %186, %189 : vector<8x8xf32>
      %191 = math.exp %190 : vector<8x8xf32>
      %cst_84 = arith.constant dense<0.000000e+00> : vector<8xf32>
      %192 = vector.multi_reduction <add>, %191, %cst_84 [1] : vector<8x8xf32> to vector<8xf32>
      %193 = vector.shape_cast %192 : vector<8xf32> to vector<8x1xf32>
      %194 = tpu.reciprocal %193 : vector<8x1xf32> -> vector<8x1xf32>
      %195 = vector.broadcast %194 : vector<8x1xf32> to vector<8x8xf32>
      %196 = arith.mulf %191, %195 : vector<8x8xf32>
      %197 = vector.extract_strided_slice %174 {offsets = [0, 0], sizes = [8, 32], strides = [1, 1]} : vector<8x128xf32> to vector<8x32xf32>
      %cst_85 = arith.constant dense<0.000000e+00> : vector<8x32xf32>
      %198 = tpu.matmul %196, %197, %cst_85 {dimension_numbers = #tpu.dot_dimension_numbers<[1], [0], [0], [1], [0, 0, 1, 1], [], []>} : vector<8x8xf32>, vector<8x32xf32>, vector<8x32xf32> -> vector<8x32xf32>
      %cst_86 = arith.constant 0.000000e+00 : f32
      %199 = vector.broadcast %cst_86 : f32 to vector<8x32xf32>
      %200 = arith.cmpf ogt, %198, %199 : vector<8x32xf32>
      %201 = math.exp %198 : vector<8x32xf32>
      %cst_87 = arith.constant 1.000000e+00 : f32
      %202 = vector.broadcast %cst_87 : f32 to vector<8x32xf32>
      %203 = arith.subf %201, %202 : vector<8x32xf32>
      %204 = arith.select %200, %198, %203 : vector<8x32xi1>, vector<8x32xf32>
      %205 = vector.extract_strided_slice %175 {offsets = [0, 1], sizes = [8, 1], strides = [1, 1]} : vector<8x4xf32> to vector<8x1xf32>
      %206 = vector.extract_strided_slice %176 {offsets = [1, 0], sizes = [1, 8], strides = [1, 1]} : vector<4x8xf32> to vector<1x8xf32>
      %207 = vector.broadcast %205 : vector<8x1xf32> to vector<8x8xf32>
      %208 = vector.broadcast %206 : vector<1x8xf32> to vector<8x8xf32>
      %209 = arith.addf %207, %208 : vector<8x8xf32>
      %cst_88 = arith.constant 0.000000e+00 : f32
      %210 = vector.broadcast %cst_88 : f32 to vector<8x8xf32>
      %211 = arith.cmpf ogt, %209, %210 : vector<8x8xf32>
      %cst_89 = arith.constant 2.000000e-01 : f32
      %212 = vector.broadcast %cst_89 : f32 to vector<8x8xf32>
      %213 = arith.mulf %212, %209 : vector<8x8xf32>
      %214 = arith.select %211, %209, %213 : vector<8x8xi1>, vector<8x8xf32>
      %cst_90 = arith.constant dense<0xFF800000> : vector<8xf32>
      %215 = vector.multi_reduction <maximumf>, %214, %cst_90 [1] : vector<8x8xf32> to vector<8xf32>
      %216 = vector.shape_cast %215 : vector<8xf32> to vector<8x1xf32>
      %217 = vector.broadcast %216 : vector<8x1xf32> to vector<8x8xf32>
      %218 = arith.subf %214, %217 : vector<8x8xf32>
      %219 = math.exp %218 : vector<8x8xf32>
      %cst_91 = arith.constant dense<0.000000e+00> : vector<8xf32>
      %220 = vector.multi_reduction <add>, %219, %cst_91 [1] : vector<8x8xf32> to vector<8xf32>
      %221 = vector.shape_cast %220 : vector<8xf32> to vector<8x1xf32>
      %222 = tpu.reciprocal %221 : vector<8x1xf32> -> vector<8x1xf32>
      %223 = vector.broadcast %222 : vector<8x1xf32> to vector<8x8xf32>
      %224 = arith.mulf %219, %223 : vector<8x8xf32>
      %225 = vector.extract_strided_slice %174 {offsets = [0, 32], sizes = [8, 32], strides = [1, 1]} : vector<8x128xf32> to vector<8x32xf32>
      %cst_92 = arith.constant dense<0.000000e+00> : vector<8x32xf32>
      %226 = tpu.matmul %224, %225, %cst_92 {dimension_numbers = #tpu.dot_dimension_numbers<[1], [0], [0], [1], [0, 0, 1, 1], [], []>} : vector<8x8xf32>, vector<8x32xf32>, vector<8x32xf32> -> vector<8x32xf32>
      %cst_93 = arith.constant 0.000000e+00 : f32
      %227 = vector.broadcast %cst_93 : f32 to vector<8x32xf32>
      %228 = arith.cmpf ogt, %226, %227 : vector<8x32xf32>
      %229 = math.exp %226 : vector<8x32xf32>
      %cst_94 = arith.constant 1.000000e+00 : f32
      %230 = vector.broadcast %cst_94 : f32 to vector<8x32xf32>
      %231 = arith.subf %229, %230 : vector<8x32xf32>
      %232 = arith.select %228, %226, %231 : vector<8x32xi1>, vector<8x32xf32>
      %233 = vector.extract_strided_slice %175 {offsets = [0, 2], sizes = [8, 1], strides = [1, 1]} : vector<8x4xf32> to vector<8x1xf32>
      %234 = vector.extract_strided_slice %176 {offsets = [2, 0], sizes = [1, 8], strides = [1, 1]} : vector<4x8xf32> to vector<1x8xf32>
      %235 = vector.broadcast %233 : vector<8x1xf32> to vector<8x8xf32>
      %236 = vector.broadcast %234 : vector<1x8xf32> to vector<8x8xf32>
      %237 = arith.addf %235, %236 : vector<8x8xf32>
      %cst_95 = arith.constant 0.000000e+00 : f32
      %238 = vector.broadcast %cst_95 : f32 to vector<8x8xf32>
      %239 = arith.cmpf ogt, %237, %238 : vector<8x8xf32>
      %cst_96 = arith.constant 2.000000e-01 : f32
      %240 = vector.broadcast %cst_96 : f32 to vector<8x8xf32>
      %241 = arith.mulf %240, %237 : vector<8x8xf32>
      %242 = arith.select %239, %237, %241 : vector<8x8xi1>, vector<8x8xf32>
      %cst_97 = arith.constant dense<0xFF800000> : vector<8xf32>
      %243 = vector.multi_reduction <maximumf>, %242, %cst_97 [1] : vector<8x8xf32> to vector<8xf32>
      %244 = vector.shape_cast %243 : vector<8xf32> to vector<8x1xf32>
      %245 = vector.broadcast %244 : vector<8x1xf32> to vector<8x8xf32>
      %246 = arith.subf %242, %245 : vector<8x8xf32>
      %247 = math.exp %246 : vector<8x8xf32>
      %cst_98 = arith.constant dense<0.000000e+00> : vector<8xf32>
      %248 = vector.multi_reduction <add>, %247, %cst_98 [1] : vector<8x8xf32> to vector<8xf32>
      %249 = vector.shape_cast %248 : vector<8xf32> to vector<8x1xf32>
      %250 = tpu.reciprocal %249 : vector<8x1xf32> -> vector<8x1xf32>
      %251 = vector.broadcast %250 : vector<8x1xf32> to vector<8x8xf32>
      %252 = arith.mulf %247, %251 : vector<8x8xf32>
      %253 = vector.extract_strided_slice %174 {offsets = [0, 64], sizes = [8, 32], strides = [1, 1]} : vector<8x128xf32> to vector<8x32xf32>
      %cst_99 = arith.constant dense<0.000000e+00> : vector<8x32xf32>
      %254 = tpu.matmul %252, %253, %cst_99 {dimension_numbers = #tpu.dot_dimension_numbers<[1], [0], [0], [1], [0, 0, 1, 1], [], []>} : vector<8x8xf32>, vector<8x32xf32>, vector<8x32xf32> -> vector<8x32xf32>
      %cst_100 = arith.constant 0.000000e+00 : f32
      %255 = vector.broadcast %cst_100 : f32 to vector<8x32xf32>
      %256 = arith.cmpf ogt, %254, %255 : vector<8x32xf32>
      %257 = math.exp %254 : vector<8x32xf32>
      %cst_101 = arith.constant 1.000000e+00 : f32
      %258 = vector.broadcast %cst_101 : f32 to vector<8x32xf32>
      %259 = arith.subf %257, %258 : vector<8x32xf32>
      %260 = arith.select %256, %254, %259 : vector<8x32xi1>, vector<8x32xf32>
      %261 = vector.extract_strided_slice %175 {offsets = [0, 3], sizes = [8, 1], strides = [1, 1]} : vector<8x4xf32> to vector<8x1xf32>
      %262 = vector.extract_strided_slice %176 {offsets = [3, 0], sizes = [1, 8], strides = [1, 1]} : vector<4x8xf32> to vector<1x8xf32>
      %263 = vector.broadcast %261 : vector<8x1xf32> to vector<8x8xf32>
      %264 = vector.broadcast %262 : vector<1x8xf32> to vector<8x8xf32>
      %265 = arith.addf %263, %264 : vector<8x8xf32>
      %cst_102 = arith.constant 0.000000e+00 : f32
      %266 = vector.broadcast %cst_102 : f32 to vector<8x8xf32>
      %267 = arith.cmpf ogt, %265, %266 : vector<8x8xf32>
      %cst_103 = arith.constant 2.000000e-01 : f32
      %268 = vector.broadcast %cst_103 : f32 to vector<8x8xf32>
      %269 = arith.mulf %268, %265 : vector<8x8xf32>
      %270 = arith.select %267, %265, %269 : vector<8x8xi1>, vector<8x8xf32>
      %cst_104 = arith.constant dense<0xFF800000> : vector<8xf32>
      %271 = vector.multi_reduction <maximumf>, %270, %cst_104 [1] : vector<8x8xf32> to vector<8xf32>
      %272 = vector.shape_cast %271 : vector<8xf32> to vector<8x1xf32>
      %273 = vector.broadcast %272 : vector<8x1xf32> to vector<8x8xf32>
      %274 = arith.subf %270, %273 : vector<8x8xf32>
      %275 = math.exp %274 : vector<8x8xf32>
      %cst_105 = arith.constant dense<0.000000e+00> : vector<8xf32>
      %276 = vector.multi_reduction <add>, %275, %cst_105 [1] : vector<8x8xf32> to vector<8xf32>
      %277 = vector.shape_cast %276 : vector<8xf32> to vector<8x1xf32>
      %278 = tpu.reciprocal %277 : vector<8x1xf32> -> vector<8x1xf32>
      %279 = vector.broadcast %278 : vector<8x1xf32> to vector<8x8xf32>
      %280 = arith.mulf %275, %279 : vector<8x8xf32>
      %281 = vector.extract_strided_slice %174 {offsets = [0, 96], sizes = [8, 32], strides = [1, 1]} : vector<8x128xf32> to vector<8x32xf32>
      %cst_106 = arith.constant dense<0.000000e+00> : vector<8x32xf32>
      %282 = tpu.matmul %280, %281, %cst_106 {dimension_numbers = #tpu.dot_dimension_numbers<[1], [0], [0], [1], [0, 0, 1, 1], [], []>} : vector<8x8xf32>, vector<8x32xf32>, vector<8x32xf32> -> vector<8x32xf32>
      %cst_107 = arith.constant 0.000000e+00 : f32
      %283 = vector.broadcast %cst_107 : f32 to vector<8x32xf32>
      %284 = arith.cmpf ogt, %282, %283 : vector<8x32xf32>
      %285 = math.exp %282 : vector<8x32xf32>
      %cst_108 = arith.constant 1.000000e+00 : f32
      %286 = vector.broadcast %cst_108 : f32 to vector<8x32xf32>
      %287 = arith.subf %285, %286 : vector<8x32xf32>
      %288 = arith.select %284, %282, %287 : vector<8x32xi1>, vector<8x32xf32>
      %289 = tpu.concatenate %204, %232, %260, %288 in 1 : vector<8x32xf32>, vector<8x32xf32>, vector<8x32xf32>, vector<8x32xf32> -> vector<8x128xf32>
      %cst_109 = arith.constant dense<0.000000e+00> : vector<8x8xf32>
      %290 = tpu.matmul %289, %169, %cst_109 {dimension_numbers = #tpu.dot_dimension_numbers<[1], [0], [0], [1], [0, 0, 1, 1], [], []>} : vector<8x128xf32>, vector<128x8xf32>, vector<8x8xf32> -> vector<8x8xf32>
      %cst_110 = arith.constant dense<0.000000e+00> : vector<8x1xf32>
      %291 = tpu.matmul %290, %171, %cst_110 {dimension_numbers = #tpu.dot_dimension_numbers<[1], [0], [0], [1], [0, 0, 1, 1], [], []>} : vector<8x8xf32>, vector<8x1xf32>, vector<8x1xf32> -> vector<8x1xf32>
      %cst_111 = arith.constant dense<0.000000e+00> : vector<1x8xf32>
      %292 = tpu.matmul %173, %290, %cst_111 {dimension_numbers = #tpu.dot_dimension_numbers<[1], [1], [0], [0], [0, 0, 1, 0], [], []>} : vector<1x8xf32>, vector<8x8xf32>, vector<1x8xf32> -> vector<1x8xf32>
      %293 = vector.broadcast %291 : vector<8x1xf32> to vector<8x8xf32>
      %294 = vector.broadcast %292 : vector<1x8xf32> to vector<8x8xf32>
      %295 = arith.addf %293, %294 : vector<8x8xf32>
      %cst_112 = arith.constant 0.000000e+00 : f32
      %296 = vector.broadcast %cst_112 : f32 to vector<8x8xf32>
      %297 = arith.cmpf ogt, %295, %296 : vector<8x8xf32>
      %cst_113 = arith.constant 2.000000e-01 : f32
      %298 = vector.broadcast %cst_113 : f32 to vector<8x8xf32>
      %299 = arith.mulf %298, %295 : vector<8x8xf32>
      %300 = arith.select %297, %295, %299 : vector<8x8xi1>, vector<8x8xf32>
      %cst_114 = arith.constant dense<0xFF800000> : vector<8xf32>
      %301 = vector.multi_reduction <maximumf>, %300, %cst_114 [1] : vector<8x8xf32> to vector<8xf32>
      %302 = vector.shape_cast %301 : vector<8xf32> to vector<8x1xf32>
      %303 = vector.broadcast %302 : vector<8x1xf32> to vector<8x8xf32>
      %304 = arith.subf %300, %303 : vector<8x8xf32>
      %305 = math.exp %304 : vector<8x8xf32>
      %cst_115 = arith.constant dense<0.000000e+00> : vector<8xf32>
      %306 = vector.multi_reduction <add>, %305, %cst_115 [1] : vector<8x8xf32> to vector<8xf32>
      %307 = vector.shape_cast %306 : vector<8xf32> to vector<8x1xf32>
      %308 = tpu.reciprocal %307 : vector<8x1xf32> -> vector<8x1xf32>
      %309 = vector.broadcast %308 : vector<8x1xf32> to vector<8x8xf32>
      %310 = arith.mulf %305, %309 : vector<8x8xf32>
      %cst_116 = arith.constant dense<0.000000e+00> : vector<8x8xf32>
      %311 = tpu.matmul %310, %290, %cst_116 {dimension_numbers = #tpu.dot_dimension_numbers<[1], [0], [0], [1], [0, 0, 1, 1], [], []>} : vector<8x8xf32>, vector<8x8xf32>, vector<8x8xf32> -> vector<8x8xf32>
      %cst_117 = arith.constant 0.000000e+00 : f32
      %312 = vector.broadcast %cst_117 : f32 to vector<8x8xf32>
      %313 = arith.cmpf ogt, %311, %312 : vector<8x8xf32>
      %314 = math.exp %311 : vector<8x8xf32>
      %cst_118 = arith.constant 1.000000e+00 : f32
      %315 = vector.broadcast %cst_118 : f32 to vector<8x8xf32>
      %316 = arith.subf %314, %315 : vector<8x8xf32>
      %317 = arith.select %313, %311, %316 : vector<8x8xi1>, vector<8x8xf32>
      %318 = arith.addf %161, %317 : vector<8x8xf32>
      %c2 = arith.constant 2 : index
      %c0_119 = arith.constant 0 : index
      %c0_120 = arith.constant 0 : index
      %319 = vector.load %arg1[%c2, %c0_119, %c0_120] : memref<3x8x128xf32, #tpu.memory_space<vmem>>, vector<1x8x128xf32>
      %320 = vector.shape_cast %319 : vector<1x8x128xf32> to vector<8x128xf32>
      %c2_121 = arith.constant 2 : index
      %c0_122 = arith.constant 0 : index
      %c0_123 = arith.constant 0 : index
      %321 = vector.load %arg2[%c2_121, %c0_122, %c0_123] : memref<3x128x4xf32, #tpu.memory_space<vmem>>, vector<1x128x4xf32>
      %322 = vector.shape_cast %321 : vector<1x128x4xf32> to vector<128x4xf32>
      %c2_124 = arith.constant 2 : index
      %c0_125 = arith.constant 0 : index
      %c0_126 = arith.constant 0 : index
      %323 = vector.load %arg3[%c2_124, %c0_125, %c0_126] : memref<3x4x128xf32, #tpu.memory_space<vmem>>, vector<1x4x128xf32>
      %324 = vector.shape_cast %323 : vector<1x4x128xf32> to vector<4x128xf32>
      %c2_127 = arith.constant 2 : index
      %c0_128 = arith.constant 0 : index
      %c0_129 = arith.constant 0 : index
      %325 = vector.load %arg4[%c2_127, %c0_128, %c0_129] : memref<3x128x8xf32, #tpu.memory_space<vmem>>, vector<1x128x8xf32>
      %326 = vector.shape_cast %325 : vector<1x128x8xf32> to vector<128x8xf32>
      %c2_130 = arith.constant 2 : index
      %c0_131 = arith.constant 0 : index
      %c0_132 = arith.constant 0 : index
      %327 = vector.load %arg5[%c2_130, %c0_131, %c0_132] : memref<3x8x1xf32, #tpu.memory_space<vmem>>, vector<1x8x1xf32>
      %328 = vector.shape_cast %327 : vector<1x8x1xf32> to vector<8x1xf32>
      %c2_133 = arith.constant 2 : index
      %c0_134 = arith.constant 0 : index
      %c0_135 = arith.constant 0 : index
      %329 = vector.load %arg6[%c2_133, %c0_134, %c0_135] : memref<3x1x8xf32, #tpu.memory_space<vmem>>, vector<1x1x8xf32>
      %330 = vector.shape_cast %329 : vector<1x1x8xf32> to vector<1x8xf32>
      %cst_136 = arith.constant dense<0.000000e+00> : vector<8x128xf32>
      %331 = tpu.matmul %318, %320, %cst_136 {dimension_numbers = #tpu.dot_dimension_numbers<[1], [0], [0], [1], [0, 0, 1, 1], [], []>} : vector<8x8xf32>, vector<8x128xf32>, vector<8x128xf32> -> vector<8x128xf32>
      %cst_137 = arith.constant dense<0.000000e+00> : vector<8x4xf32>
      %332 = tpu.matmul %331, %322, %cst_137 {dimension_numbers = #tpu.dot_dimension_numbers<[1], [0], [0], [1], [0, 0, 1, 1], [], []>} : vector<8x128xf32>, vector<128x4xf32>, vector<8x4xf32> -> vector<8x4xf32>
      %cst_138 = arith.constant dense<0.000000e+00> : vector<4x8xf32>
      %333 = tpu.matmul %324, %331, %cst_138 {dimension_numbers = #tpu.dot_dimension_numbers<[1], [1], [0], [0], [0, 0, 1, 0], [], []>} : vector<4x128xf32>, vector<8x128xf32>, vector<4x8xf32> -> vector<4x8xf32>
      %334 = vector.extract_strided_slice %332 {offsets = [0, 0], sizes = [8, 1], strides = [1, 1]} : vector<8x4xf32> to vector<8x1xf32>
      %335 = vector.extract_strided_slice %333 {offsets = [0, 0], sizes = [1, 8], strides = [1, 1]} : vector<4x8xf32> to vector<1x8xf32>
      %336 = vector.broadcast %334 : vector<8x1xf32> to vector<8x8xf32>
      %337 = vector.broadcast %335 : vector<1x8xf32> to vector<8x8xf32>
      %338 = arith.addf %336, %337 : vector<8x8xf32>
      %cst_139 = arith.constant 0.000000e+00 : f32
      %339 = vector.broadcast %cst_139 : f32 to vector<8x8xf32>
      %340 = arith.cmpf ogt, %338, %339 : vector<8x8xf32>
      %cst_140 = arith.constant 2.000000e-01 : f32
      %341 = vector.broadcast %cst_140 : f32 to vector<8x8xf32>
      %342 = arith.mulf %341, %338 : vector<8x8xf32>
      %343 = arith.select %340, %338, %342 : vector<8x8xi1>, vector<8x8xf32>
      %cst_141 = arith.constant dense<0xFF800000> : vector<8xf32>
      %344 = vector.multi_reduction <maximumf>, %343, %cst_141 [1] : vector<8x8xf32> to vector<8xf32>
      %345 = vector.shape_cast %344 : vector<8xf32> to vector<8x1xf32>
      %346 = vector.broadcast %345 : vector<8x1xf32> to vector<8x8xf32>
      %347 = arith.subf %343, %346 : vector<8x8xf32>
      %348 = math.exp %347 : vector<8x8xf32>
      %cst_142 = arith.constant dense<0.000000e+00> : vector<8xf32>
      %349 = vector.multi_reduction <add>, %348, %cst_142 [1] : vector<8x8xf32> to vector<8xf32>
      %350 = vector.shape_cast %349 : vector<8xf32> to vector<8x1xf32>
      %351 = tpu.reciprocal %350 : vector<8x1xf32> -> vector<8x1xf32>
      %352 = vector.broadcast %351 : vector<8x1xf32> to vector<8x8xf32>
      %353 = arith.mulf %348, %352 : vector<8x8xf32>
      %354 = vector.extract_strided_slice %331 {offsets = [0, 0], sizes = [8, 32], strides = [1, 1]} : vector<8x128xf32> to vector<8x32xf32>
      %cst_143 = arith.constant dense<0.000000e+00> : vector<8x32xf32>
      %355 = tpu.matmul %353, %354, %cst_143 {dimension_numbers = #tpu.dot_dimension_numbers<[1], [0], [0], [1], [0, 0, 1, 1], [], []>} : vector<8x8xf32>, vector<8x32xf32>, vector<8x32xf32> -> vector<8x32xf32>
      %cst_144 = arith.constant 0.000000e+00 : f32
      %356 = vector.broadcast %cst_144 : f32 to vector<8x32xf32>
      %357 = arith.cmpf ogt, %355, %356 : vector<8x32xf32>
      %358 = math.exp %355 : vector<8x32xf32>
      %cst_145 = arith.constant 1.000000e+00 : f32
      %359 = vector.broadcast %cst_145 : f32 to vector<8x32xf32>
      %360 = arith.subf %358, %359 : vector<8x32xf32>
      %361 = arith.select %357, %355, %360 : vector<8x32xi1>, vector<8x32xf32>
      %362 = vector.extract_strided_slice %332 {offsets = [0, 1], sizes = [8, 1], strides = [1, 1]} : vector<8x4xf32> to vector<8x1xf32>
      %363 = vector.extract_strided_slice %333 {offsets = [1, 0], sizes = [1, 8], strides = [1, 1]} : vector<4x8xf32> to vector<1x8xf32>
      %364 = vector.broadcast %362 : vector<8x1xf32> to vector<8x8xf32>
      %365 = vector.broadcast %363 : vector<1x8xf32> to vector<8x8xf32>
      %366 = arith.addf %364, %365 : vector<8x8xf32>
      %cst_146 = arith.constant 0.000000e+00 : f32
      %367 = vector.broadcast %cst_146 : f32 to vector<8x8xf32>
      %368 = arith.cmpf ogt, %366, %367 : vector<8x8xf32>
      %cst_147 = arith.constant 2.000000e-01 : f32
      %369 = vector.broadcast %cst_147 : f32 to vector<8x8xf32>
      %370 = arith.mulf %369, %366 : vector<8x8xf32>
      %371 = arith.select %368, %366, %370 : vector<8x8xi1>, vector<8x8xf32>
      %cst_148 = arith.constant dense<0xFF800000> : vector<8xf32>
      %372 = vector.multi_reduction <maximumf>, %371, %cst_148 [1] : vector<8x8xf32> to vector<8xf32>
      %373 = vector.shape_cast %372 : vector<8xf32> to vector<8x1xf32>
      %374 = vector.broadcast %373 : vector<8x1xf32> to vector<8x8xf32>
      %375 = arith.subf %371, %374 : vector<8x8xf32>
      %376 = math.exp %375 : vector<8x8xf32>
      %cst_149 = arith.constant dense<0.000000e+00> : vector<8xf32>
      %377 = vector.multi_reduction <add>, %376, %cst_149 [1] : vector<8x8xf32> to vector<8xf32>
      %378 = vector.shape_cast %377 : vector<8xf32> to vector<8x1xf32>
      %379 = tpu.reciprocal %378 : vector<8x1xf32> -> vector<8x1xf32>
      %380 = vector.broadcast %379 : vector<8x1xf32> to vector<8x8xf32>
      %381 = arith.mulf %376, %380 : vector<8x8xf32>
      %382 = vector.extract_strided_slice %331 {offsets = [0, 32], sizes = [8, 32], strides = [1, 1]} : vector<8x128xf32> to vector<8x32xf32>
      %cst_150 = arith.constant dense<0.000000e+00> : vector<8x32xf32>
      %383 = tpu.matmul %381, %382, %cst_150 {dimension_numbers = #tpu.dot_dimension_numbers<[1], [0], [0], [1], [0, 0, 1, 1], [], []>} : vector<8x8xf32>, vector<8x32xf32>, vector<8x32xf32> -> vector<8x32xf32>
      %cst_151 = arith.constant 0.000000e+00 : f32
      %384 = vector.broadcast %cst_151 : f32 to vector<8x32xf32>
      %385 = arith.cmpf ogt, %383, %384 : vector<8x32xf32>
      %386 = math.exp %383 : vector<8x32xf32>
      %cst_152 = arith.constant 1.000000e+00 : f32
      %387 = vector.broadcast %cst_152 : f32 to vector<8x32xf32>
      %388 = arith.subf %386, %387 : vector<8x32xf32>
      %389 = arith.select %385, %383, %388 : vector<8x32xi1>, vector<8x32xf32>
      %390 = vector.extract_strided_slice %332 {offsets = [0, 2], sizes = [8, 1], strides = [1, 1]} : vector<8x4xf32> to vector<8x1xf32>
      %391 = vector.extract_strided_slice %333 {offsets = [2, 0], sizes = [1, 8], strides = [1, 1]} : vector<4x8xf32> to vector<1x8xf32>
      %392 = vector.broadcast %390 : vector<8x1xf32> to vector<8x8xf32>
      %393 = vector.broadcast %391 : vector<1x8xf32> to vector<8x8xf32>
      %394 = arith.addf %392, %393 : vector<8x8xf32>
      %cst_153 = arith.constant 0.000000e+00 : f32
      %395 = vector.broadcast %cst_153 : f32 to vector<8x8xf32>
      %396 = arith.cmpf ogt, %394, %395 : vector<8x8xf32>
      %cst_154 = arith.constant 2.000000e-01 : f32
      %397 = vector.broadcast %cst_154 : f32 to vector<8x8xf32>
      %398 = arith.mulf %397, %394 : vector<8x8xf32>
      %399 = arith.select %396, %394, %398 : vector<8x8xi1>, vector<8x8xf32>
      %cst_155 = arith.constant dense<0xFF800000> : vector<8xf32>
      %400 = vector.multi_reduction <maximumf>, %399, %cst_155 [1] : vector<8x8xf32> to vector<8xf32>
      %401 = vector.shape_cast %400 : vector<8xf32> to vector<8x1xf32>
      %402 = vector.broadcast %401 : vector<8x1xf32> to vector<8x8xf32>
      %403 = arith.subf %399, %402 : vector<8x8xf32>
      %404 = math.exp %403 : vector<8x8xf32>
      %cst_156 = arith.constant dense<0.000000e+00> : vector<8xf32>
      %405 = vector.multi_reduction <add>, %404, %cst_156 [1] : vector<8x8xf32> to vector<8xf32>
      %406 = vector.shape_cast %405 : vector<8xf32> to vector<8x1xf32>
      %407 = tpu.reciprocal %406 : vector<8x1xf32> -> vector<8x1xf32>
      %408 = vector.broadcast %407 : vector<8x1xf32> to vector<8x8xf32>
      %409 = arith.mulf %404, %408 : vector<8x8xf32>
      %410 = vector.extract_strided_slice %331 {offsets = [0, 64], sizes = [8, 32], strides = [1, 1]} : vector<8x128xf32> to vector<8x32xf32>
      %cst_157 = arith.constant dense<0.000000e+00> : vector<8x32xf32>
      %411 = tpu.matmul %409, %410, %cst_157 {dimension_numbers = #tpu.dot_dimension_numbers<[1], [0], [0], [1], [0, 0, 1, 1], [], []>} : vector<8x8xf32>, vector<8x32xf32>, vector<8x32xf32> -> vector<8x32xf32>
      %cst_158 = arith.constant 0.000000e+00 : f32
      %412 = vector.broadcast %cst_158 : f32 to vector<8x32xf32>
      %413 = arith.cmpf ogt, %411, %412 : vector<8x32xf32>
      %414 = math.exp %411 : vector<8x32xf32>
      %cst_159 = arith.constant 1.000000e+00 : f32
      %415 = vector.broadcast %cst_159 : f32 to vector<8x32xf32>
      %416 = arith.subf %414, %415 : vector<8x32xf32>
      %417 = arith.select %413, %411, %416 : vector<8x32xi1>, vector<8x32xf32>
      %418 = vector.extract_strided_slice %332 {offsets = [0, 3], sizes = [8, 1], strides = [1, 1]} : vector<8x4xf32> to vector<8x1xf32>
      %419 = vector.extract_strided_slice %333 {offsets = [3, 0], sizes = [1, 8], strides = [1, 1]} : vector<4x8xf32> to vector<1x8xf32>
      %420 = vector.broadcast %418 : vector<8x1xf32> to vector<8x8xf32>
      %421 = vector.broadcast %419 : vector<1x8xf32> to vector<8x8xf32>
      %422 = arith.addf %420, %421 : vector<8x8xf32>
      %cst_160 = arith.constant 0.000000e+00 : f32
      %423 = vector.broadcast %cst_160 : f32 to vector<8x8xf32>
      %424 = arith.cmpf ogt, %422, %423 : vector<8x8xf32>
      %cst_161 = arith.constant 2.000000e-01 : f32
      %425 = vector.broadcast %cst_161 : f32 to vector<8x8xf32>
      %426 = arith.mulf %425, %422 : vector<8x8xf32>
      %427 = arith.select %424, %422, %426 : vector<8x8xi1>, vector<8x8xf32>
      %cst_162 = arith.constant dense<0xFF800000> : vector<8xf32>
      %428 = vector.multi_reduction <maximumf>, %427, %cst_162 [1] : vector<8x8xf32> to vector<8xf32>
      %429 = vector.shape_cast %428 : vector<8xf32> to vector<8x1xf32>
      %430 = vector.broadcast %429 : vector<8x1xf32> to vector<8x8xf32>
      %431 = arith.subf %427, %430 : vector<8x8xf32>
      %432 = math.exp %431 : vector<8x8xf32>
      %cst_163 = arith.constant dense<0.000000e+00> : vector<8xf32>
      %433 = vector.multi_reduction <add>, %432, %cst_163 [1] : vector<8x8xf32> to vector<8xf32>
      %434 = vector.shape_cast %433 : vector<8xf32> to vector<8x1xf32>
      %435 = tpu.reciprocal %434 : vector<8x1xf32> -> vector<8x1xf32>
      %436 = vector.broadcast %435 : vector<8x1xf32> to vector<8x8xf32>
      %437 = arith.mulf %432, %436 : vector<8x8xf32>
      %438 = vector.extract_strided_slice %331 {offsets = [0, 96], sizes = [8, 32], strides = [1, 1]} : vector<8x128xf32> to vector<8x32xf32>
      %cst_164 = arith.constant dense<0.000000e+00> : vector<8x32xf32>
      %439 = tpu.matmul %437, %438, %cst_164 {dimension_numbers = #tpu.dot_dimension_numbers<[1], [0], [0], [1], [0, 0, 1, 1], [], []>} : vector<8x8xf32>, vector<8x32xf32>, vector<8x32xf32> -> vector<8x32xf32>
      %cst_165 = arith.constant 0.000000e+00 : f32
      %440 = vector.broadcast %cst_165 : f32 to vector<8x32xf32>
      %441 = arith.cmpf ogt, %439, %440 : vector<8x32xf32>
      %442 = math.exp %439 : vector<8x32xf32>
      %cst_166 = arith.constant 1.000000e+00 : f32
      %443 = vector.broadcast %cst_166 : f32 to vector<8x32xf32>
      %444 = arith.subf %442, %443 : vector<8x32xf32>
      %445 = arith.select %441, %439, %444 : vector<8x32xi1>, vector<8x32xf32>
      %446 = tpu.concatenate %361, %389, %417, %445 in 1 : vector<8x32xf32>, vector<8x32xf32>, vector<8x32xf32>, vector<8x32xf32> -> vector<8x128xf32>
      %cst_167 = arith.constant dense<0.000000e+00> : vector<8x8xf32>
      %447 = tpu.matmul %446, %326, %cst_167 {dimension_numbers = #tpu.dot_dimension_numbers<[1], [0], [0], [1], [0, 0, 1, 1], [], []>} : vector<8x128xf32>, vector<128x8xf32>, vector<8x8xf32> -> vector<8x8xf32>
      %cst_168 = arith.constant dense<0.000000e+00> : vector<8x1xf32>
      %448 = tpu.matmul %447, %328, %cst_168 {dimension_numbers = #tpu.dot_dimension_numbers<[1], [0], [0], [1], [0, 0, 1, 1], [], []>} : vector<8x8xf32>, vector<8x1xf32>, vector<8x1xf32> -> vector<8x1xf32>
      %cst_169 = arith.constant dense<0.000000e+00> : vector<1x8xf32>
      %449 = tpu.matmul %330, %447, %cst_169 {dimension_numbers = #tpu.dot_dimension_numbers<[1], [1], [0], [0], [0, 0, 1, 0], [], []>} : vector<1x8xf32>, vector<8x8xf32>, vector<1x8xf32> -> vector<1x8xf32>
      %450 = vector.broadcast %448 : vector<8x1xf32> to vector<8x8xf32>
      %451 = vector.broadcast %449 : vector<1x8xf32> to vector<8x8xf32>
      %452 = arith.addf %450, %451 : vector<8x8xf32>
      %cst_170 = arith.constant 0.000000e+00 : f32
      %453 = vector.broadcast %cst_170 : f32 to vector<8x8xf32>
      %454 = arith.cmpf ogt, %452, %453 : vector<8x8xf32>
      %cst_171 = arith.constant 2.000000e-01 : f32
      %455 = vector.broadcast %cst_171 : f32 to vector<8x8xf32>
      %456 = arith.mulf %455, %452 : vector<8x8xf32>
      %457 = arith.select %454, %452, %456 : vector<8x8xi1>, vector<8x8xf32>
      %cst_172 = arith.constant dense<0xFF800000> : vector<8xf32>
      %458 = vector.multi_reduction <maximumf>, %457, %cst_172 [1] : vector<8x8xf32> to vector<8xf32>
      %459 = vector.shape_cast %458 : vector<8xf32> to vector<8x1xf32>
      %460 = vector.broadcast %459 : vector<8x1xf32> to vector<8x8xf32>
      %461 = arith.subf %457, %460 : vector<8x8xf32>
      %462 = math.exp %461 : vector<8x8xf32>
      %cst_173 = arith.constant dense<0.000000e+00> : vector<8xf32>
      %463 = vector.multi_reduction <add>, %462, %cst_173 [1] : vector<8x8xf32> to vector<8xf32>
      %464 = vector.shape_cast %463 : vector<8xf32> to vector<8x1xf32>
      %465 = tpu.reciprocal %464 : vector<8x1xf32> -> vector<8x1xf32>
      %466 = vector.broadcast %465 : vector<8x1xf32> to vector<8x8xf32>
      %467 = arith.mulf %462, %466 : vector<8x8xf32>
      %cst_174 = arith.constant dense<0.000000e+00> : vector<8x8xf32>
      %468 = tpu.matmul %467, %447, %cst_174 {dimension_numbers = #tpu.dot_dimension_numbers<[1], [0], [0], [1], [0, 0, 1, 1], [], []>} : vector<8x8xf32>, vector<8x8xf32>, vector<8x8xf32> -> vector<8x8xf32>
      %cst_175 = arith.constant 0.000000e+00 : f32
      %469 = vector.broadcast %cst_175 : f32 to vector<8x8xf32>
      %470 = arith.cmpf ogt, %468, %469 : vector<8x8xf32>
      %471 = math.exp %468 : vector<8x8xf32>
      %cst_176 = arith.constant 1.000000e+00 : f32
      %472 = vector.broadcast %cst_176 : f32 to vector<8x8xf32>
      %473 = arith.subf %471, %472 : vector<8x8xf32>
      %474 = arith.select %470, %468, %473 : vector<8x8xi1>, vector<8x8xf32>
      %475 = arith.addf %5, %474 : vector<8x8xf32>
      %476 = arith.index_cast %arg8 : i32 to index
      %c0_177 = arith.constant 0 : index
      %c0_178 = arith.constant 0 : index
      %477 = vector.load %arg7[%476, %c0_177, %c0_178] : memref<6x8x8xf32, #tpu.memory_space<vmem>>, vector<1x8x8xf32>
      %478 = vector.shape_cast %477 : vector<1x8x8xf32> to vector<8x8xf32>
      %479 = vector.shape_cast %475 : vector<8x8xf32> to vector<1x8x8xf32>
      tpu.vector_store %arg7[%476, %c0_177, %c0_178], %479 {strides = array<i32>} : memref<6x8x8xf32, #tpu.memory_space<vmem>>, vector<1x8x8xf32>,
      scf.yield %318 : vector<8x8xf32>
    }
    %c6_i32_0 = arith.constant 6 : i32
    return
  }
}

</mosaic_0001>

<llo_original>
// kernel: tpu_custom_call.1
$region0: #{tpu_custom_call.1}
  #allocation0 [shape = 'u32[]', space=smem, size = 0x4, offset = 0x4, fixed_abs, tag = 'smem constant byte address 0x4 - core index']
  #allocation1 [shape = 'u32[144,128]{1,0:T(1,128)}', space=vmem, size = 0x12000, scoped, tag = 'internal scratch']
  %s0 = inlined_call_operand.vmem [shape: f32[6,8,8], index: 0, kind: input, shape index: {}]
  %s1 = inlined_call_operand.vmem [shape: f32[3,8,128], index: 1, kind: input, shape index: {}]
  %s2 = inlined_call_operand.vmem [shape: f32[3,128,4], index: 2, kind: input, shape index: {}]
  %s3 = inlined_call_operand.vmem [shape: f32[3,4,128], index: 3, kind: input, shape index: {}]
  %s4 = inlined_call_operand.vmem [shape: f32[3,128,8], index: 4, kind: input, shape index: {}]
  %s5 = inlined_call_operand.vmem [shape: f32[3,8,1], index: 5, kind: input, shape index: {}]
  %s6 = inlined_call_operand.vmem [shape: f32[3,1,8], index: 6, kind: input, shape index: {}]
  %s7 = inlined_call_operand.hbm [shape: f32[6,8,8], index: 7, kind: output, shape index: {}]
  %s8 = sld [smem:[#allocation0]]
  $region45: #{tpu_custom_call.1} parent=0
    _
  %s10 = ssub.s32 1, %s8
  %s11 = scalar_select 0, %s10, %s8
  $region1: #{tpu_custom_call.1} parent=0
    #allocation2 [shape = 'u8[24576]{0}', space=vmem, size = 0x6000, scoped, tag = 'output window, operand 0, single buffered']
    #allocation3 [shape = 's32[1]{0}', space=sflag, size = 0x4, scoped, tag = 'scoped memory for tpu_custom_call.1']
    %12 = vsyncpa [#allocation3], 0
    // Predicated region
    $region2: #{tpu_custom_call.1} parent=1 // pred_check
      _
    $region3: #{tpu_custom_call.1} parent=1 // pred_check_branch
      %14 = sbr.rel (0) target = $region5
    $region4: #{tpu_custom_call.1} parent=1 // pred_region
      _
    $region5: #{tpu_custom_call.1} parent=1 // pred_fallthru
      _
    // Predicated region
    $region6: #{tpu_custom_call.1} parent=1 // pred_check
      _
    $region7: #{tpu_custom_call.1} parent=1 // pred_check_branch
      %16 = sbr.rel (0) target = $region9
    $region8: #{tpu_custom_call.1} parent=1 // pred_region
      _
    $region9: #{tpu_custom_call.1} parent=1 // pred_fallthru
      _
    // Predicated region
    $region10: #{tpu_custom_call.1} parent=1 // pred_check
      _
    $region11: #{tpu_custom_call.1} parent=1 // pred_check_branch
      %18 = sbr.rel (0) target = $region13
    $region12: #{tpu_custom_call.1} parent=1 // pred_region
      _
    $region13: #{tpu_custom_call.1} parent=1 // pred_fallthru
      _
    // Predicated region
    $region14: #{tpu_custom_call.1} parent=1 // pred_check
      _
    $region15: #{tpu_custom_call.1} parent=1 // pred_check_branch
      %20 = sbr.rel (0) target = $region17
    $region16: #{tpu_custom_call.1} parent=1 // pred_region
      _
    $region17: #{tpu_custom_call.1} parent=1 // pred_fallthru
      _
    // Predicated region
    $region18: #{tpu_custom_call.1} parent=1 // pred_check
      _
    $region19: #{tpu_custom_call.1} parent=1 // pred_check_branch
      %22 = sbr.rel (0) target = $region21
    $region20: #{tpu_custom_call.1} parent=1 // pred_region
      _
    $region21: #{tpu_custom_call.1} parent=1 // pred_fallthru
      _
    // Predicated region
    $region22: #{tpu_custom_call.1} parent=1 // pred_check
      _
    $region23: #{tpu_custom_call.1} parent=1 // pred_check_branch
      %24 = sbr.rel (0) target = $region25
    $region24: #{tpu_custom_call.1} parent=1 // pred_region
      _
    $region25: #{tpu_custom_call.1} parent=1 // pred_fallthru
      _
    // Predicated region
    $region26: #{tpu_custom_call.1} parent=1 // pred_check
      _
    $region27: #{tpu_custom_call.1} parent=1 // pred_check_branch
      %26 = sbr.rel (0) target = $region29
    $region28: #{tpu_custom_call.1} parent=1 // pred_region
      _
    $region29: #{tpu_custom_call.1} parent=1 // pred_fallthru
      _
    loop: start=0, step=1, limit=6
    $region30: #{tpu_custom_call.1} parent=1 // loop_pre_header
      _
    $region31: #{tpu_custom_call.1} parent=1 // loop_header
      %s28 = sphi 0, %s32
      %p29 = scmp.ge.s32.totalorder %s28, 6
      %v33 = vphi 0.0, %v2041
    $region32: #{tpu_custom_call.1} parent=1 // loop_header_branch
      %31 = sbr.rel (%p29) target = $region36
    $region33: #{tpu_custom_call.1} parent=1 // loop_body
      %s34 = smul.u32 %s28, 8
      %s35 = scalar_lea.vmem %s0, %s34
      %v36 = vld [vmem:[%s35] sm:$0xff]
      %v37 = vld [vmem:[%s1] sm:$0xff]
      %v38 = vld [vmem:[%s2] sm:$0xff]
      %v39 = vld [vmem:[%s2 + $0x8] sm:$0xff]
      %v40 = vld [vmem:[%s2 + $0x10] sm:$0xff]
      %v41 = vld [vmem:[%s2 + $0x18] sm:$0xff]
      %v42 = vld [vmem:[%s2 + $0x20] sm:$0xff]
      %v43 = vld [vmem:[%s2 + $0x28] sm:$0xff]
      %v44 = vld [vmem:[%s2 + $0x30] sm:$0xff]
      %v45 = vld [vmem:[%s2 + $0x38] sm:$0xff]
      %v46 = vld [vmem:[%s2 + $0x40] sm:$0xff]
      %v47 = vld [vmem:[%s2 + $0x48] sm:$0xff]
      %v48 = vld [vmem:[%s2 + $0x50] sm:$0xff]
      %v49 = vld [vmem:[%s2 + $0x58] sm:$0xff]
      %v50 = vld [vmem:[%s2 + $0x60] sm:$0xff]
      %v51 = vld [vmem:[%s2 + $0x68] sm:$0xff]
      %v52 = vld [vmem:[%s2 + $0x70] sm:$0xff]
      %v53 = vld [vmem:[%s2 + $0x78] sm:$0xff]
      %v54 = vld [vmem:[%s3] sm:$0xf]
      %v55 = vld [vmem:[%s4] sm:$0xff]
      %v56 = vld [vmem:[%s4 + $0x8] sm:$0xff]
      %v57 = vld [vmem:[%s4 + $0x10] sm:$0xff]
      %v58 = vld [vmem:[%s4 + $0x18] sm:$0xff]
      %v59 = vld [vmem:[%s4 + $0x20] sm:$0xff]
      %v60 = vld [vmem:[%s4 + $0x28] sm:$0xff]
      %v61 = vld [vmem:[%s4 + $0x30] sm:$0xff]
      %v62 = vld [vmem:[%s4 + $0x38] sm:$0xff]
      %v63 = vld [vmem:[%s4 + $0x40] sm:$0xff]
      %v64 = vld [vmem:[%s4 + $0x48] sm:$0xff]
      %v65 = vld [vmem:[%s4 + $0x50] sm:$0xff]
      %v66 = vld [vmem:[%s4 + $0x58] sm:$0xff]
      %v67 = vld [vmem:[%s4 + $0x60] sm:$0xff]
      %v68 = vld [vmem:[%s4 + $0x68] sm:$0xff]
      %v69 = vld [vmem:[%s4 + $0x70] sm:$0xff]
      %v70 = vld [vmem:[%s4 + $0x78] sm:$0xff]
      %v71 = vld [vmem:[%s5] sm:$0xff]
      %v72 = vld [vmem:[%s6] sm:$0x1]
      %vm73 = vcmask 64512
      %v75 = vsel %vm73, %v36, 0
      %77 = vmatprep.subr.mxu0 0.0
      %78 = vmatpush1.msra.mxu0 %v37
      %79 = vmatprep.subr.mxu0 0.0
      %80 = vmatpush1.msra.mxu0 0.0
      %81 = vmatprep.subr.mxu0 0.0
      %82 = vmatpush1.msra.mxu0 0.0
      %83 = vmatprep.subr.mxu0 0.0
      %84 = vmatpush1.msra.mxu0 0.0
      %85 = vmatprep.subr.mxu0 0.0
      %86 = vmatpush1.msra.mxu0 0.0
      %87 = vmatprep.subr.mxu0 0.0
      %88 = vmatpush1.msra.mxu0 0.0
      %89 = vmatprep.subr.mxu0 0.0
      %90 = vmatpush1.msra.mxu0 0.0
      %91 = vmatprep.subr.mxu0 0.0
      %92 = vmatpush1.msra.mxu0 0.0
      %93 = vmatprep.subr.mxu0 0.0
      %94 = vmatpush1.msra.mxu0 0.0
      %95 = vmatprep.subr.mxu0 0.0
      %96 = vmatpush1.msra.mxu0 0.0
      %97 = vmatprep.subr.mxu0 0.0
      %98 = vmatpush1.msra.mxu0 0.0
      %99 = vmatprep.subr.mxu0 0.0
      %100 = vmatpush1.msra.mxu0 0.0
      %101 = vmatprep.subr.mxu0 0.0
      %102 = vmatpush1.msra.mxu0 0.0
      %103 = vmatprep.subr.mxu0 0.0
      %104 = vmatpush1.msra.mxu0 0.0
      %105 = vmatprep.subr.mxu0 0.0
      %106 = vmatpush1.msra.mxu0 0.0
      %107 = vmatprep.subr.mxu0 0.0
      %108 = vmatpush1.msra.mxu0 0.0
      %109 = vmatprep.subr.mxu0 0.0
      %110 = vmatpush1.msra.mxu0 0.0
      %111 = vmatprep.subr.mxu0 0.0
      %112 = vmatpush1.msra.mxu0 0.0
      %113 = vmatprep.subr.mxu0 0.0
      %114 = vmatpush1.msra.mxu0 0.0
      %115 = vmatprep.subr.mxu0 0.0
      %116 = vmatpush1.msra.mxu0 0.0
      %117 = vmatprep.subr.mxu0 0.0
      %118 = vmatpush1.msra.mxu0 0.0
      %119 = vmatprep.subr.mxu0 0.0
      %120 = vmatpush1.msra.mxu0 0.0
      %121 = vmatprep.subr.mxu0 0.0
      %122 = vmatpush1.msra.mxu0 0.0
      %123 = vmatprep.subr.mxu0 0.0
      %124 = vmatpush1.msra.mxu0 0.0
      %125 = vmatprep.subr.mxu0 0.0
      %126 = vmatpush1.msra.mxu0 0.0
      %127 = vmatprep.subr.mxu0 0.0
      %128 = vmatpush1.msra.mxu0 0.0
      %129 = vmatprep.subr.mxu0 0.0
      %130 = vmatpush1.msra.mxu0 0.0
      %131 = vmatprep.subr.mxu0 0.0
      %132 = vmatpush1.msra.mxu0 0.0
      %133 = vmatprep.subr.mxu0 0.0
      %134 = vmatpush1.msra.mxu0 0.0
      %135 = vmatprep.subr.mxu0 0.0
      %136 = vmatpush1.msra.mxu0 0.0
      %137 = vmatprep.subr.mxu0 0.0
      %138 = vmatpush1.msra.mxu0 0.0
      %139 = vmatprep.subr.mxu0 0.0
      %140 = vmatpush1.msra.mxu0 0.0
      %141 = vmatprep.mubr.f32.mxu0 0.0
      %142 = vmatmul.mubr.f32.gmra.mrb[0].mxu0 %v75
      %v143 = vpop.f32.mrb[0].mxu0
      %v144 = vadd.f32 0.0, %v143
      %v145 = vpop.f32.mrb[0].mxu0
      %146 = vdwg.mxu0
      %147 = vmatprep.subr.mxu0 0.0
      %148 = vmatpush1.msra.mxu0 %v38
      %149 = vmatprep.subr.mxu0 0.0
      %150 = vmatpush1.msra.mxu0 %v39
      %151 = vmatprep.subr.mxu0 0.0
      %152 = vmatpush1.msra.mxu0 %v40
      %153 = vmatprep.subr.mxu0 0.0
      %154 = vmatpush1.msra.mxu0 %v41
      %155 = vmatprep.subr.mxu0 0.0
      %156 = vmatpush1.msra.mxu0 %v42
      %157 = vmatprep.subr.mxu0 0.0
      %158 = vmatpush1.msra.mxu0 %v43
      %159 = vmatprep.subr.mxu0 0.0
      %160 = vmatpush1.msra.mxu0 %v44
      %161 = vmatprep.subr.mxu0 0.0
      %162 = vmatpush1.msra.mxu0 %v45
      %163 = vmatprep.subr.mxu0 0.0
      %164 = vmatpush1.msra.mxu0 %v46
      %165 = vmatprep.subr.mxu0 0.0
      %166 = vmatpush1.msra.mxu0 %v47
      %167 = vmatprep.subr.mxu0 0.0
      %168 = vmatpush1.msra.mxu0 %v48
      %169 = vmatprep.subr.mxu0 0.0
      %170 = vmatpush1.msra.mxu0 %v49
      %171 = vmatprep.subr.mxu0 0.0
      %172 = vmatpush1.msra.mxu0 %v50
      %173 = vmatprep.subr.mxu0 0.0
      %174 = vmatpush1.msra.mxu0 %v51
      %175 = vmatprep.subr.mxu0 0.0
      %176 = vmatpush1.msra.mxu0 %v52
      %177 = vmatprep.subr.mxu0 0.0
      %178 = vmatpush1.msra.mxu0 %v53
      %179 = vmatprep.subr.mxu0 0.0
      %180 = vmatpush1.msra.mxu0 0.0
      %181 = vmatprep.subr.mxu0 0.0
      %182 = vmatpush1.msra.mxu0 0.0
      %183 = vmatprep.subr.mxu0 0.0
      %184 = vmatpush1.msra.mxu0 0.0
      %185 = vmatprep.subr.mxu0 0.0
      %186 = vmatpush1.msra.mxu0 0.0
      %187 = vmatprep.subr.mxu0 0.0
      %188 = vmatpush1.msra.mxu0 0.0
      %189 = vmatprep.subr.mxu0 0.0
      %190 = vmatpush1.msra.mxu0 0.0
      %191 = vmatprep.subr.mxu0 0.0
      %192 = vmatpush1.msra.mxu0 0.0
      %193 = vmatprep.subr.mxu0 0.0
      %194 = vmatpush1.msra.mxu0 0.0
      %195 = vmatprep.subr.mxu0 0.0
      %196 = vmatpush1.msra.mxu0 0.0
      %197 = vmatprep.subr.mxu0 0.0
      %198 = vmatpush1.msra.mxu0 0.0
      %199 = vmatprep.subr.mxu0 0.0
      %200 = vmatpush1.msra.mxu0 0.0
      %201 = vmatprep.subr.mxu0 0.0
      %202 = vmatpush1.msra.mxu0 0.0
      %203 = vmatprep.subr.mxu0 0.0
      %204 = vmatpush1.msra.mxu0 0.0
      %205 = vmatprep.subr.mxu0 0.0
      %206 = vmatpush1.msra.mxu0 0.0
      %207 = vmatprep.subr.mxu0 0.0
      %208 = vmatpush1.msra.mxu0 0.0
      %209 = vmatprep.subr.mxu0 0.0
      %210 = vmatpush1.msra.mxu0 0.0
      %211 = vmatprep.mubr.f32.mxu0 0.0
      %212 = vmatmul.mubr.f32.gmra.mrb[0].mxu0 %v144
      %v213 = vpop.f32.mrb[0].mxu0
      %v214 = vadd.f32 0.0, %v213
      %v215 = vpop.f32.mrb[0].mxu0
      %216 = vdwg.mxu0
      %217 = vmatprep.subr.mxu0 0.0
      %218 = vmatpush1.xpose.msra.mxu0 %v144
      %219 = vmatprep.subr.mxu0 0.0
      %220 = vmatpush1.xpose.msra.mxu0 0.0
      %221 = vmatprep.subr.mxu0 0.0
      %222 = vmatpush1.xpose.msra.mxu0 0.0
      %223 = vmatprep.subr.mxu0 0.0
      %224 = vmatpush1.xpose.msra.mxu0 0.0
      %225 = vmatprep.subr.mxu0 0.0
      %226 = vmatpush1.xpose.msra.mxu0 0.0
      %227 = vmatprep.subr.mxu0 0.0
      %228 = vmatpush1.xpose.msra.mxu0 0.0
      %229 = vmatprep.subr.mxu0 0.0
      %230 = vmatpush1.xpose.msra.mxu0 0.0
      %231 = vmatprep.subr.mxu0 0.0
      %232 = vmatpush1.xpose.msra.mxu0 0.0
      %233 = vmatprep.subr.mxu0 0.0
      %234 = vmatpush1.xpose.msra.mxu0 0.0
      %235 = vmatprep.subr.mxu0 0.0
      %236 = vmatpush1.xpose.msra.mxu0 0.0
      %237 = vmatprep.subr.mxu0 0.0
      %238 = vmatpush1.xpose.msra.mxu0 0.0
      %239 = vmatprep.subr.mxu0 0.0
      %240 = vmatpush1.xpose.msra.mxu0 0.0
      %241 = vmatprep.subr.mxu0 0.0
      %242 = vmatpush1.xpose.msra.mxu0 0.0
      %243 = vmatprep.subr.mxu0 0.0
      %244 = vmatpush1.xpose.msra.mxu0 0.0
      %245 = vmatprep.subr.mxu0 0.0
      %246 = vmatpush1.xpose.msra.mxu0 0.0
      %247 = vmatprep.subr.mxu0 0.0
      %248 = vmatpush1.xpose.msra.mxu0 0.0
      %249 = vmatprep.subr.mxu0 0.0
      %250 = vmatpush1.xpose.msra.mxu0 0.0
      %251 = vmatprep.subr.mxu0 0.0
      %252 = vmatpush1.xpose.msra.mxu0 0.0
      %253 = vmatprep.subr.mxu0 0.0
      %254 = vmatpush1.xpose.msra.mxu0 0.0
      %255 = vmatprep.subr.mxu0 0.0
      %256 = vmatpush1.xpose.msra.mxu0 0.0
      %257 = vmatprep.subr.mxu0 0.0
      %258 = vmatpush1.xpose.msra.mxu0 0.0
      %259 = vmatprep.subr.mxu0 0.0
      %260 = vmatpush1.xpose.msra.mxu0 0.0
      %261 = vmatprep.subr.mxu0 0.0
      %262 = vmatpush1.xpose.msra.mxu0 0.0
      %263 = vmatprep.subr.mxu0 0.0
      %264 = vmatpush1.xpose.msra.mxu0 0.0
      %265 = vmatprep.subr.mxu0 0.0
      %266 = vmatpush1.xpose.msra.mxu0 0.0
      %267 = vmatprep.subr.mxu0 0.0
      %268 = vmatpush1.xpose.msra.mxu0 0.0
      %269 = vmatprep.subr.mxu0 0.0
      %270 = vmatpush1.xpose.msra.mxu0 0.0
      %271 = vmatprep.subr.mxu0 0.0
      %272 = vmatpush1.xpose.msra.mxu0 0.0
      %273 = vmatprep.subr.mxu0 0.0
      %274 = vmatpush1.xpose.msra.mxu0 0.0
      %275 = vmatprep.subr.mxu0 0.0
      %276 = vmatpush1.xpose.msra.mxu0 0.0
      %277 = vmatprep.subr.mxu0 0.0
      %278 = vmatpush1.xpose.msra.mxu0 0.0
      %279 = vmatprep.subr.mxu0 0.0
      %280 = vmatpush1.xpose.msra.mxu0 0.0
      %281 = vmatprep.mubr.f32.mxu0 0.0
      %282 = vmatmul.mubr.f32.gmra.mrb[0].mxu0 %v54
      %v283 = vpop.f32.mrb[0].mxu0
      %v284 = vadd.f32 0.0, %v283
      %v285 = vpop.f32.mrb[0].mxu0
      %286 = vdwg.mxu0
      %288 = vset.pattern.permute.xlu0 0
      %289 = vperm.xlu0 %288, %v214
      %v290 = vpop.permute.xlu0 %289
      %v292 = vlaneseq
      %v293 = vshrl.u32 %v292, 7
      %v294 = vsub.s32 0, %v293
      %v295 = vrot.slane %v284, %v294
      %v296 = vadd.f32 %v290, %v295
      %vm297 = vcmp.gt.f32.partialorder %v296, 0.0
      %v298 = vmul.f32 %v296, 0.2
      %v299 = vsel %vm297, %v296, %v298
      %v300 = vsel %vm73, %v299, -inf
      %301 = vmax.xlane.f32.xlu0 %v300
      %v302 = vpop.xlane.xlu0 %301
      %v303 = vsub.f32 %v299, %v302
      %v304 = vmul.f32 %v303, 1.442695
      %v305 = vpow.pop %v304
      %v306 = vsel %vm73, %v305, 0.0
      %307 = vadd.xlane.f32.xlu0 %v306
      %v308 = vpop.xlane.xlu0 %307
      %v309 = vrcp.pop %v308
      %v310 = vmul.f32 %v305, %v309
      %v312 = vsel %vm73, %v310, 0
      %314 = vmatprep.subr.mxu0 0.0
      %315 = vmatpush1.msra.mxu0 %v144
      %316 = vmatprep.subr.mxu0 0.0
      %317 = vmatpush1.msra.mxu0 0.0
      %318 = vmatprep.subr.mxu0 0.0
      %319 = vmatpush1.msra.mxu0 0.0
      %320 = vmatprep.subr.mxu0 0.0
      %321 = vmatpush1.msra.mxu0 0.0
      %322 = vmatprep.subr.mxu0 0.0
      %323 = vmatpush1.msra.mxu0 0.0
      %324 = vmatprep.subr.mxu0 0.0
      %325 = vmatpush1.msra.mxu0 0.0
      %326 = vmatprep.subr.mxu0 0.0
      %327 = vmatpush1.msra.mxu0 0.0
      %328 = vmatprep.subr.mxu0 0.0
      %329 = vmatpush1.msra.mxu0 0.0
      %330 = vmatprep.subr.mxu0 0.0
      %331 = vmatpush1.msra.mxu0 0.0
      %332 = vmatprep.subr.mxu0 0.0
      %333 = vmatpush1.msra.mxu0 0.0
      %334 = vmatprep.subr.mxu0 0.0
      %335 = vmatpush1.msra.mxu0 0.0
      %336 = vmatprep.subr.mxu0 0.0
      %337 = vmatpush1.msra.mxu0 0.0
      %338 = vmatprep.subr.mxu0 0.0
      %339 = vmatpush1.msra.mxu0 0.0
      %340 = vmatprep.subr.mxu0 0.0
      %341 = vmatpush1.msra.mxu0 0.0
      %342 = vmatprep.subr.mxu0 0.0
      %343 = vmatpush1.msra.mxu0 0.0
      %344 = vmatprep.subr.mxu0 0.0
      %345 = vmatpush1.msra.mxu0 0.0
      %346 = vmatprep.subr.mxu0 0.0
      %347 = vmatpush1.msra.mxu0 0.0
      %348 = vmatprep.subr.mxu0 0.0
      %349 = vmatpush1.msra.mxu0 0.0
      %350 = vmatprep.subr.mxu0 0.0
      %351 = vmatpush1.msra.mxu0 0.0
      %352 = vmatprep.subr.mxu0 0.0
      %353 = vmatpush1.msra.mxu0 0.0
      %354 = vmatprep.subr.mxu0 0.0
      %355 = vmatpush1.msra.mxu0 0.0
      %356 = vmatprep.subr.mxu0 0.0
      %357 = vmatpush1.msra.mxu0 0.0
      %358 = vmatprep.subr.mxu0 0.0
      %359 = vmatpush1.msra.mxu0 0.0
      %360 = vmatprep.subr.mxu0 0.0
      %361 = vmatpush1.msra.mxu0 0.0
      %362 = vmatprep.subr.mxu0 0.0
      %363 = vmatpush1.msra.mxu0 0.0
      %364 = vmatprep.subr.mxu0 0.0
      %365 = vmatpush1.msra.mxu0 0.0
      %366 = vmatprep.subr.mxu0 0.0
      %367 = vmatpush1.msra.mxu0 0.0
      %368 = vmatprep.subr.mxu0 0.0
      %369 = vmatpush1.msra.mxu0 0.0
      %370 = vmatprep.subr.mxu0 0.0
      %371 = vmatpush1.msra.mxu0 0.0
      %372 = vmatprep.subr.mxu0 0.0
      %373 = vmatpush1.msra.mxu0 0.0
      %374 = vmatprep.subr.mxu0 0.0
      %375 = vmatpush1.msra.mxu0 0.0
      %376 = vmatprep.subr.mxu0 0.0
      %377 = vmatpush1.msra.mxu0 0.0
      %378 = vmatprep.mubr.f32.mxu0 0.0
      %379 = vmatmul.mubr.f32.gmra.mrb[0].mxu0 %v312
      %v380 = vpop.f32.mrb[0].mxu0
      %v381 = vadd.f32 0.0, %v380
      %v382 = vpop.f32.mrb[0].mxu0
      %383 = vdwg.mxu0
      %vm384 = vcmp.gt.f32.partialorder %v381, 0.0
      %v385 = vmul.f32 %v381, 1.442695
      %v386 = vpow.pop %v385
      %v387 = vsub.f32 %v386, 1.0
      %v388 = vsel %vm384, %v381, %v387
      %389 = vset.pattern.permute.xlu0 1
      %390 = vperm.xlu0 %389, %v214
      %v391 = vpop.permute.xlu0 %390
      %v393 = vlaneseq
      %v394 = vshrl.u32 %v393, 7
      %v395 = vsub.s32 1, %v394
      %v396 = vrot.slane %v284, %v395
      %v397 = vadd.f32 %v391, %v396
      %vm398 = vcmp.gt.f32.partialorder %v397, 0.0
      %v399 = vmul.f32 %v397, 0.2
      %v400 = vsel %vm398, %v397, %v399
      %v401 = vsel %vm73, %v400, -inf
      %402 = vmax.xlane.f32.xlu0 %v401
      %v403 = vpop.xlane.xlu0 %402
      %v404 = vsub.f32 %v400, %v403
      %v405 = vmul.f32 %v404, 1.442695
      %v406 = vpow.pop %v405
      %v407 = vsel %vm73, %v406, 0.0
      %408 = vadd.xlane.f32.xlu0 %v407
      %v409 = vpop.xlane.xlu0 %408
      %v410 = vrcp.pop %v409
      %v411 = vmul.f32 %v406, %v410
      %413 = vrot.lane.b32.xlu0 %v144, 96
      %v414 = vpop.permute.xlu0 %413
      %v417 = vsel %vm73, %v411, 0
      %419 = vmatprep.subr.mxu0 0.0
      %420 = vmatpush1.msra.mxu0 %v414
      %421 = vmatprep.subr.mxu0 0.0
      %422 = vmatpush1.msra.mxu0 0.0
      %423 = vmatprep.subr.mxu0 0.0
      %424 = vmatpush1.msra.mxu0 0.0
      %425 = vmatprep.subr.mxu0 0.0
      %426 = vmatpush1.msra.mxu0 0.0
      %427 = vmatprep.subr.mxu0 0.0
      %428 = vmatpush1.msra.mxu0 0.0
      %429 = vmatprep.subr.mxu0 0.0
      %430 = vmatpush1.msra.mxu0 0.0
      %431 = vmatprep.subr.mxu0 0.0
      %432 = vmatpush1.msra.mxu0 0.0
      %433 = vmatprep.subr.mxu0 0.0
      %434 = vmatpush1.msra.mxu0 0.0
      %435 = vmatprep.subr.mxu0 0.0
      %436 = vmatpush1.msra.mxu0 0.0
      %437 = vmatprep.subr.mxu0 0.0
      %438 = vmatpush1.msra.mxu0 0.0
      %439 = vmatprep.subr.mxu0 0.0
      %440 = vmatpush1.msra.mxu0 0.0
      %441 = vmatprep.subr.mxu0 0.0
      %442 = vmatpush1.msra.mxu0 0.0
      %443 = vmatprep.subr.mxu0 0.0
      %444 = vmatpush1.msra.mxu0 0.0
      %445 = vmatprep.subr.mxu0 0.0
      %446 = vmatpush1.msra.mxu0 0.0
      %447 = vmatprep.subr.mxu0 0.0
      %448 = vmatpush1.msra.mxu0 0.0
      %449 = vmatprep.subr.mxu0 0.0
      %450 = vmatpush1.msra.mxu0 0.0
      %451 = vmatprep.subr.mxu0 0.0
      %452 = vmatpush1.msra.mxu0 0.0
      %453 = vmatprep.subr.mxu0 0.0
      %454 = vmatpush1.msra.mxu0 0.0
      %455 = vmatprep.subr.mxu0 0.0
      %456 = vmatpush1.msra.mxu0 0.0
      %457 = vmatprep.subr.mxu0 0.0
      %458 = vmatpush1.msra.mxu0 0.0
      %459 = vmatprep.subr.mxu0 0.0
      %460 = vmatpush1.msra.mxu0 0.0
      %461 = vmatprep.subr.mxu0 0.0
      %462 = vmatpush1.msra.mxu0 0.0
      %463 = vmatprep.subr.mxu0 0.0
      %464 = vmatpush1.msra.mxu0 0.0
      %465 = vmatprep.subr.mxu0 0.0
      %466 = vmatpush1.msra.mxu0 0.0
      %467 = vmatprep.subr.mxu0 0.0
      %468 = vmatpush1.msra.mxu0 0.0
      %469 = vmatprep.subr.mxu0 0.0
      %470 = vmatpush1.msra.mxu0 0.0
      %471 = vmatprep.subr.mxu0 0.0
      %472 = vmatpush1.msra.mxu0 0.0
      %473 = vmatprep.subr.mxu0 0.0
      %474 = vmatpush1.msra.mxu0 0.0
      %475 = vmatprep.subr.mxu0 0.0
      %476 = vmatpush1.msra.mxu0 0.0
      %477 = vmatprep.subr.mxu0 0.0
      %478 = vmatpush1.msra.mxu0 0.0
      %479 = vmatprep.subr.mxu0 0.0
      %480 = vmatpush1.msra.mxu0 0.0
      %481 = vmatprep.subr.mxu0 0.0
      %482 = vmatpush1.msra.mxu0 0.0
      %483 = vmatprep.mubr.f32.mxu0 0.0
      %484 = vmatmul.mubr.f32.gmra.mrb[0].mxu0 %v417
      %v485 = vpop.f32.mrb[0].mxu0
      %v486 = vadd.f32 0.0, %v485
      %v487 = vpop.f32.mrb[0].mxu0
      %488 = vdwg.mxu0
      %vm489 = vcmp.gt.f32.partialorder %v486, 0.0
      %v490 = vmul.f32 %v486, 1.442695
      %v491 = vpow.pop %v490
      %v492 = vsub.f32 %v491, 1.0
      %v493 = vsel %vm489, %v486, %v492
      %494 = vset.pattern.permute.xlu0 2
      %495 = vperm.xlu0 %494, %v214
      %v496 = vpop.permute.xlu0 %495
      %v498 = vlaneseq
      %v499 = vshrl.u32 %v498, 7
      %v500 = vsub.s32 2, %v499
      %v501 = vrot.slane %v284, %v500
      %v502 = vadd.f32 %v496, %v501
      %vm503 = vcmp.gt.f32.partialorder %v502, 0.0
      %v504 = vmul.f32 %v502, 0.2
      %v505 = vsel %vm503, %v502, %v504
      %v506 = vsel %vm73, %v505, -inf
      %507 = vmax.xlane.f32.xlu0 %v506
      %v508 = vpop.xlane.xlu0 %507
      %v509 = vsub.f32 %v505, %v508
      %v510 = vmul.f32 %v509, 1.442695
      %v511 = vpow.pop %v510
      %v512 = vsel %vm73, %v511, 0.0
      %513 = vadd.xlane.f32.xlu0 %v512
      %v514 = vpop.xlane.xlu0 %513
      %v515 = vrcp.pop %v514
      %v516 = vmul.f32 %v511, %v515
      %517 = vrot.lane.b32.xlu0 %v144, 64
      %v518 = vpop.permute.xlu0 %517
      %v521 = vsel %vm73, %v516, 0
      %523 = vmatprep.subr.mxu0 0.0
      %524 = vmatpush1.msra.mxu0 %v518
      %525 = vmatprep.subr.mxu0 0.0
      %526 = vmatpush1.msra.mxu0 0.0
      %527 = vmatprep.subr.mxu0 0.0
      %528 = vmatpush1.msra.mxu0 0.0
      %529 = vmatprep.subr.mxu0 0.0
      %530 = vmatpush1.msra.mxu0 0.0
      %531 = vmatprep.subr.mxu0 0.0
      %532 = vmatpush1.msra.mxu0 0.0
      %533 = vmatprep.subr.mxu0 0.0
      %534 = vmatpush1.msra.mxu0 0.0
      %535 = vmatprep.subr.mxu0 0.0
      %536 = vmatpush1.msra.mxu0 0.0
      %537 = vmatprep.subr.mxu0 0.0
      %538 = vmatpush1.msra.mxu0 0.0
      %539 = vmatprep.subr.mxu0 0.0
      %540 = vmatpush1.msra.mxu0 0.0
      %541 = vmatprep.subr.mxu0 0.0
      %542 = vmatpush1.msra.mxu0 0.0
      %543 = vmatprep.subr.mxu0 0.0
      %544 = vmatpush1.msra.mxu0 0.0
      %545 = vmatprep.subr.mxu0 0.0
      %546 = vmatpush1.msra.mxu0 0.0
      %547 = vmatprep.subr.mxu0 0.0
      %548 = vmatpush1.msra.mxu0 0.0
      %549 = vmatprep.subr.mxu0 0.0
      %550 = vmatpush1.msra.mxu0 0.0
      %551 = vmatprep.subr.mxu0 0.0
      %552 = vmatpush1.msra.mxu0 0.0
      %553 = vmatprep.subr.mxu0 0.0
      %554 = vmatpush1.msra.mxu0 0.0
      %555 = vmatprep.subr.mxu0 0.0
      %556 = vmatpush1.msra.mxu0 0.0
      %557 = vmatprep.subr.mxu0 0.0
      %558 = vmatpush1.msra.mxu0 0.0
      %559 = vmatprep.subr.mxu0 0.0
      %560 = vmatpush1.msra.mxu0 0.0
      %561 = vmatprep.subr.mxu0 0.0
      %562 = vmatpush1.msra.mxu0 0.0
      %563 = vmatprep.subr.mxu0 0.0
      %564 = vmatpush1.msra.mxu0 0.0
      %565 = vmatprep.subr.mxu0 0.0
      %566 = vmatpush1.msra.mxu0 0.0
      %567 = vmatprep.subr.mxu0 0.0
      %568 = vmatpush1.msra.mxu0 0.0
      %569 = vmatprep.subr.mxu0 0.0
      %570 = vmatpush1.msra.mxu0 0.0
      %571 = vmatprep.subr.mxu0 0.0
      %572 = vmatpush1.msra.mxu0 0.0
      %573 = vmatprep.subr.mxu0 0.0
      %574 = vmatpush1.msra.mxu0 0.0
      %575 = vmatprep.subr.mxu0 0.0
      %576 = vmatpush1.msra.mxu0 0.0
      %577 = vmatprep.subr.mxu0 0.0
      %578 = vmatpush1.msra.mxu0 0.0
      %579 = vmatprep.subr.mxu0 0.0
      %580 = vmatpush1.msra.mxu0 0.0
      %581 = vmatprep.subr.mxu0 0.0
      %582 = vmatpush1.msra.mxu0 0.0
      %583 = vmatprep.subr.mxu0 0.0
      %584 = vmatpush1.msra.mxu0 0.0
      %585 = vmatprep.subr.mxu0 0.0
      %586 = vmatpush1.msra.mxu0 0.0
      %587 = vmatprep.mubr.f32.mxu0 0.0
      %588 = vmatmul.mubr.f32.gmra.mrb[0].mxu0 %v521
      %v589 = vpop.f32.mrb[0].mxu0
      %v590 = vadd.f32 0.0, %v589
      %v591 = vpop.f32.mrb[0].mxu0
      %592 = vdwg.mxu0
      %vm593 = vcmp.gt.f32.partialorder %v590, 0.0
      %v594 = vmul.f32 %v590, 1.442695
      %v595 = vpow.pop %v594
      %v596 = vsub.f32 %v595, 1.0
      %v597 = vsel %vm593, %v590, %v596
      %598 = vset.pattern.permute.xlu0 3
      %599 = vperm.xlu0 %598, %v214
      %v600 = vpop.permute.xlu0 %599
      %v602 = vlaneseq
      %v603 = vshrl.u32 %v602, 7
      %v604 = vsub.s32 3, %v603
      %v605 = vrot.slane %v284, %v604
      %v606 = vadd.f32 %v600, %v605
      %vm607 = vcmp.gt.f32.partialorder %v606, 0.0
      %v608 = vmul.f32 %v606, 0.2
      %v609 = vsel %vm607, %v606, %v608
      %v610 = vsel %vm73, %v609, -inf
      %611 = vmax.xlane.f32.xlu0 %v610
      %v612 = vpop.xlane.xlu0 %611
      %v613 = vsub.f32 %v609, %v612
      %v614 = vmul.f32 %v613, 1.442695
      %v615 = vpow.pop %v614
      %v616 = vsel %vm73, %v615, 0.0
      %617 = vadd.xlane.f32.xlu0 %v616
      %v618 = vpop.xlane.xlu0 %617
      %v619 = vrcp.pop %v618
      %v620 = vmul.f32 %v615, %v619
      %621 = vrot.lane.b32.xlu0 %v144, 32
      %v622 = vpop.permute.xlu0 %621
      %v625 = vsel %vm73, %v620, 0
      %627 = vmatprep.subr.mxu0 0.0
      %628 = vmatpush1.msra.mxu0 %v622
      %629 = vmatprep.subr.mxu0 0.0
      %630 = vmatpush1.msra.mxu0 0.0
      %631 = vmatprep.subr.mxu0 0.0
      %632 = vmatpush1.msra.mxu0 0.0
      %633 = vmatprep.subr.mxu0 0.0
      %634 = vmatpush1.msra.mxu0 0.0
      %635 = vmatprep.subr.mxu0 0.0
      %636 = vmatpush1.msra.mxu0 0.0
      %637 = vmatprep.subr.mxu0 0.0
      %638 = vmatpush1.msra.mxu0 0.0
      %639 = vmatprep.subr.mxu0 0.0
      %640 = vmatpush1.msra.mxu0 0.0
      %641 = vmatprep.subr.mxu0 0.0
      %642 = vmatpush1.msra.mxu0 0.0
      %643 = vmatprep.subr.mxu0 0.0
      %644 = vmatpush1.msra.mxu0 0.0
      %645 = vmatprep.subr.mxu0 0.0
      %646 = vmatpush1.msra.mxu0 0.0
      %647 = vmatprep.subr.mxu0 0.0
      %648 = vmatpush1.msra.mxu0 0.0
      %649 = vmatprep.subr.mxu0 0.0
      %650 = vmatpush1.msra.mxu0 0.0
      %651 = vmatprep.subr.mxu0 0.0
      %652 = vmatpush1.msra.mxu0 0.0
      %653 = vmatprep.subr.mxu0 0.0
      %654 = vmatpush1.msra.mxu0 0.0
      %655 = vmatprep.subr.mxu0 0.0
      %656 = vmatpush1.msra.mxu0 0.0
      %657 = vmatprep.subr.mxu0 0.0
      %658 = vmatpush1.msra.mxu0 0.0
      %659 = vmatprep.subr.mxu0 0.0
      %660 = vmatpush1.msra.mxu0 0.0
      %661 = vmatprep.subr.mxu0 0.0
      %662 = vmatpush1.msra.mxu0 0.0
      %663 = vmatprep.subr.mxu0 0.0
      %664 = vmatpush1.msra.mxu0 0.0
      %665 = vmatprep.subr.mxu0 0.0
      %666 = vmatpush1.msra.mxu0 0.0
      %667 = vmatprep.subr.mxu0 0.0
      %668 = vmatpush1.msra.mxu0 0.0
      %669 = vmatprep.subr.mxu0 0.0
      %670 = vmatpush1.msra.mxu0 0.0
      %671 = vmatprep.subr.mxu0 0.0
      %672 = vmatpush1.msra.mxu0 0.0
      %673 = vmatprep.subr.mxu0 0.0
      %674 = vmatpush1.msra.mxu0 0.0
      %675 = vmatprep.subr.mxu0 0.0
      %676 = vmatpush1.msra.mxu0 0.0
      %677 = vmatprep.subr.mxu0 0.0
      %678 = vmatpush1.msra.mxu0 0.0
      %679 = vmatprep.subr.mxu0 0.0
      %680 = vmatpush1.msra.mxu0 0.0
      %681 = vmatprep.subr.mxu0 0.0
      %682 = vmatpush1.msra.mxu0 0.0
      %683 = vmatprep.subr.mxu0 0.0
      %684 = vmatpush1.msra.mxu0 0.0
      %685 = vmatprep.subr.mxu0 0.0
      %686 = vmatpush1.msra.mxu0 0.0
      %687 = vmatprep.subr.mxu0 0.0
      %688 = vmatpush1.msra.mxu0 0.0
      %689 = vmatprep.subr.mxu0 0.0
      %690 = vmatpush1.msra.mxu0 0.0
      %691 = vmatprep.mubr.f32.mxu0 0.0
      %692 = vmatmul.mubr.f32.gmra.mrb[0].mxu0 %v625
      %v693 = vpop.f32.mrb[0].mxu0
      %v694 = vadd.f32 0.0, %v693
      %v695 = vpop.f32.mrb[0].mxu0
      %696 = vdwg.mxu0
      %vm697 = vcmp.gt.f32.partialorder %v694, 0.0
      %v698 = vmul.f32 %v694, 1.442695
      %v699 = vpow.pop %v698
      %v700 = vsub.f32 %v699, 1.0
      %v701 = vsel %vm697, %v694, %v700
      %703 = vrot.lane.b32.xlu0 %v493, 32
      %v704 = vpop.permute.xlu0 %703
      %707 = vrot.lane.b32.xlu0 %v597, 64
      %v708 = vpop.permute.xlu0 %707
      %711 = vrot.lane.b32.xlu0 %v701, 96
      %v712 = vpop.permute.xlu0 %711
      %vm714 = vcmask 261120
      %v715 = vsel %vm714, %v388, %v704
      %vm716 = vcmask 523264
      %v717 = vsel %vm716, %v715, %v708
      %vm718 = vcmask 785408
      %v719 = vsel %vm718, %v717, %v712
      %720 = vmatprep.subr.mxu0 0.0
      %721 = vmatpush1.msra.mxu0 %v55
      %722 = vmatprep.subr.mxu0 0.0
      %723 = vmatpush1.msra.mxu0 %v56
      %724 = vmatprep.subr.mxu0 0.0
      %725 = vmatpush1.msra.mxu0 %v57
      %726 = vmatprep.subr.mxu0 0.0
      %727 = vmatpush1.msra.mxu0 %v58
      %728 = vmatprep.subr.mxu0 0.0
      %729 = vmatpush1.msra.mxu0 %v59
      %730 = vmatprep.subr.mxu0 0.0
      %731 = vmatpush1.msra.mxu0 %v60
      %732 = vmatprep.subr.mxu0 0.0
      %733 = vmatpush1.msra.mxu0 %v61
      %734 = vmatprep.subr.mxu0 0.0
      %735 = vmatpush1.msra.mxu0 %v62
      %736 = vmatprep.subr.mxu0 0.0
      %737 = vmatpush1.msra.mxu0 %v63
      %738 = vmatprep.subr.mxu0 0.0
      %739 = vmatpush1.msra.mxu0 %v64
      %740 = vmatprep.subr.mxu0 0.0
      %741 = vmatpush1.msra.mxu0 %v65
      %742 = vmatprep.subr.mxu0 0.0
      %743 = vmatpush1.msra.mxu0 %v66
      %744 = vmatprep.subr.mxu0 0.0
      %745 = vmatpush1.msra.mxu0 %v67
      %746 = vmatprep.subr.mxu0 0.0
      %747 = vmatpush1.msra.mxu0 %v68
      %748 = vmatprep.subr.mxu0 0.0
      %749 = vmatpush1.msra.mxu0 %v69
      %750 = vmatprep.subr.mxu0 0.0
      %751 = vmatpush1.msra.mxu0 %v70
      %752 = vmatprep.subr.mxu0 0.0
      %753 = vmatpush1.msra.mxu0 0.0
      %754 = vmatprep.subr.mxu0 0.0
      %755 = vmatpush1.msra.mxu0 0.0
      %756 = vmatprep.subr.mxu0 0.0
      %757 = vmatpush1.msra.mxu0 0.0
      %758 = vmatprep.subr.mxu0 0.0
      %759 = vmatpush1.msra.mxu0 0.0
      %760 = vmatprep.subr.mxu0 0.0
      %761 = vmatpush1.msra.mxu0 0.0
      %762 = vmatprep.subr.mxu0 0.0
      %763 = vmatpush1.msra.mxu0 0.0
      %764 = vmatprep.subr.mxu0 0.0
      %765 = vmatpush1.msra.mxu0 0.0
      %766 = vmatprep.subr.mxu0 0.0
      %767 = vmatpush1.msra.mxu0 0.0
      %768 = vmatprep.subr.mxu0 0.0
      %769 = vmatpush1.msra.mxu0 0.0
      %770 = vmatprep.subr.mxu0 0.0
      %771 = vmatpush1.msra.mxu0 0.0
      %772 = vmatprep.subr.mxu0 0.0
      %773 = vmatpush1.msra.mxu0 0.0
      %774 = vmatprep.subr.mxu0 0.0
      %775 = vmatpush1.msra.mxu0 0.0
      %776 = vmatprep.subr.mxu0 0.0
      %777 = vmatpush1.msra.mxu0 0.0
      %778 = vmatprep.subr.mxu0 0.0
      %779 = vmatpush1.msra.mxu0 0.0
      %780 = vmatprep.subr.mxu0 0.0
      %781 = vmatpush1.msra.mxu0 0.0
      %782 = vmatprep.subr.mxu0 0.0
      %783 = vmatpush1.msra.mxu0 0.0
      %784 = vmatprep.mubr.f32.mxu0 0.0
      %785 = vmatmul.mubr.f32.gmra.mrb[0].mxu0 %v719
      %v786 = vpop.f32.mrb[0].mxu0
      %v787 = vadd.f32 0.0, %v786
      %v788 = vpop.f32.mrb[0].mxu0
      %789 = vdwg.mxu0
      %v791 = vsel %vm73, %v787, 0
      %793 = vmatprep.subr.mxu0 0.0
      %794 = vmatpush1.msra.mxu0 %v71
      %795 = vmatprep.subr.mxu0 0.0
      %796 = vmatpush1.msra.mxu0 0.0
      %797 = vmatprep.subr.mxu0 0.0
      %798 = vmatpush1.msra.mxu0 0.0
      %799 = vmatprep.subr.mxu0 0.0
      %800 = vmatpush1.msra.mxu0 0.0
      %801 = vmatprep.subr.mxu0 0.0
      %802 = vmatpush1.msra.mxu0 0.0
      %803 = vmatprep.subr.mxu0 0.0
      %804 = vmatpush1.msra.mxu0 0.0
      %805 = vmatprep.subr.mxu0 0.0
      %806 = vmatpush1.msra.mxu0 0.0
      %807 = vmatprep.subr.mxu0 0.0
      %808 = vmatpush1.msra.mxu0 0.0
      %809 = vmatprep.subr.mxu0 0.0
      %810 = vmatpush1.msra.mxu0 0.0
      %811 = vmatprep.subr.mxu0 0.0
      %812 = vmatpush1.msra.mxu0 0.0
      %813 = vmatprep.subr.mxu0 0.0
      %814 = vmatpush1.msra.mxu0 0.0
      %815 = vmatprep.subr.mxu0 0.0
      %816 = vmatpush1.msra.mxu0 0.0
      %817 = vmatprep.subr.mxu0 0.0
      %818 = vmatpush1.msra.mxu0 0.0
      %819 = vmatprep.subr.mxu0 0.0
      %820 = vmatpush1.msra.mxu0 0.0
      %821 = vmatprep.subr.mxu0 0.0
      %822 = vmatpush1.msra.mxu0 0.0
      %823 = vmatprep.subr.mxu0 0.0
      %824 = vmatpush1.msra.mxu0 0.0
      %825 = vmatprep.subr.mxu0 0.0
      %826 = vmatpush1.msra.mxu0 0.0
      %827 = vmatprep.subr.mxu0 0.0
      %828 = vmatpush1.msra.mxu0 0.0
      %829 = vmatprep.subr.mxu0 0.0
      %830 = vmatpush1.msra.mxu0 0.0
      %831 = vmatprep.subr.mxu0 0.0
      %832 = vmatpush1.msra.mxu0 0.0
      %833 = vmatprep.subr.mxu0 0.0
      %834 = vmatpush1.msra.mxu0 0.0
      %835 = vmatprep.subr.mxu0 0.0
      %836 = vmatpush1.msra.mxu0 0.0
      %837 = vmatprep.subr.mxu0 0.0
      %838 = vmatpush1.msra.mxu0 0.0
      %839 = vmatprep.subr.mxu0 0.0
      %840 = vmatpush1.msra.mxu0 0.0
      %841 = vmatprep.subr.mxu0 0.0
      %842 = vmatpush1.msra.mxu0 0.0
      %843 = vmatprep.subr.mxu0 0.0
      %844 = vmatpush1.msra.mxu0 0.0
      %845 = vmatprep.subr.mxu0 0.0
      %846 = vmatpush1.msra.mxu0 0.0
      %847 = vmatprep.subr.mxu0 0.0
      %848 = vmatpush1.msra.mxu0 0.0
      %849 = vmatprep.subr.mxu0 0.0
      %850 = vmatpush1.msra.mxu0 0.0
      %851 = vmatprep.subr.mxu0 0.0
      %852 = vmatpush1.msra.mxu0 0.0
      %853 = vmatprep.subr.mxu0 0.0
      %854 = vmatpush1.msra.mxu0 0.0
      %855 = vmatprep.subr.mxu0 0.0
      %856 = vmatpush1.msra.mxu0 0.0
      %857 = vmatprep.mubr.f32.mxu0 0.0
      %858 = vmatmul.mubr.f32.gmra.mrb[0].mxu0 %v791
      %v859 = vpop.f32.mrb[0].mxu0
      %v860 = vadd.f32 0.0, %v859
      %v861 = vpop.f32.mrb[0].mxu0
      %862 = vdwg.mxu0
      %v864 = vsel %vm73, %v72, 0
      %866 = vmatprep.subr.mxu0 0.0
      %867 = vmatpush1.xpose.msra.mxu0 %v791
      %868 = vmatprep.subr.mxu0 0.0
      %869 = vmatpush1.xpose.msra.mxu0 0.0
      %870 = vmatprep.subr.mxu0 0.0
      %871 = vmatpush1.xpose.msra.mxu0 0.0
      %872 = vmatprep.subr.mxu0 0.0
      %873 = vmatpush1.xpose.msra.mxu0 0.0
      %874 = vmatprep.subr.mxu0 0.0
      %875 = vmatpush1.xpose.msra.mxu0 0.0
      %876 = vmatprep.subr.mxu0 0.0
      %877 = vmatpush1.xpose.msra.mxu0 0.0
      %878 = vmatprep.subr.mxu0 0.0
      %879 = vmatpush1.xpose.msra.mxu0 0.0
      %880 = vmatprep.subr.mxu0 0.0
      %881 = vmatpush1.xpose.msra.mxu0 0.0
      %882 = vmatprep.subr.mxu0 0.0
      %883 = vmatpush1.xpose.msra.mxu0 0.0
      %884 = vmatprep.subr.mxu0 0.0
      %885 = vmatpush1.xpose.msra.mxu0 0.0
      %886 = vmatprep.subr.mxu0 0.0
      %887 = vmatpush1.xpose.msra.mxu0 0.0
      %888 = vmatprep.subr.mxu0 0.0
      %889 = vmatpush1.xpose.msra.mxu0 0.0
      %890 = vmatprep.subr.mxu0 0.0
      %891 = vmatpush1.xpose.msra.mxu0 0.0
      %892 = vmatprep.subr.mxu0 0.0
      %893 = vmatpush1.xpose.msra.mxu0 0.0
      %894 = vmatprep.subr.mxu0 0.0
      %895 = vmatpush1.xpose.msra.mxu0 0.0
      %896 = vmatprep.subr.mxu0 0.0
      %897 = vmatpush1.xpose.msra.mxu0 0.0
      %898 = vmatprep.subr.mxu0 0.0
      %899 = vmatpush1.xpose.msra.mxu0 0.0
      %900 = vmatprep.subr.mxu0 0.0
      %901 = vmatpush1.xpose.msra.mxu0 0.0
      %902 = vmatprep.subr.mxu0 0.0
      %903 = vmatpush1.xpose.msra.mxu0 0.0
      %904 = vmatprep.subr.mxu0 0.0
      %905 = vmatpush1.xpose.msra.mxu0 0.0
      %906 = vmatprep.subr.mxu0 0.0
      %907 = vmatpush1.xpose.msra.mxu0 0.0
      %908 = vmatprep.subr.mxu0 0.0
      %909 = vmatpush1.xpose.msra.mxu0 0.0
      %910 = vmatprep.subr.mxu0 0.0
      %911 = vmatpush1.xpose.msra.mxu0 0.0
      %912 = vmatprep.subr.mxu0 0.0
      %913 = vmatpush1.xpose.msra.mxu0 0.0
      %914 = vmatprep.subr.mxu0 0.0
      %915 = vmatpush1.xpose.msra.mxu0 0.0
      %916 = vmatprep.subr.mxu0 0.0
      %917 = vmatpush1.xpose.msra.mxu0 0.0
      %918 = vmatprep.subr.mxu0 0.0
      %919 = vmatpush1.xpose.msra.mxu0 0.0
      %920 = vmatprep.subr.mxu0 0.0
      %921 = vmatpush1.xpose.msra.mxu0 0.0
      %922 = vmatprep.subr.mxu0 0.0
      %923 = vmatpush1.xpose.msra.mxu0 0.0
      %924 = vmatprep.subr.mxu0 0.0
      %925 = vmatpush1.xpose.msra.mxu0 0.0
      %926 = vmatprep.subr.mxu0 0.0
      %927 = vmatpush1.xpose.msra.mxu0 0.0
      %928 = vmatprep.subr.mxu0 0.0
      %929 = vmatpush1.xpose.msra.mxu0 0.0
      %930 = vmatprep.mubr.f32.mxu0 0.0
      %931 = vmatmul.mubr.f32.gmra.mrb[0].mxu0 %v864
      %v932 = vpop.f32.mrb[0].mxu0
      %v933 = vadd.f32 0.0, %v932
      %v934 = vpop.f32.mrb[0].mxu0
      %935 = vdwg.mxu0
      %937 = vset.pattern.permute.xlu0 0
      %938 = vperm.xlu0 %937, %v860
      %v939 = vpop.permute.xlu0 %938
      %v941 = vlaneseq
      %v942 = vshrl.u32 %v941, 7
      %v943 = vsub.s32 0, %v942
      %v944 = vrot.slane %v933, %v943
      %v945 = vadd.f32 %v939, %v944
      %vm946 = vcmp.gt.f32.partialorder %v945, 0.0
      %v947 = vmul.f32 %v945, 0.2
      %v948 = vsel %vm946, %v945, %v947
      %v949 = vsel %vm73, %v948, -inf
      %950 = vmax.xlane.f32.xlu0 %v949
      %v951 = vpop.xlane.xlu0 %950
      %v952 = vsub.f32 %v948, %v951
      %v953 = vmul.f32 %v952, 1.442695
      %v954 = vpow.pop %v953
      %v955 = vsel %vm73, %v954, 0.0
      %956 = vadd.xlane.f32.xlu0 %v955
      %v957 = vpop.xlane.xlu0 %956
      %v958 = vrcp.pop %v957
      %v959 = vmul.f32 %v954, %v958
      %v961 = vsel %vm73, %v959, 0
      %963 = vmatprep.subr.mxu0 0.0
      %964 = vmatpush1.msra.mxu0 %v787
      %965 = vmatprep.subr.mxu0 0.0
      %966 = vmatpush1.msra.mxu0 0.0
      %967 = vmatprep.subr.mxu0 0.0
      %968 = vmatpush1.msra.mxu0 0.0
      %969 = vmatprep.subr.mxu0 0.0
      %970 = vmatpush1.msra.mxu0 0.0
      %971 = vmatprep.subr.mxu0 0.0
      %972 = vmatpush1.msra.mxu0 0.0
      %973 = vmatprep.subr.mxu0 0.0
      %974 = vmatpush1.msra.mxu0 0.0
      %975 = vmatprep.subr.mxu0 0.0
      %976 = vmatpush1.msra.mxu0 0.0
      %977 = vmatprep.subr.mxu0 0.0
      %978 = vmatpush1.msra.mxu0 0.0
      %979 = vmatprep.subr.mxu0 0.0
      %980 = vmatpush1.msra.mxu0 0.0
      %981 = vmatprep.subr.mxu0 0.0
      %982 = vmatpush1.msra.mxu0 0.0
      %983 = vmatprep.subr.mxu0 0.0
      %984 = vmatpush1.msra.mxu0 0.0
      %985 = vmatprep.subr.mxu0 0.0
      %986 = vmatpush1.msra.mxu0 0.0
      %987 = vmatprep.subr.mxu0 0.0
      %988 = vmatpush1.msra.mxu0 0.0
      %989 = vmatprep.subr.mxu0 0.0
      %990 = vmatpush1.msra.mxu0 0.0
      %991 = vmatprep.subr.mxu0 0.0
      %992 = vmatpush1.msra.mxu0 0.0
      %993 = vmatprep.subr.mxu0 0.0
      %994 = vmatpush1.msra.mxu0 0.0
      %995 = vmatprep.subr.mxu0 0.0
      %996 = vmatpush1.msra.mxu0 0.0
      %997 = vmatprep.subr.mxu0 0.0
      %998 = vmatpush1.msra.mxu0 0.0
      %999 = vmatprep.subr.mxu0 0.0
      %1000 = vmatpush1.msra.mxu0 0.0
      %1001 = vmatprep.subr.mxu0 0.0
      %1002 = vmatpush1.msra.mxu0 0.0
      %1003 = vmatprep.subr.mxu0 0.0
      %1004 = vmatpush1.msra.mxu0 0.0
      %1005 = vmatprep.subr.mxu0 0.0
      %1006 = vmatpush1.msra.mxu0 0.0
      %1007 = vmatprep.subr.mxu0 0.0
      %1008 = vmatpush1.msra.mxu0 0.0
      %1009 = vmatprep.subr.mxu0 0.0
      %1010 = vmatpush1.msra.mxu0 0.0
      %1011 = vmatprep.subr.mxu0 0.0
      %1012 = vmatpush1.msra.mxu0 0.0
      %1013 = vmatprep.subr.mxu0 0.0
      %1014 = vmatpush1.msra.mxu0 0.0
      %1015 = vmatprep.subr.mxu0 0.0
      %1016 = vmatpush1.msra.mxu0 0.0
      %1017 = vmatprep.subr.mxu0 0.0
      %1018 = vmatpush1.msra.mxu0 0.0
      %1019 = vmatprep.subr.mxu0 0.0
      %1020 = vmatpush1.msra.mxu0 0.0
      %1021 = vmatprep.subr.mxu0 0.0
      %1022 = vmatpush1.msra.mxu0 0.0
      %1023 = vmatprep.subr.mxu0 0.0
      %1024 = vmatpush1.msra.mxu0 0.0
      %1025 = vmatprep.subr.mxu0 0.0
      %1026 = vmatpush1.msra.mxu0 0.0
      %1027 = vmatprep.mubr.f32.mxu0 0.0
      %1028 = vmatmul.mubr.f32.gmra.mrb[0].mxu0 %v961
      %v1029 = vpop.f32.mrb[0].mxu0
      %v1030 = vadd.f32 0.0, %v1029
      %v1031 = vpop.f32.mrb[0].mxu0
      %1032 = vdwg.mxu0
      %vm1033 = vcmp.gt.f32.partialorder %v1030, 0.0
      %v1034 = vmul.f32 %v1030, 1.442695
      %v1035 = vpow.pop %v1034
      %v1036 = vsub.f32 %v1035, 1.0
      %v1037 = vsel %vm1033, %v1030, %v1036
      %s1038 = scalar_lea.vmem %s1, 8
      %v1039 = vld [vmem:[%s1038] sm:$0xff]
      %s1040 = scalar_lea.vmem %s2, 128
      %v1041 = vld [vmem:[%s1040] sm:$0xff]
      %v1042 = vld [vmem:[%s1040 + $0x8] sm:$0xff]
      %v1043 = vld [vmem:[%s1040 + $0x10] sm:$0xff]
      %v1044 = vld [vmem:[%s1040 + $0x18] sm:$0xff]
      %v1045 = vld [vmem:[%s1040 + $0x20] sm:$0xff]
      %v1046 = vld [vmem:[%s1040 + $0x28] sm:$0xff]
      %v1047 = vld [vmem:[%s1040 + $0x30] sm:$0xff]
      %v1048 = vld [vmem:[%s1040 + $0x38] sm:$0xff]
      %v1049 = vld [vmem:[%s1040 + $0x40] sm:$0xff]
      %v1050 = vld [vmem:[%s1040 + $0x48] sm:$0xff]
      %v1051 = vld [vmem:[%s1040 + $0x50] sm:$0xff]
      %v1052 = vld [vmem:[%s1040 + $0x58] sm:$0xff]
      %v1053 = vld [vmem:[%s1040 + $0x60] sm:$0xff]
      %v1054 = vld [vmem:[%s1040 + $0x68] sm:$0xff]
      %v1055 = vld [vmem:[%s1040 + $0x70] sm:$0xff]
      %v1056 = vld [vmem:[%s1040 + $0x78] sm:$0xff]
      %s1057 = scalar_lea.vmem %s3, 4
      %v1058 = vld [vmem:[%s1057] sm:$0xf]
      %s1059 = scalar_lea.vmem %s4, 128
      %v1060 = vld [vmem:[%s1059] sm:$0xff]
      %v1061 = vld [vmem:[%s1059 + $0x8] sm:$0xff]
      %v1062 = vld [vmem:[%s1059 + $0x10] sm:$0xff]
      %v1063 = vld [vmem:[%s1059 + $0x18] sm:$0xff]
      %v1064 = vld [vmem:[%s1059 + $0x20] sm:$0xff]
      %v1065 = vld [vmem:[%s1059 + $0x28] sm:$0xff]
      %v1066 = vld [vmem:[%s1059 + $0x30] sm:$0xff]
      %v1067 = vld [vmem:[%s1059 + $0x38] sm:$0xff]
      %v1068 = vld [vmem:[%s1059 + $0x40] sm:$0xff]
      %v1069 = vld [vmem:[%s1059 + $0x48] sm:$0xff]
      %v1070 = vld [vmem:[%s1059 + $0x50] sm:$0xff]
      %v1071 = vld [vmem:[%s1059 + $0x58] sm:$0xff]
      %v1072 = vld [vmem:[%s1059 + $0x60] sm:$0xff]
      %v1073 = vld [vmem:[%s1059 + $0x68] sm:$0xff]
      %v1074 = vld [vmem:[%s1059 + $0x70] sm:$0xff]
      %v1075 = vld [vmem:[%s1059 + $0x78] sm:$0xff]
      %s1076 = scalar_lea.vmem %s5, 8
      %v1077 = vld [vmem:[%s1076] sm:$0xff]
      %s1078 = scalar_lea.vmem %s6, 1
      %v1079 = vld [vmem:[%s1078] sm:$0x1]
      %v1081 = vsel %vm73, %v33, 0
      %1083 = vmatprep.subr.mxu0 0.0
      %1084 = vmatpush1.msra.mxu0 %v1039
      %1085 = vmatprep.subr.mxu0 0.0
      %1086 = vmatpush1.msra.mxu0 0.0
      %1087 = vmatprep.subr.mxu0 0.0
      %1088 = vmatpush1.msra.mxu0 0.0
      %1089 = vmatprep.subr.mxu0 0.0
      %1090 = vmatpush1.msra.mxu0 0.0
      %1091 = vmatprep.subr.mxu0 0.0
      %1092 = vmatpush1.msra.mxu0 0.0
      %1093 = vmatprep.subr.mxu0 0.0
      %1094 = vmatpush1.msra.mxu0 0.0
      %1095 = vmatprep.subr.mxu0 0.0
      %1096 = vmatpush1.msra.mxu0 0.0
      %1097 = vmatprep.subr.mxu0 0.0
      %1098 = vmatpush1.msra.mxu0 0.0
      %1099 = vmatprep.subr.mxu0 0.0
      %1100 = vmatpush1.msra.mxu0 0.0
      %1101 = vmatprep.subr.mxu0 0.0
      %1102 = vmatpush1.msra.mxu0 0.0
      %1103 = vmatprep.subr.mxu0 0.0
      %1104 = vmatpush1.msra.mxu0 0.0
      %1105 = vmatprep.subr.mxu0 0.0
      %1106 = vmatpush1.msra.mxu0 0.0
      %1107 = vmatprep.subr.mxu0 0.0
      %1108 = vmatpush1.msra.mxu0 0.0
      %1109 = vmatprep.subr.mxu0 0.0
      %1110 = vmatpush1.msra.mxu0 0.0
      %1111 = vmatprep.subr.mxu0 0.0
      %1112 = vmatpush1.msra.mxu0 0.0
      %1113 = vmatprep.subr.mxu0 0.0
      %1114 = vmatpush1.msra.mxu0 0.0
      %1115 = vmatprep.subr.mxu0 0.0
      %1116 = vmatpush1.msra.mxu0 0.0
      %1117 = vmatprep.subr.mxu0 0.0
      %1118 = vmatpush1.msra.mxu0 0.0
      %1119 = vmatprep.subr.mxu0 0.0
      %1120 = vmatpush1.msra.mxu0 0.0
      %1121 = vmatprep.subr.mxu0 0.0
      %1122 = vmatpush1.msra.mxu0 0.0
      %1123 = vmatprep.subr.mxu0 0.0
      %1124 = vmatpush1.msra.mxu0 0.0
      %1125 = vmatprep.subr.mxu0 0.0
      %1126 = vmatpush1.msra.mxu0 0.0
      %1127 = vmatprep.subr.mxu0 0.0
      %1128 = vmatpush1.msra.mxu0 0.0
      %1129 = vmatprep.subr.mxu0 0.0
      %1130 = vmatpush1.msra.mxu0 0.0
      %1131 = vmatprep.subr.mxu0 0.0
      %1132 = vmatpush1.msra.mxu0 0.0
      %1133 = vmatprep.subr.mxu0 0.0
      %1134 = vmatpush1.msra.mxu0 0.0
      %1135 = vmatprep.subr.mxu0 0.0
      %1136 = vmatpush1.msra.mxu0 0.0
      %1137 = vmatprep.subr.mxu0 0.0
      %1138 = vmatpush1.msra.mxu0 0.0
      %1139 = vmatprep.subr.mxu0 0.0
      %1140 = vmatpush1.msra.mxu0 0.0
      %1141 = vmatprep.subr.mxu0 0.0
      %1142 = vmatpush1.msra.mxu0 0.0
      %1143 = vmatprep.subr.mxu0 0.0
      %1144 = vmatpush1.msra.mxu0 0.0
      %1145 = vmatprep.subr.mxu0 0.0
      %1146 = vmatpush1.msra.mxu0 0.0
      %1147 = vmatprep.mubr.f32.mxu0 0.0
      %1148 = vmatmul.mubr.f32.gmra.mrb[0].mxu0 %v1081
      %v1149 = vpop.f32.mrb[0].mxu0
      %v1150 = vadd.f32 0.0, %v1149
      %v1151 = vpop.f32.mrb[0].mxu0
      %1152 = vdwg.mxu0
      %1153 = vmatprep.subr.mxu0 0.0
      %1154 = vmatpush1.msra.mxu0 %v1041
      %1155 = vmatprep.subr.mxu0 0.0
      %1156 = vmatpush1.msra.mxu0 %v1042
      %1157 = vmatprep.subr.mxu0 0.0
      %1158 = vmatpush1.msra.mxu0 %v1043
      %1159 = vmatprep.subr.mxu0 0.0
      %1160 = vmatpush1.msra.mxu0 %v1044
      %1161 = vmatprep.subr.mxu0 0.0
      %1162 = vmatpush1.msra.mxu0 %v1045
      %1163 = vmatprep.subr.mxu0 0.0
      %1164 = vmatpush1.msra.mxu0 %v1046
      %1165 = vmatprep.subr.mxu0 0.0
      %1166 = vmatpush1.msra.mxu0 %v1047
      %1167 = vmatprep.subr.mxu0 0.0
      %1168 = vmatpush1.msra.mxu0 %v1048
      %1169 = vmatprep.subr.mxu0 0.0
      %1170 = vmatpush1.msra.mxu0 %v1049
      %1171 = vmatprep.subr.mxu0 0.0
      %1172 = vmatpush1.msra.mxu0 %v1050
      %1173 = vmatprep.subr.mxu0 0.0
      %1174 = vmatpush1.msra.mxu0 %v1051
      %1175 = vmatprep.subr.mxu0 0.0
      %1176 = vmatpush1.msra.mxu0 %v1052
      %1177 = vmatprep.subr.mxu0 0.0
      %1178 = vmatpush1.msra.mxu0 %v1053
      %1179 = vmatprep.subr.mxu0 0.0
      %1180 = vmatpush1.msra.mxu0 %v1054
      %1181 = vmatprep.subr.mxu0 0.0
      %1182 = vmatpush1.msra.mxu0 %v1055
      %1183 = vmatprep.subr.mxu0 0.0
      %1184 = vmatpush1.msra.mxu0 %v1056
      %1185 = vmatprep.subr.mxu0 0.0
      %1186 = vmatpush1.msra.mxu0 0.0
      %1187 = vmatprep.subr.mxu0 0.0
      %1188 = vmatpush1.msra.mxu0 0.0
      %1189 = vmatprep.subr.mxu0 0.0
      %1190 = vmatpush1.msra.mxu0 0.0
      %1191 = vmatprep.subr.mxu0 0.0
      %1192 = vmatpush1.msra.mxu0 0.0
      %1193 = vmatprep.subr.mxu0 0.0
      %1194 = vmatpush1.msra.mxu0 0.0
      %1195 = vmatprep.subr.mxu0 0.0
      %1196 = vmatpush1.msra.mxu0 0.0
      %1197 = vmatprep.subr.mxu0 0.0
      %1198 = vmatpush1.msra.mxu0 0.0
      %1199 = vmatprep.subr.mxu0 0.0
      %1200 = vmatpush1.msra.mxu0 0.0
      %1201 = vmatprep.subr.mxu0 0.0
      %1202 = vmatpush1.msra.mxu0 0.0
      %1203 = vmatprep.subr.mxu0 0.0
      %1204 = vmatpush1.msra.mxu0 0.0
      %1205 = vmatprep.subr.mxu0 0.0
      %1206 = vmatpush1.msra.mxu0 0.0
      %1207 = vmatprep.subr.mxu0 0.0
      %1208 = vmatpush1.msra.mxu0 0.0
      %1209 = vmatprep.subr.mxu0 0.0
      %1210 = vmatpush1.msra.mxu0 0.0
      %1211 = vmatprep.subr.mxu0 0.0
      %1212 = vmatpush1.msra.mxu0 0.0
      %1213 = vmatprep.subr.mxu0 0.0
      %1214 = vmatpush1.msra.mxu0 0.0
      %1215 = vmatprep.subr.mxu0 0.0
      %1216 = vmatpush1.msra.mxu0 0.0
      %1217 = vmatprep.mubr.f32.mxu0 0.0
      %1218 = vmatmul.mubr.f32.gmra.mrb[0].mxu0 %v1150
      %v1219 = vpop.f32.mrb[0].mxu0
      %v1220 = vadd.f32 0.0, %v1219
      %v1221 = vpop.f32.mrb[0].mxu0
      %1222 = vdwg.mxu0
      %1223 = vmatprep.subr.mxu0 0.0
      %1224 = vmatpush1.xpose.msra.mxu0 %v1150
      %1225 = vmatprep.subr.mxu0 0.0
      %1226 = vmatpush1.xpose.msra.mxu0 0.0
      %1227 = vmatprep.subr.mxu0 0.0
      %1228 = vmatpush1.xpose.msra.mxu0 0.0
      %1229 = vmatprep.subr.mxu0 0.0
      %1230 = vmatpush1.xpose.msra.mxu0 0.0
      %1231 = vmatprep.subr.mxu0 0.0
      %1232 = vmatpush1.xpose.msra.mxu0 0.0
      %1233 = vmatprep.subr.mxu0 0.0
      %1234 = vmatpush1.xpose.msra.mxu0 0.0
      %1235 = vmatprep.subr.mxu0 0.0
      %1236 = vmatpush1.xpose.msra.mxu0 0.0
      %1237 = vmatprep.subr.mxu0 0.0
      %1238 = vmatpush1.xpose.msra.mxu0 0.0
      %1239 = vmatprep.subr.mxu0 0.0
      %1240 = vmatpush1.xpose.msra.mxu0 0.0
      %1241 = vmatprep.subr.mxu0 0.0
      %1242 = vmatpush1.xpose.msra.mxu0 0.0
      %1243 = vmatprep.subr.mxu0 0.0
      %1244 = vmatpush1.xpose.msra.mxu0 0.0
      %1245 = vmatprep.subr.mxu0 0.0
      %1246 = vmatpush1.xpose.msra.mxu0 0.0
      %1247 = vmatprep.subr.mxu0 0.0
      %1248 = vmatpush1.xpose.msra.mxu0 0.0
      %1249 = vmatprep.subr.mxu0 0.0
      %1250 = vmatpush1.xpose.msra.mxu0 0.0
      %1251 = vmatprep.subr.mxu0 0.0
      %1252 = vmatpush1.xpose.msra.mxu0 0.0
      %1253 = vmatprep.subr.mxu0 0.0
      %1254 = vmatpush1.xpose.msra.mxu0 0.0
      %1255 = vmatprep.subr.mxu0 0.0
      %1256 = vmatpush1.xpose.msra.mxu0 0.0
      %1257 = vmatprep.subr.mxu0 0.0
      %1258 = vmatpush1.xpose.msra.mxu0 0.0
      %1259 = vmatprep.subr.mxu0 0.0
      %1260 = vmatpush1.xpose.msra.mxu0 0.0
      %1261 = vmatprep.subr.mxu0 0.0
      %1262 = vmatpush1.xpose.msra.mxu0 0.0
      %1263 = vmatprep.subr.mxu0 0.0
      %1264 = vmatpush1.xpose.msra.mxu0 0.0
      %1265 = vmatprep.subr.mxu0 0.0
      %1266 = vmatpush1.xpose.msra.mxu0 0.0
      %1267 = vmatprep.subr.mxu0 0.0
      %1268 = vmatpush1.xpose.msra.mxu0 0.0
      %1269 = vmatprep.subr.mxu0 0.0
      %1270 = vmatpush1.xpose.msra.mxu0 0.0
      %1271 = vmatprep.subr.mxu0 0.0
      %1272 = vmatpush1.xpose.msra.mxu0 0.0
      %1273 = vmatprep.subr.mxu0 0.0
      %1274 = vmatpush1.xpose.msra.mxu0 0.0
      %1275 = vmatprep.subr.mxu0 0.0
      %1276 = vmatpush1.xpose.msra.mxu0 0.0
      %1277 = vmatprep.subr.mxu0 0.0
      %1278 = vmatpush1.xpose.msra.mxu0 0.0
      %1279 = vmatprep.subr.mxu0 0.0
      %1280 = vmatpush1.xpose.msra.mxu0 0.0
      %1281 = vmatprep.subr.mxu0 0.0
      %1282 = vmatpush1.xpose.msra.mxu0 0.0
      %1283 = vmatprep.subr.mxu0 0.0
      %1284 = vmatpush1.xpose.msra.mxu0 0.0
      %1285 = vmatprep.subr.mxu0 0.0
      %1286 = vmatpush1.xpose.msra.mxu0 0.0
      %1287 = vmatprep.mubr.f32.mxu0 0.0
      %1288 = vmatmul.mubr.f32.gmra.mrb[0].mxu0 %v1058
      %v1289 = vpop.f32.mrb[0].mxu0
      %v1290 = vadd.f32 0.0, %v1289
      %v1291 = vpop.f32.mrb[0].mxu0
      %1292 = vdwg.mxu0
      %1294 = vset.pattern.permute.xlu0 0
      %1295 = vperm.xlu0 %1294, %v1220
      %v1296 = vpop.permute.xlu0 %1295
      %v1298 = vlaneseq
      %v1299 = vshrl.u32 %v1298, 7
      %v1300 = vsub.s32 0, %v1299
      %v1301 = vrot.slane %v1290, %v1300
      %v1302 = vadd.f32 %v1296, %v1301
      %vm1303 = vcmp.gt.f32.partialorder %v1302, 0.0
      %v1304 = vmul.f32 %v1302, 0.2
      %v1305 = vsel %vm1303, %v1302, %v1304
      %v1306 = vsel %vm73, %v1305, -inf
      %1307 = vmax.xlane.f32.xlu0 %v1306
      %v1308 = vpop.xlane.xlu0 %1307
      %v1309 = vsub.f32 %v1305, %v1308
      %v1310 = vmul.f32 %v1309, 1.442695
      %v1311 = vpow.pop %v1310
      %v1312 = vsel %vm73, %v1311, 0.0
      %1313 = vadd.xlane.f32.xlu0 %v1312
      %v1314 = vpop.xlane.xlu0 %1313
      %v1315 = vrcp.pop %v1314
      %v1316 = vmul.f32 %v1311, %v1315
      %v1318 = vsel %vm73, %v1316, 0
      %1320 = vmatprep.subr.mxu0 0.0
      %1321 = vmatpush1.msra.mxu0 %v1150
      %1322 = vmatprep.subr.mxu0 0.0
      %1323 = vmatpush1.msra.mxu0 0.0
      %1324 = vmatprep.subr.mxu0 0.0
      %1325 = vmatpush1.msra.mxu0 0.0
      %1326 = vmatprep.subr.mxu0 0.0
      %1327 = vmatpush1.msra.mxu0 0.0
      %1328 = vmatprep.subr.mxu0 0.0
      %1329 = vmatpush1.msra.mxu0 0.0
      %1330 = vmatprep.subr.mxu0 0.0
      %1331 = vmatpush1.msra.mxu0 0.0
      %1332 = vmatprep.subr.mxu0 0.0
      %1333 = vmatpush1.msra.mxu0 0.0
      %1334 = vmatprep.subr.mxu0 0.0
      %1335 = vmatpush1.msra.mxu0 0.0
      %1336 = vmatprep.subr.mxu0 0.0
      %1337 = vmatpush1.msra.mxu0 0.0
      %1338 = vmatprep.subr.mxu0 0.0
      %1339 = vmatpush1.msra.mxu0 0.0
      %1340 = vmatprep.subr.mxu0 0.0
      %1341 = vmatpush1.msra.mxu0 0.0
      %1342 = vmatprep.subr.mxu0 0.0
      %1343 = vmatpush1.msra.mxu0 0.0
      %1344 = vmatprep.subr.mxu0 0.0
      %1345 = vmatpush1.msra.mxu0 0.0
      %1346 = vmatprep.subr.mxu0 0.0
      %1347 = vmatpush1.msra.mxu0 0.0
      %1348 = vmatprep.subr.mxu0 0.0
      %1349 = vmatpush1.msra.mxu0 0.0
      %1350 = vmatprep.subr.mxu0 0.0
      %1351 = vmatpush1.msra.mxu0 0.0
      %1352 = vmatprep.subr.mxu0 0.0
      %1353 = vmatpush1.msra.mxu0 0.0
      %1354 = vmatprep.subr.mxu0 0.0
      %1355 = vmatpush1.msra.mxu0 0.0
      %1356 = vmatprep.subr.mxu0 0.0
      %1357 = vmatpush1.msra.mxu0 0.0
      %1358 = vmatprep.subr.mxu0 0.0
      %1359 = vmatpush1.msra.mxu0 0.0
      %1360 = vmatprep.subr.mxu0 0.0
      %1361 = vmatpush1.msra.mxu0 0.0
      %1362 = vmatprep.subr.mxu0 0.0
      %1363 = vmatpush1.msra.mxu0 0.0
      %1364 = vmatprep.subr.mxu0 0.0
      %1365 = vmatpush1.msra.mxu0 0.0
      %1366 = vmatprep.subr.mxu0 0.0
      %1367 = vmatpush1.msra.mxu0 0.0
      %1368 = vmatprep.subr.mxu0 0.0
      %1369 = vmatpush1.msra.mxu0 0.0
      %1370 = vmatprep.subr.mxu0 0.0
      %1371 = vmatpush1.msra.mxu0 0.0
      %1372 = vmatprep.subr.mxu0 0.0
      %1373 = vmatpush1.msra.mxu0 0.0
      %1374 = vmatprep.subr.mxu0 0.0
      %1375 = vmatpush1.msra.mxu0 0.0
      %1376 = vmatprep.subr.mxu0 0.0
      %1377 = vmatpush1.msra.mxu0 0.0
      %1378 = vmatprep.subr.mxu0 0.0
      %1379 = vmatpush1.msra.mxu0 0.0
      %1380 = vmatprep.subr.mxu0 0.0
      %1381 = vmatpush1.msra.mxu0 0.0
      %1382 = vmatprep.subr.mxu0 0.0
      %1383 = vmatpush1.msra.mxu0 0.0
      %1384 = vmatprep.mubr.f32.mxu0 0.0
      %1385 = vmatmul.mubr.f32.gmra.mrb[0].mxu0 %v1318
      %v1386 = vpop.f32.mrb[0].mxu0
      %v1387 = vadd.f32 0.0, %v1386
      %v1388 = vpop.f32.mrb[0].mxu0
      %1389 = vdwg.mxu0
      %vm1390 = vcmp.gt.f32.partialorder %v1387, 0.0
      %v1391 = vmul.f32 %v1387, 1.442695
      %v1392 = vpow.pop %v1391
      %v1393 = vsub.f32 %v1392, 1.0
      %v1394 = vsel %vm1390, %v1387, %v1393
      %1395 = vset.pattern.permute.xlu0 1
      %1396 = vperm.xlu0 %1395, %v1220
      %v1397 = vpop.permute.xlu0 %1396
      %v1399 = vlaneseq
      %v1400 = vshrl.u32 %v1399, 7
      %v1401 = vsub.s32 1, %v1400
      %v1402 = vrot.slane %v1290, %v1401
      %v1403 = vadd.f32 %v1397, %v1402
      %vm1404 = vcmp.gt.f32.partialorder %v1403, 0.0
      %v1405 = vmul.f32 %v1403, 0.2
      %v1406 = vsel %vm1404, %v1403, %v1405
      %v1407 = vsel %vm73, %v1406, -inf
      %1408 = vmax.xlane.f32.xlu0 %v1407
      %v1409 = vpop.xlane.xlu0 %1408
      %v1410 = vsub.f32 %v1406, %v1409
      %v1411 = vmul.f32 %v1410, 1.442695
      %v1412 = vpow.pop %v1411
      %v1413 = vsel %vm73, %v1412, 0.0
      %1414 = vadd.xlane.f32.xlu0 %v1413
      %v1415 = vpop.xlane.xlu0 %1414
      %v1416 = vrcp.pop %v1415
      %v1417 = vmul.f32 %v1412, %v1416
      %1419 = vrot.lane.b32.xlu0 %v1150, 96
      %v1420 = vpop.permute.xlu0 %1419
      %v1423 = vsel %vm73, %v1417, 0
      %1425 = vmatprep.subr.mxu0 0.0
      %1426 = vmatpush1.msra.mxu0 %v1420
      %1427 = vmatprep.subr.mxu0 0.0
      %1428 = vmatpush1.msra.mxu0 0.0
      %1429 = vmatprep.subr.mxu0 0.0
      %1430 = vmatpush1.msra.mxu0 0.0
      %1431 = vmatprep.subr.mxu0 0.0
      %1432 = vmatpush1.msra.mxu0 0.0
      %1433 = vmatprep.subr.mxu0 0.0
      %1434 = vmatpush1.msra.mxu0 0.0
      %1435 = vmatprep.subr.mxu0 0.0
      %1436 = vmatpush1.msra.mxu0 0.0
      %1437 = vmatprep.subr.mxu0 0.0
      %1438 = vmatpush1.msra.mxu0 0.0
      %1439 = vmatprep.subr.mxu0 0.0
      %1440 = vmatpush1.msra.mxu0 0.0
      %1441 = vmatprep.subr.mxu0 0.0
      %1442 = vmatpush1.msra.mxu0 0.0
      %1443 = vmatprep.subr.mxu0 0.0
      %1444 = vmatpush1.msra.mxu0 0.0
      %1445 = vmatprep.subr.mxu0 0.0
      %1446 = vmatpush1.msra.mxu0 0.0
      %1447 = vmatprep.subr.mxu0 0.0
      %1448 = vmatpush1.msra.mxu0 0.0
      %1449 = vmatprep.subr.mxu0 0.0
      %1450 = vmatpush1.msra.mxu0 0.0
      %1451 = vmatprep.subr.mxu0 0.0
      %1452 = vmatpush1.msra.mxu0 0.0
      %1453 = vmatprep.subr.mxu0 0.0
      %1454 = vmatpush1.msra.mxu0 0.0
      %1455 = vmatprep.subr.mxu0 0.0
      %1456 = vmatpush1.msra.mxu0 0.0
      %1457 = vmatprep.subr.mxu0 0.0
      %1458 = vmatpush1.msra.mxu0 0.0
      %1459 = vmatprep.subr.mxu0 0.0
      %1460 = vmatpush1.msra.mxu0 0.0
      %1461 = vmatprep.subr.mxu0 0.0
      %1462 = vmatpush1.msra.mxu0 0.0
      %1463 = vmatprep.subr.mxu0 0.0
      %1464 = vmatpush1.msra.mxu0 0.0
      %1465 = vmatprep.subr.mxu0 0.0
      %1466 = vmatpush1.msra.mxu0 0.0
      %1467 = vmatprep.subr.mxu0 0.0
      %1468 = vmatpush1.msra.mxu0 0.0
      %1469 = vmatprep.subr.mxu0 0.0
      %1470 = vmatpush1.msra.mxu0 0.0
      %1471 = vmatprep.subr.mxu0 0.0
      %1472 = vmatpush1.msra.mxu0 0.0
      %1473 = vmatprep.subr.mxu0 0.0
      %1474 = vmatpush1.msra.mxu0 0.0
      %1475 = vmatprep.subr.mxu0 0.0
      %1476 = vmatpush1.msra.mxu0 0.0
      %1477 = vmatprep.subr.mxu0 0.0
      %1478 = vmatpush1.msra.mxu0 0.0
      %1479 = vmatprep.subr.mxu0 0.0
      %1480 = vmatpush1.msra.mxu0 0.0
      %1481 = vmatprep.subr.mxu0 0.0
      %1482 = vmatpush1.msra.mxu0 0.0
      %1483 = vmatprep.subr.mxu0 0.0
      %1484 = vmatpush1.msra.mxu0 0.0
      %1485 = vmatprep.subr.mxu0 0.0
      %1486 = vmatpush1.msra.mxu0 0.0
      %1487 = vmatprep.subr.mxu0 0.0
      %1488 = vmatpush1.msra.mxu0 0.0
      %1489 = vmatprep.mubr.f32.mxu0 0.0
      %1490 = vmatmul.mubr.f32.gmra.mrb[0].mxu0 %v1423
      %v1491 = vpop.f32.mrb[0].mxu0
      %v1492 = vadd.f32 0.0, %v1491
      %v1493 = vpop.f32.mrb[0].mxu0
      %1494 = vdwg.mxu0
      %vm1495 = vcmp.gt.f32.partialorder %v1492, 0.0
      %v1496 = vmul.f32 %v1492, 1.442695
      %v1497 = vpow.pop %v1496
      %v1498 = vsub.f32 %v1497, 1.0
      %v1499 = vsel %vm1495, %v1492, %v1498
      %1500 = vset.pattern.permute.xlu0 2
      %1501 = vperm.xlu0 %1500, %v1220
      %v1502 = vpop.permute.xlu0 %1501
      %v1504 = vlaneseq
      %v1505 = vshrl.u32 %v1504, 7
      %v1506 = vsub.s32 2, %v1505
      %v1507 = vrot.slane %v1290, %v1506
      %v1508 = vadd.f32 %v1502, %v1507
      %vm1509 = vcmp.gt.f32.partialorder %v1508, 0.0
      %v1510 = vmul.f32 %v1508, 0.2
      %v1511 = vsel %vm1509, %v1508, %v1510
      %v1512 = vsel %vm73, %v1511, -inf
      %1513 = vmax.xlane.f32.xlu0 %v1512
      %v1514 = vpop.xlane.xlu0 %1513
      %v1515 = vsub.f32 %v1511, %v1514
      %v1516 = vmul.f32 %v1515, 1.442695
      %v1517 = vpow.pop %v1516
      %v1518 = vsel %vm73, %v1517, 0.0
      %1519 = vadd.xlane.f32.xlu0 %v1518
      %v1520 = vpop.xlane.xlu0 %1519
      %v1521 = vrcp.pop %v1520
      %v1522 = vmul.f32 %v1517, %v1521
      %1523 = vrot.lane.b32.xlu0 %v1150, 64
      %v1524 = vpop.permute.xlu0 %1523
      %v1527 = vsel %vm73, %v1522, 0
      %1529 = vmatprep.subr.mxu0 0.0
      %1530 = vmatpush1.msra.mxu0 %v1524
      %1531 = vmatprep.subr.mxu0 0.0
      %1532 = vmatpush1.msra.mxu0 0.0
      %1533 = vmatprep.subr.mxu0 0.0
      %1534 = vmatpush1.msra.mxu0 0.0
      %1535 = vmatprep.subr.mxu0 0.0
      %1536 = vmatpush1.msra.mxu0 0.0
      %1537 = vmatprep.subr.mxu0 0.0
      %1538 = vmatpush1.msra.mxu0 0.0
      %1539 = vmatprep.subr.mxu0 0.0
      %1540 = vmatpush1.msra.mxu0 0.0
      %1541 = vmatprep.subr.mxu0 0.0
      %1542 = vmatpush1.msra.mxu0 0.0
      %1543 = vmatprep.subr.mxu0 0.0
      %1544 = vmatpush1.msra.mxu0 0.0
      %1545 = vmatprep.subr.mxu0 0.0
      %1546 = vmatpush1.msra.mxu0 0.0
      %1547 = vmatprep.subr.mxu0 0.0
      %1548 = vmatpush1.msra.mxu0 0.0
      %1549 = vmatprep.subr.mxu0 0.0
      %1550 = vmatpush1.msra.mxu0 0.0
      %1551 = vmatprep.subr.mxu0 0.0
      %1552 = vmatpush1.msra.mxu0 0.0
      %1553 = vmatprep.subr.mxu0 0.0
      %1554 = vmatpush1.msra.mxu0 0.0
      %1555 = vmatprep.subr.mxu0 0.0
      %1556 = vmatpush1.msra.mxu0 0.0
      %1557 = vmatprep.subr.mxu0 0.0
      %1558 = vmatpush1.msra.mxu0 0.0
      %1559 = vmatprep.subr.mxu0 0.0
      %1560 = vmatpush1.msra.mxu0 0.0
      %1561 = vmatprep.subr.mxu0 0.0
      %1562 = vmatpush1.msra.mxu0 0.0
      %1563 = vmatprep.subr.mxu0 0.0
      %1564 = vmatpush1.msra.mxu0 0.0
      %1565 = vmatprep.subr.mxu0 0.0
      %1566 = vmatpush1.msra.mxu0 0.0
      %1567 = vmatprep.subr.mxu0 0.0
      %1568 = vmatpush1.msra.mxu0 0.0
      %1569 = vmatprep.subr.mxu0 0.0
      %1570 = vmatpush1.msra.mxu0 0.0
      %1571 = vmatprep.subr.mxu0 0.0
      %1572 = vmatpush1.msra.mxu0 0.0
      %1573 = vmatprep.subr.mxu0 0.0
      %1574 = vmatpush1.msra.mxu0 0.0
      %1575 = vmatprep.subr.mxu0 0.0
      %1576 = vmatpush1.msra.mxu0 0.0
      %1577 = vmatprep.subr.mxu0 0.0
      %1578 = vmatpush1.msra.mxu0 0.0
      %1579 = vmatprep.subr.mxu0 0.0
      %1580 = vmatpush1.msra.mxu0 0.0
      %1581 = vmatprep.subr.mxu0 0.0
      %1582 = vmatpush1.msra.mxu0 0.0
      %1583 = vmatprep.subr.mxu0 0.0
      %1584 = vmatpush1.msra.mxu0 0.0
      %1585 = vmatprep.subr.mxu0 0.0
      %1586 = vmatpush1.msra.mxu0 0.0
      %1587 = vmatprep.subr.mxu0 0.0
      %1588 = vmatpush1.msra.mxu0 0.0
      %1589 = vmatprep.subr.mxu0 0.0
      %1590 = vmatpush1.msra.mxu0 0.0
      %1591 = vmatprep.subr.mxu0 0.0
      %1592 = vmatpush1.msra.mxu0 0.0
      %1593 = vmatprep.mubr.f32.mxu0 0.0
      %1594 = vmatmul.mubr.f32.gmra.mrb[0].mxu0 %v1527
      %v1595 = vpop.f32.mrb[0].mxu0
      %v1596 = vadd.f32 0.0, %v1595
      %v1597 = vpop.f32.mrb[0].mxu0
      %1598 = vdwg.mxu0
      %vm1599 = vcmp.gt.f32.partialorder %v1596, 0.0
      %v1600 = vmul.f32 %v1596, 1.442695
      %v1601 = vpow.pop %v1600
      %v1602 = vsub.f32 %v1601, 1.0
      %v1603 = vsel %vm1599, %v1596, %v1602
      %1604 = vset.pattern.permute.xlu0 3
      %1605 = vperm.xlu0 %1604, %v1220
      %v1606 = vpop.permute.xlu0 %1605
      %v1608 = vlaneseq
      %v1609 = vshrl.u32 %v1608, 7
      %v1610 = vsub.s32 3, %v1609
      %v1611 = vrot.slane %v1290, %v1610
      %v1612 = vadd.f32 %v1606, %v1611
      %vm1613 = vcmp.gt.f32.partialorder %v1612, 0.0
      %v1614 = vmul.f32 %v1612, 0.2
      %v1615 = vsel %vm1613, %v1612, %v1614
      %v1616 = vsel %vm73, %v1615, -inf
      %1617 = vmax.xlane.f32.xlu0 %v1616
      %v1618 = vpop.xlane.xlu0 %1617
      %v1619 = vsub.f32 %v1615, %v1618
      %v1620 = vmul.f32 %v1619, 1.442695
      %v1621 = vpow.pop %v1620
      %v1622 = vsel %vm73, %v1621, 0.0
      %1623 = vadd.xlane.f32.xlu0 %v1622
      %v1624 = vpop.xlane.xlu0 %1623
      %v1625 = vrcp.pop %v1624
      %v1626 = vmul.f32 %v1621, %v1625
      %1627 = vrot.lane.b32.xlu0 %v1150, 32
      %v1628 = vpop.permute.xlu0 %1627
      %v1631 = vsel %vm73, %v1626, 0
      %1633 = vmatprep.subr.mxu0 0.0
      %1634 = vmatpush1.msra.mxu0 %v1628
      %1635 = vmatprep.subr.mxu0 0.0
      %1636 = vmatpush1.msra.mxu0 0.0
      %1637 = vmatprep.subr.mxu0 0.0
      %1638 = vmatpush1.msra.mxu0 0.0
      %1639 = vmatprep.subr.mxu0 0.0
      %1640 = vmatpush1.msra.mxu0 0.0
      %1641 = vmatprep.subr.mxu0 0.0
      %1642 = vmatpush1.msra.mxu0 0.0
      %1643 = vmatprep.subr.mxu0 0.0
      %1644 = vmatpush1.msra.mxu0 0.0
      %1645 = vmatprep.subr.mxu0 0.0
      %1646 = vmatpush1.msra.mxu0 0.0
      %1647 = vmatprep.subr.mxu0 0.0
      %1648 = vmatpush1.msra.mxu0 0.0
      %1649 = vmatprep.subr.mxu0 0.0
      %1650 = vmatpush1.msra.mxu0 0.0
      %1651 = vmatprep.subr.mxu0 0.0
      %1652 = vmatpush1.msra.mxu0 0.0
      %1653 = vmatprep.subr.mxu0 0.0
      %1654 = vmatpush1.msra.mxu0 0.0
      %1655 = vmatprep.subr.mxu0 0.0
      %1656 = vmatpush1.msra.mxu0 0.0
      %1657 = vmatprep.subr.mxu0 0.0
      %1658 = vmatpush1.msra.mxu0 0.0
      %1659 = vmatprep.subr.mxu0 0.0
      %1660 = vmatpush1.msra.mxu0 0.0
      %1661 = vmatprep.subr.mxu0 0.0
      %1662 = vmatpush1.msra.mxu0 0.0
      %1663 = vmatprep.subr.mxu0 0.0
      %1664 = vmatpush1.msra.mxu0 0.0
      %1665 = vmatprep.subr.mxu0 0.0
      %1666 = vmatpush1.msra.mxu0 0.0
      %1667 = vmatprep.subr.mxu0 0.0
      %1668 = vmatpush1.msra.mxu0 0.0
      %1669 = vmatprep.subr.mxu0 0.0
      %1670 = vmatpush1.msra.mxu0 0.0
      %1671 = vmatprep.subr.mxu0 0.0
      %1672 = vmatpush1.msra.mxu0 0.0
      %1673 = vmatprep.subr.mxu0 0.0
      %1674 = vmatpush1.msra.mxu0 0.0
      %1675 = vmatprep.subr.mxu0 0.0
      %1676 = vmatpush1.msra.mxu0 0.0
      %1677 = vmatprep.subr.mxu0 0.0
      %1678 = vmatpush1.msra.mxu0 0.0
      %1679 = vmatprep.subr.mxu0 0.0
      %1680 = vmatpush1.msra.mxu0 0.0
      %1681 = vmatprep.subr.mxu0 0.0
      %1682 = vmatpush1.msra.mxu0 0.0
      %1683 = vmatprep.subr.mxu0 0.0
      %1684 = vmatpush1.msra.mxu0 0.0
      %1685 = vmatprep.subr.mxu0 0.0
      %1686 = vmatpush1.msra.mxu0 0.0
      %1687 = vmatprep.subr.mxu0 0.0
      %1688 = vmatpush1.msra.mxu0 0.0
      %1689 = vmatprep.subr.mxu0 0.0
      %1690 = vmatpush1.msra.mxu0 0.0
      %1691 = vmatprep.subr.mxu0 0.0
      %1692 = vmatpush1.msra.mxu0 0.0
      %1693 = vmatprep.subr.mxu0 0.0
      %1694 = vmatpush1.msra.mxu0 0.0
      %1695 = vmatprep.subr.mxu0 0.0
      %1696 = vmatpush1.msra.mxu0 0.0
      %1697 = vmatprep.mubr.f32.mxu0 0.0
      %1698 = vmatmul.mubr.f32.gmra.mrb[0].mxu0 %v1631
      %v1699 = vpop.f32.mrb[0].mxu0
      %v1700 = vadd.f32 0.0, %v1699
      %v1701 = vpop.f32.mrb[0].mxu0
      %1702 = vdwg.mxu0
      %vm1703 = vcmp.gt.f32.partialorder %v1700, 0.0
      %v1704 = vmul.f32 %v1700, 1.442695
      %v1705 = vpow.pop %v1704
      %v1706 = vsub.f32 %v1705, 1.0
      %v1707 = vsel %vm1703, %v1700, %v1706
      %1709 = vrot.lane.b32.xlu0 %v1499, 32
      %v1710 = vpop.permute.xlu0 %1709
      %1713 = vrot.lane.b32.xlu0 %v1603, 64
      %v1714 = vpop.permute.xlu0 %1713
      %1717 = vrot.lane.b32.xlu0 %v1707, 96
      %v1718 = vpop.permute.xlu0 %1717
      %v1720 = vsel %vm714, %v1394, %v1710
      %v1721 = vsel %vm716, %v1720, %v1714
      %v1722 = vsel %vm718, %v1721, %v1718
      %1723 = vmatprep.subr.mxu0 0.0
      %1724 = vmatpush1.msra.mxu0 %v1060
      %1725 = vmatprep.subr.mxu0 0.0
      %1726 = vmatpush1.msra.mxu0 %v1061
      %1727 = vmatprep.subr.mxu0 0.0
      %1728 = vmatpush1.msra.mxu0 %v1062
      %1729 = vmatprep.subr.mxu0 0.0
      %1730 = vmatpush1.msra.mxu0 %v1063
      %1731 = vmatprep.subr.mxu0 0.0
      %1732 = vmatpush1.msra.mxu0 %v1064
      %1733 = vmatprep.subr.mxu0 0.0
      %1734 = vmatpush1.msra.mxu0 %v1065
      %1735 = vmatprep.subr.mxu0 0.0
      %1736 = vmatpush1.msra.mxu0 %v1066
      %1737 = vmatprep.subr.mxu0 0.0
      %1738 = vmatpush1.msra.mxu0 %v1067
      %1739 = vmatprep.subr.mxu0 0.0
      %1740 = vmatpush1.msra.mxu0 %v1068
      %1741 = vmatprep.subr.mxu0 0.0
      %1742 = vmatpush1.msra.mxu0 %v1069
      %1743 = vmatprep.subr.mxu0 0.0
      %1744 = vmatpush1.msra.mxu0 %v1070
      %1745 = vmatprep.subr.mxu0 0.0
      %1746 = vmatpush1.msra.mxu0 %v1071
      %1747 = vmatprep.subr.mxu0 0.0
      %1748 = vmatpush1.msra.mxu0 %v1072
      %1749 = vmatprep.subr.mxu0 0.0
      %1750 = vmatpush1.msra.mxu0 %v1073
      %1751 = vmatprep.subr.mxu0 0.0
      %1752 = vmatpush1.msra.mxu0 %v1074
      %1753 = vmatprep.subr.mxu0 0.0
      %1754 = vmatpush1.msra.mxu0 %v1075
      %1755 = vmatprep.subr.mxu0 0.0
      %1756 = vmatpush1.msra.mxu0 0.0
      %1757 = vmatprep.subr.mxu0 0.0
      %1758 = vmatpush1.msra.mxu0 0.0
      %1759 = vmatprep.subr.mxu0 0.0
      %1760 = vmatpush1.msra.mxu0 0.0
      %1761 = vmatprep.subr.mxu0 0.0
      %1762 = vmatpush1.msra.mxu0 0.0
      %1763 = vmatprep.subr.mxu0 0.0
      %1764 = vmatpush1.msra.mxu0 0.0
      %1765 = vmatprep.subr.mxu0 0.0
      %1766 = vmatpush1.msra.mxu0 0.0
      %1767 = vmatprep.subr.mxu0 0.0
      %1768 = vmatpush1.msra.mxu0 0.0
      %1769 = vmatprep.subr.mxu0 0.0
      %1770 = vmatpush1.msra.mxu0 0.0
      %1771 = vmatprep.subr.mxu0 0.0
      %1772 = vmatpush1.msra.mxu0 0.0
      %1773 = vmatprep.subr.mxu0 0.0
      %1774 = vmatpush1.msra.mxu0 0.0
      %1775 = vmatprep.subr.mxu0 0.0
      %1776 = vmatpush1.msra.mxu0 0.0
      %1777 = vmatprep.subr.mxu0 0.0
      %1778 = vmatpush1.msra.mxu0 0.0
      %1779 = vmatprep.subr.mxu0 0.0
      %1780 = vmatpush1.msra.mxu0 0.0
      %1781 = vmatprep.subr.mxu0 0.0
      %1782 = vmatpush1.msra.mxu0 0.0
      %1783 = vmatprep.subr.mxu0 0.0
      %1784 = vmatpush1.msra.mxu0 0.0
      %1785 = vmatprep.subr.mxu0 0.0
      %1786 = vmatpush1.msra.mxu0 0.0
      %1787 = vmatprep.mubr.f32.mxu0 0.0
      %1788 = vmatmul.mubr.f32.gmra.mrb[0].mxu0 %v1722
      %v1789 = vpop.f32.mrb[0].mxu0
      %v1790 = vadd.f32 0.0, %v1789
      %v1791 = vpop.f32.mrb[0].mxu0
      %1792 = vdwg.mxu0
      %v1794 = vsel %vm73, %v1790, 0
      %1796 = vmatprep.subr.mxu0 0.0
      %1797 = vmatpush1.msra.mxu0 %v1077
      %1798 = vmatprep.subr.mxu0 0.0
      %1799 = vmatpush1.msra.mxu0 0.0
      %1800 = vmatprep.subr.mxu0 0.0
      %1801 = vmatpush1.msra.mxu0 0.0
      %1802 = vmatprep.subr.mxu0 0.0
      %1803 = vmatpush1.msra.mxu0 0.0
      %1804 = vmatprep.subr.mxu0 0.0
      %1805 = vmatpush1.msra.mxu0 0.0
      %1806 = vmatprep.subr.mxu0 0.0
      %1807 = vmatpush1.msra.mxu0 0.0
      %1808 = vmatprep.subr.mxu0 0.0
      %1809 = vmatpush1.msra.mxu0 0.0
      %1810 = vmatprep.subr.mxu0 0.0
      %1811 = vmatpush1.msra.mxu0 0.0
      %1812 = vmatprep.subr.mxu0 0.0
      %1813 = vmatpush1.msra.mxu0 0.0
      %1814 = vmatprep.subr.mxu0 0.0
      %1815 = vmatpush1.msra.mxu0 0.0
      %1816 = vmatprep.subr.mxu0 0.0
      %1817 = vmatpush1.msra.mxu0 0.0
      %1818 = vmatprep.subr.mxu0 0.0
      %1819 = vmatpush1.msra.mxu0 0.0
      %1820 = vmatprep.subr.mxu0 0.0
      %1821 = vmatpush1.msra.mxu0 0.0
      %1822 = vmatprep.subr.mxu0 0.0
      %1823 = vmatpush1.msra.mxu0 0.0
      %1824 = vmatprep.subr.mxu0 0.0
      %1825 = vmatpush1.msra.mxu0 0.0
      %1826 = vmatprep.subr.mxu0 0.0
      %1827 = vmatpush1.msra.mxu0 0.0
      %1828 = vmatprep.subr.mxu0 0.0
      %1829 = vmatpush1.msra.mxu0 0.0
      %1830 = vmatprep.subr.mxu0 0.0
      %1831 = vmatpush1.msra.mxu0 0.0
      %1832 = vmatprep.subr.mxu0 0.0
      %1833 = vmatpush1.msra.mxu0 0.0
      %1834 = vmatprep.subr.mxu0 0.0
      %1835 = vmatpush1.msra.mxu0 0.0
      %1836 = vmatprep.subr.mxu0 0.0
      %1837 = vmatpush1.msra.mxu0 0.0
      %1838 = vmatprep.subr.mxu0 0.0
      %1839 = vmatpush1.msra.mxu0 0.0
      %1840 = vmatprep.subr.mxu0 0.0
      %1841 = vmatpush1.msra.mxu0 0.0
      %1842 = vmatprep.subr.mxu0 0.0
      %1843 = vmatpush1.msra.mxu0 0.0
      %1844 = vmatprep.subr.mxu0 0.0
      %1845 = vmatpush1.msra.mxu0 0.0
      %1846 = vmatprep.subr.mxu0 0.0
      %1847 = vmatpush1.msra.mxu0 0.0
      %1848 = vmatprep.subr.mxu0 0.0
      %1849 = vmatpush1.msra.mxu0 0.0
      %1850 = vmatprep.subr.mxu0 0.0
      %1851 = vmatpush1.msra.mxu0 0.0
      %1852 = vmatprep.subr.mxu0 0.0
      %1853 = vmatpush1.msra.mxu0 0.0
      %1854 = vmatprep.subr.mxu0 0.0
      %1855 = vmatpush1.msra.mxu0 0.0
      %1856 = vmatprep.subr.mxu0 0.0
      %1857 = vmatpush1.msra.mxu0 0.0
      %1858 = vmatprep.subr.mxu0 0.0
      %1859 = vmatpush1.msra.mxu0 0.0
      %1860 = vmatprep.mubr.f32.mxu0 0.0
      %1861 = vmatmul.mubr.f32.gmra.mrb[0].mxu0 %v1794
      %v1862 = vpop.f32.mrb[0].mxu0
      %v1863 = vadd.f32 0.0, %v1862
      %v1864 = vpop.f32.mrb[0].mxu0
      %1865 = vdwg.mxu0
      %v1867 = vsel %vm73, %v1079, 0
      %1869 = vmatprep.subr.mxu0 0.0
      %1870 = vmatpush1.xpose.msra.mxu0 %v1794
      %1871 = vmatprep.subr.mxu0 0.0
      %1872 = vmatpush1.xpose.msra.mxu0 0.0
      %1873 = vmatprep.subr.mxu0 0.0
      %1874 = vmatpush1.xpose.msra.mxu0 0.0
      %1875 = vmatprep.subr.mxu0 0.0
      %1876 = vmatpush1.xpose.msra.mxu0 0.0
      %1877 = vmatprep.subr.mxu0 0.0
      %1878 = vmatpush1.xpose.msra.mxu0 0.0
      %1879 = vmatprep.subr.mxu0 0.0
      %1880 = vmatpush1.xpose.msra.mxu0 0.0
      %1881 = vmatprep.subr.mxu0 0.0
      %1882 = vmatpush1.xpose.msra.mxu0 0.0
      %1883 = vmatprep.subr.mxu0 0.0
      %1884 = vmatpush1.xpose.msra.mxu0 0.0
      %1885 = vmatprep.subr.mxu0 0.0
      %1886 = vmatpush1.xpose.msra.mxu0 0.0
      %1887 = vmatprep.subr.mxu0 0.0
      %1888 = vmatpush1.xpose.msra.mxu0 0.0
      %1889 = vmatprep.subr.mxu0 0.0
      %1890 = vmatpush1.xpose.msra.mxu0 0.0
      %1891 = vmatprep.subr.mxu0 0.0
      %1892 = vmatpush1.xpose.msra.mxu0 0.0
      %1893 = vmatprep.subr.mxu0 0.0
      %1894 = vmatpush1.xpose.msra.mxu0 0.0
      %1895 = vmatprep.subr.mxu0 0.0
      %1896 = vmatpush1.xpose.msra.mxu0 0.0
      %1897 = vmatprep.subr.mxu0 0.0
      %1898 = vmatpush1.xpose.msra.mxu0 0.0
      %1899 = vmatprep.subr.mxu0 0.0
      %1900 = vmatpush1.xpose.msra.mxu0 0.0
      %1901 = vmatprep.subr.mxu0 0.0
      %1902 = vmatpush1.xpose.msra.mxu0 0.0
      %1903 = vmatprep.subr.mxu0 0.0
      %1904 = vmatpush1.xpose.msra.mxu0 0.0
      %1905 = vmatprep.subr.mxu0 0.0
      %1906 = vmatpush1.xpose.msra.mxu0 0.0
      %1907 = vmatprep.subr.mxu0 0.0
      %1908 = vmatpush1.xpose.msra.mxu0 0.0
      %1909 = vmatprep.subr.mxu0 0.0
      %1910 = vmatpush1.xpose.msra.mxu0 0.0
      %1911 = vmatprep.subr.mxu0 0.0
      %1912 = vmatpush1.xpose.msra.mxu0 0.0
      %1913 = vmatprep.subr.mxu0 0.0
      %1914 = vmatpush1.xpose.msra.mxu0 0.0
      %1915 = vmatprep.subr.mxu0 0.0
      %1916 = vmatpush1.xpose.msra.mxu0 0.0
      %1917 = vmatprep.subr.mxu0 0.0
      %1918 = vmatpush1.xpose.msra.mxu0 0.0
      %1919 = vmatprep.subr.mxu0 0.0
      %1920 = vmatpush1.xpose.msra.mxu0 0.0
      %1921 = vmatprep.subr.mxu0 0.0
      %1922 = vmatpush1.xpose.msra.mxu0 0.0
      %1923 = vmatprep.subr.mxu0 0.0
      %1924 = vmatpush1.xpose.msra.mxu0 0.0
      %1925 = vmatprep.subr.mxu0 0.0
      %1926 = vmatpush1.xpose.msra.mxu0 0.0
      %1927 = vmatprep.subr.mxu0 0.0
      %1928 = vmatpush1.xpose.msra.mxu0 0.0
      %1929 = vmatprep.subr.mxu0 0.0
      %1930 = vmatpush1.xpose.msra.mxu0 0.0
      %1931 = vmatprep.subr.mxu0 0.0
      %1932 = vmatpush1.xpose.msra.mxu0 0.0
      %1933 = vmatprep.mubr.f32.mxu0 0.0
      %1934 = vmatmul.mubr.f32.gmra.mrb[0].mxu0 %v1867
      %v1935 = vpop.f32.mrb[0].mxu0
      %v1936 = vadd.f32 0.0, %v1935
      %v1937 = vpop.f32.mrb[0].mxu0
      %1938 = vdwg.mxu0
      %1940 = vset.pattern.permute.xlu0 0
      %1941 = vperm.xlu0 %1940, %v1863
      %v1942 = vpop.permute.xlu0 %1941
      %v1944 = vlaneseq
      %v1945 = vshrl.u32 %v1944, 7
      %v1946 = vsub.s32 0, %v1945
      %v1947 = vrot.slane %v1936, %v1946
      %v1948 = vadd.f32 %v1942, %v1947
      %vm1949 = vcmp.gt.f32.partialorder %v1948, 0.0
      %v1950 = vmul.f32 %v1948, 0.2
      %v1951 = vsel %vm1949, %v1948, %v1950
      %v1952 = vsel %vm73, %v1951, -inf
      %1953 = vmax.xlane.f32.xlu0 %v1952
      %v1954 = vpop.xlane.xlu0 %1953
      %v1955 = vsub.f32 %v1951, %v1954
      %v1956 = vmul.f32 %v1955, 1.442695
      %v1957 = vpow.pop %v1956
      %v1958 = vsel %vm73, %v1957, 0.0
      %1959 = vadd.xlane.f32.xlu0 %v1958
      %v1960 = vpop.xlane.xlu0 %1959
      %v1961 = vrcp.pop %v1960
      %v1962 = vmul.f32 %v1957, %v1961
      %v1964 = vsel %vm73, %v1962, 0
      %1966 = vmatprep.subr.mxu0 0.0
      %1967 = vmatpush1.msra.mxu0 %v1790
      %1968 = vmatprep.subr.mxu0 0.0
      %1969 = vmatpush1.msra.mxu0 0.0
      %1970 = vmatprep.subr.mxu0 0.0
      %1971 = vmatpush1.msra.mxu0 0.0
      %1972 = vmatprep.subr.mxu0 0.0
      %1973 = vmatpush1.msra.mxu0 0.0
      %1974 = vmatprep.subr.mxu0 0.0
      %1975 = vmatpush1.msra.mxu0 0.0
      %1976 = vmatprep.subr.mxu0 0.0
      %1977 = vmatpush1.msra.mxu0 0.0
      %1978 = vmatprep.subr.mxu0 0.0
      %1979 = vmatpush1.msra.mxu0 0.0
      %1980 = vmatprep.subr.mxu0 0.0
      %1981 = vmatpush1.msra.mxu0 0.0
      %1982 = vmatprep.subr.mxu0 0.0
      %1983 = vmatpush1.msra.mxu0 0.0
      %1984 = vmatprep.subr.mxu0 0.0
      %1985 = vmatpush1.msra.mxu0 0.0
      %1986 = vmatprep.subr.mxu0 0.0
      %1987 = vmatpush1.msra.mxu0 0.0
      %1988 = vmatprep.subr.mxu0 0.0
      %1989 = vmatpush1.msra.mxu0 0.0
      %1990 = vmatprep.subr.mxu0 0.0
      %1991 = vmatpush1.msra.mxu0 0.0
      %1992 = vmatprep.subr.mxu0 0.0
      %1993 = vmatpush1.msra.mxu0 0.0
      %1994 = vmatprep.subr.mxu0 0.0
      %1995 = vmatpush1.msra.mxu0 0.0
      %1996 = vmatprep.subr.mxu0 0.0
      %1997 = vmatpush1.msra.mxu0 0.0
      %1998 = vmatprep.subr.mxu0 0.0
      %1999 = vmatpush1.msra.mxu0 0.0
      %2000 = vmatprep.subr.mxu0 0.0
      %2001 = vmatpush1.msra.mxu0 0.0
      %2002 = vmatprep.subr.mxu0 0.0
      %2003 = vmatpush1.msra.mxu0 0.0
      %2004 = vmatprep.subr.mxu0 0.0
      %2005 = vmatpush1.msra.mxu0 0.0
      %2006 = vmatprep.subr.mxu0 0.0
      %2007 = vmatpush1.msra.mxu0 0.0
      %2008 = vmatprep.subr.mxu0 0.0
      %2009 = vmatpush1.msra.mxu0 0.0
      %2010 = vmatprep.subr.mxu0 0.0
      %2011 = vmatpush1.msra.mxu0 0.0
      %2012 = vmatprep.subr.mxu0 0.0
      %2013 = vmatpush1.msra.mxu0 0.0
      %2014 = vmatprep.subr.mxu0 0.0
      %2015 = vmatpush1.msra.mxu0 0.0
      %2016 = vmatprep.subr.mxu0 0.0
      %2017 = vmatpush1.msra.mxu0 0.0
      %2018 = vmatprep.subr.mxu0 0.0
      %2019 = vmatpush1.msra.mxu0 0.0
      %2020 = vmatprep.subr.mxu0 0.0
      %2021 = vmatpush1.msra.mxu0 0.0
      %2022 = vmatprep.subr.mxu0 0.0
      %2023 = vmatpush1.msra.mxu0 0.0
      %2024 = vmatprep.subr.mxu0 0.0
      %2025 = vmatpush1.msra.mxu0 0.0
      %2026 = vmatprep.subr.mxu0 0.0
      %2027 = vmatpush1.msra.mxu0 0.0
      %2028 = vmatprep.subr.mxu0 0.0
      %2029 = vmatpush1.msra.mxu0 0.0
      %2030 = vmatprep.mubr.f32.mxu0 0.0
      %2031 = vmatmul.mubr.f32.gmra.mrb[0].mxu0 %v1964
      %v2032 = vpop.f32.mrb[0].mxu0
      %v2033 = vadd.f32 0.0, %v2032
      %v2034 = vpop.f32.mrb[0].mxu0
      %2035 = vdwg.mxu0
      %vm2036 = vcmp.gt.f32.partialorder %v2033, 0.0
      %v2037 = vmul.f32 %v2033, 1.442695
      %v2038 = vpow.pop %v2037
      %v2039 = vsub.f32 %v2038, 1.0
      %v2040 = vsel %vm2036, %v2033, %v2039
      %v2041 = vadd.f32 %v1037, %v2040
      %s2042 = scalar_lea.vmem %s1, 16
      %v2043 = vld [vmem:[%s2042] sm:$0xff]
      %s2044 = scalar_lea.vmem %s2, 256
      %v2045 = vld [vmem:[%s2044] sm:$0xff]
      %v2046 = vld [vmem:[%s2044 + $0x8] sm:$0xff]
      %v2047 = vld [vmem:[%s2044 + $0x10] sm:$0xff]
      %v2048 = vld [vmem:[%s2044 + $0x18] sm:$0xff]
      %v2049 = vld [vmem:[%s2044 + $0x20] sm:$0xff]
      %v2050 = vld [vmem:[%s2044 + $0x28] sm:$0xff]
      %v2051 = vld [vmem:[%s2044 + $0x30] sm:$0xff]
      %v2052 = vld [vmem:[%s2044 + $0x38] sm:$0xff]
      %v2053 = vld [vmem:[%s2044 + $0x40] sm:$0xff]
      %v2054 = vld [vmem:[%s2044 + $0x48] sm:$0xff]
      %v2055 = vld [vmem:[%s2044 + $0x50] sm:$0xff]
      %v2056 = vld [vmem:[%s2044 + $0x58] sm:$0xff]
      %v2057 = vld [vmem:[%s2044 + $0x60] sm:$0xff]
      %v2058 = vld [vmem:[%s2044 + $0x68] sm:$0xff]
      %v2059 = vld [vmem:[%s2044 + $0x70] sm:$0xff]
      %v2060 = vld [vmem:[%s2044 + $0x78] sm:$0xff]
      %s2061 = scalar_lea.vmem %s3, 8
      %v2062 = vld [vmem:[%s2061] sm:$0xf]
      %s2063 = scalar_lea.vmem %s4, 256
      %v2064 = vld [vmem:[%s2063] sm:$0xff]
      %v2065 = vld [vmem:[%s2063 + $0x8] sm:$0xff]
      %v2066 = vld [vmem:[%s2063 + $0x10] sm:$0xff]
      %v2067 = vld [vmem:[%s2063 + $0x18] sm:$0xff]
      %v2068 = vld [vmem:[%s2063 + $0x20] sm:$0xff]
      %v2069 = vld [vmem:[%s2063 + $0x28] sm:$0xff]
      %v2070 = vld [vmem:[%s2063 + $0x30] sm:$0xff]
      %v2071 = vld [vmem:[%s2063 + $0x38] sm:$0xff]
      %v2072 = vld [vmem:[%s2063 + $0x40] sm:$0xff]
      %v2073 = vld [vmem:[%s2063 + $0x48] sm:$0xff]
      %v2074 = vld [vmem:[%s2063 + $0x50] sm:$0xff]
      %v2075 = vld [vmem:[%s2063 + $0x58] sm:$0xff]
      %v2076 = vld [vmem:[%s2063 + $0x60] sm:$0xff]
      %v2077 = vld [vmem:[%s2063 + $0x68] sm:$0xff]
      %v2078 = vld [vmem:[%s2063 + $0x70] sm:$0xff]
      %v2079 = vld [vmem:[%s2063 + $0x78] sm:$0xff]
      %s2080 = scalar_lea.vmem %s5, 16
      %v2081 = vld [vmem:[%s2080] sm:$0xff]
      %s2082 = scalar_lea.vmem %s6, 2
      %v2083 = vld [vmem:[%s2082] sm:$0x1]
      %v2085 = vsel %vm73, %v2041, 0
      %2087 = vmatprep.subr.mxu0 0.0
      %2088 = vmatpush1.msra.mxu0 %v2043
      %2089 = vmatprep.subr.mxu0 0.0
      %2090 = vmatpush1.msra.mxu0 0.0
      %2091 = vmatprep.subr.mxu0 0.0
      %2092 = vmatpush1.msra.mxu0 0.0
      %2093 = vmatprep.subr.mxu0 0.0
      %2094 = vmatpush1.msra.mxu0 0.0
      %2095 = vmatprep.subr.mxu0 0.0
      %2096 = vmatpush1.msra.mxu0 0.0
      %2097 = vmatprep.subr.mxu0 0.0
      %2098 = vmatpush1.msra.mxu0 0.0
      %2099 = vmatprep.subr.mxu0 0.0
      %2100 = vmatpush1.msra.mxu0 0.0
      %2101 = vmatprep.subr.mxu0 0.0
      %2102 = vmatpush1.msra.mxu0 0.0
      %2103 = vmatprep.subr.mxu0 0.0
      %2104 = vmatpush1.msra.mxu0 0.0
      %2105 = vmatprep.subr.mxu0 0.0
      %2106 = vmatpush1.msra.mxu0 0.0
      %2107 = vmatprep.subr.mxu0 0.0
      %2108 = vmatpush1.msra.mxu0 0.0
      %2109 = vmatprep.subr.mxu0 0.0
      %2110 = vmatpush1.msra.mxu0 0.0
      %2111 = vmatprep.subr.mxu0 0.0
      %2112 = vmatpush1.msra.mxu0 0.0
      %2113 = vmatprep.subr.mxu0 0.0
      %2114 = vmatpush1.msra.mxu0 0.0
      %2115 = vmatprep.subr.mxu0 0.0
      %2116 = vmatpush1.msra.mxu0 0.0
      %2117 = vmatprep.subr.mxu0 0.0
      %2118 = vmatpush1.msra.mxu0 0.0
      %2119 = vmatprep.subr.mxu0 0.0
      %2120 = vmatpush1.msra.mxu0 0.0
      %2121 = vmatprep.subr.mxu0 0.0
      %2122 = vmatpush1.msra.mxu0 0.0
      %2123 = vmatprep.subr.mxu0 0.0
      %2124 = vmatpush1.msra.mxu0 0.0
      %2125 = vmatprep.subr.mxu0 0.0
      %2126 = vmatpush1.msra.mxu0 0.0
      %2127 = vmatprep.subr.mxu0 0.0
      %2128 = vmatpush1.msra.mxu0 0.0
      %2129 = vmatprep.subr.mxu0 0.0
      %2130 = vmatpush1.msra.mxu0 0.0
      %2131 = vmatprep.subr.mxu0 0.0
      %2132 = vmatpush1.msra.mxu0 0.0
      %2133 = vmatprep.subr.mxu0 0.0
      %2134 = vmatpush1.msra.mxu0 0.0
      %2135 = vmatprep.subr.mxu0 0.0
      %2136 = vmatpush1.msra.mxu0 0.0
      %2137 = vmatprep.subr.mxu0 0.0
      %2138 = vmatpush1.msra.mxu0 0.0
      %2139 = vmatprep.subr.mxu0 0.0
      %2140 = vmatpush1.msra.mxu0 0.0
      %2141 = vmatprep.subr.mxu0 0.0
      %2142 = vmatpush1.msra.mxu0 0.0
      %2143 = vmatprep.subr.mxu0 0.0
      %2144 = vmatpush1.msra.mxu0 0.0
      %2145 = vmatprep.subr.mxu0 0.0
      %2146 = vmatpush1.msra.mxu0 0.0
      %2147 = vmatprep.subr.mxu0 0.0
      %2148 = vmatpush1.msra.mxu0 0.0
      %2149 = vmatprep.subr.mxu0 0.0
      %2150 = vmatpush1.msra.mxu0 0.0
      %2151 = vmatprep.mubr.f32.mxu0 0.0
      %2152 = vmatmul.mubr.f32.gmra.mrb[0].mxu0 %v2085
      %v2153 = vpop.f32.mrb[0].mxu0
      %v2154 = vadd.f32 0.0, %v2153
      %v2155 = vpop.f32.mrb[0].mxu0
      %2156 = vdwg.mxu0
      %2157 = vmatprep.subr.mxu0 0.0
      %2158 = vmatpush1.msra.mxu0 %v2045
      %2159 = vmatprep.subr.mxu0 0.0
      %2160 = vmatpush1.msra.mxu0 %v2046
      %2161 = vmatprep.subr.mxu0 0.0
      %2162 = vmatpush1.msra.mxu0 %v2047
      %2163 = vmatprep.subr.mxu0 0.0
      %2164 = vmatpush1.msra.mxu0 %v2048
      %2165 = vmatprep.subr.mxu0 0.0
      %2166 = vmatpush1.msra.mxu0 %v2049
      %2167 = vmatprep.subr.mxu0 0.0
      %2168 = vmatpush1.msra.mxu0 %v2050
      %2169 = vmatprep.subr.mxu0 0.0
      %2170 = vmatpush1.msra.mxu0 %v2051
      %2171 = vmatprep.subr.mxu0 0.0
      %2172 = vmatpush1.msra.mxu0 %v2052
      %2173 = vmatprep.subr.mxu0 0.0
      %2174 = vmatpush1.msra.mxu0 %v2053
      %2175 = vmatprep.subr.mxu0 0.0
      %2176 = vmatpush1.msra.mxu0 %v2054
      %2177 = vmatprep.subr.mxu0 0.0
      %2178 = vmatpush1.msra.mxu0 %v2055
      %2179 = vmatprep.subr.mxu0 0.0
      %2180 = vmatpush1.msra.mxu0 %v2056
      %2181 = vmatprep.subr.mxu0 0.0
      %2182 = vmatpush1.msra.mxu0 %v2057
      %2183 = vmatprep.subr.mxu0 0.0
      %2184 = vmatpush1.msra.mxu0 %v2058
      %2185 = vmatprep.subr.mxu0 0.0
      %2186 = vmatpush1.msra.mxu0 %v2059
      %2187 = vmatprep.subr.mxu0 0.0
      %2188 = vmatpush1.msra.mxu0 %v2060
      %2189 = vmatprep.subr.mxu0 0.0
      %2190 = vmatpush1.msra.mxu0 0.0
      %2191 = vmatprep.subr.mxu0 0.0
      %2192 = vmatpush1.msra.mxu0 0.0
      %2193 = vmatprep.subr.mxu0 0.0
      %2194 = vmatpush1.msra.mxu0 0.0
      %2195 = vmatprep.subr.mxu0 0.0
      %2196 = vmatpush1.msra.mxu0 0.0
      %2197 = vmatprep.subr.mxu0 0.0
      %2198 = vmatpush1.msra.mxu0 0.0
      %2199 = vmatprep.subr.mxu0 0.0
      %2200 = vmatpush1.msra.mxu0 0.0
      %2201 = vmatprep.subr.mxu0 0.0
      %2202 = vmatpush1.msra.mxu0 0.0
      %2203 = vmatprep.subr.mxu0 0.0
      %2204 = vmatpush1.msra.mxu0 0.0
      %2205 = vmatprep.subr.mxu0 0.0
      %2206 = vmatpush1.msra.mxu0 0.0
      %2207 = vmatprep.subr.mxu0 0.0
      %2208 = vmatpush1.msra.mxu0 0.0
      %2209 = vmatprep.subr.mxu0 0.0
      %2210 = vmatpush1.msra.mxu0 0.0
      %2211 = vmatprep.subr.mxu0 0.0
      %2212 = vmatpush1.msra.mxu0 0.0
      %2213 = vmatprep.subr.mxu0 0.0
      %2214 = vmatpush1.msra.mxu0 0.0
      %2215 = vmatprep.subr.mxu0 0.0
      %2216 = vmatpush1.msra.mxu0 0.0
      %2217 = vmatprep.subr.mxu0 0.0
      %2218 = vmatpush1.msra.mxu0 0.0
      %2219 = vmatprep.subr.mxu0 0.0
      %2220 = vmatpush1.msra.mxu0 0.0
      %2221 = vmatprep.mubr.f32.mxu0 0.0
      %2222 = vmatmul.mubr.f32.gmra.mrb[0].mxu0 %v2154
      %v2223 = vpop.f32.mrb[0].mxu0
      %v2224 = vadd.f32 0.0, %v2223
      %v2225 = vpop.f32.mrb[0].mxu0
      %2226 = vdwg.mxu0
      %2227 = vmatprep.subr.mxu0 0.0
      %2228 = vmatpush1.xpose.msra.mxu0 %v2154
      %2229 = vmatprep.subr.mxu0 0.0
      %2230 = vmatpush1.xpose.msra.mxu0 0.0
      %2231 = vmatprep.subr.mxu0 0.0
      %2232 = vmatpush1.xpose.msra.mxu0 0.0
      %2233 = vmatprep.subr.mxu0 0.0
      %2234 = vmatpush1.xpose.msra.mxu0 0.0
      %2235 = vmatprep.subr.mxu0 0.0
      %2236 = vmatpush1.xpose.msra.mxu0 0.0
      %2237 = vmatprep.subr.mxu0 0.0
      %2238 = vmatpush1.xpose.msra.mxu0 0.0
      %2239 = vmatprep.subr.mxu0 0.0
      %2240 = vmatpush1.xpose.msra.mxu0 0.0
      %2241 = vmatprep.subr.mxu0 0.0
      %2242 = vmatpush1.xpose.msra.mxu0 0.0
      %2243 = vmatprep.subr.mxu0 0.0
      %2244 = vmatpush1.xpose.msra.mxu0 0.0
      %2245 = vmatprep.subr.mxu0 0.0
      %2246 = vmatpush1.xpose.msra.mxu0 0.0
      %2247 = vmatprep.subr.mxu0 0.0
      %2248 = vmatpush1.xpose.msra.mxu0 0.0
      %2249 = vmatprep.subr.mxu0 0.0
      %2250 = vmatpush1.xpose.msra.mxu0 0.0
      %2251 = vmatprep.subr.mxu0 0.0
      %2252 = vmatpush1.xpose.msra.mxu0 0.0
      %2253 = vmatprep.subr.mxu0 0.0
      %2254 = vmatpush1.xpose.msra.mxu0 0.0
      %2255 = vmatprep.subr.mxu0 0.0
      %2256 = vmatpush1.xpose.msra.mxu0 0.0
      %2257 = vmatprep.subr.mxu0 0.0
      %2258 = vmatpush1.xpose.msra.mxu0 0.0
      %2259 = vmatprep.subr.mxu0 0.0
      %2260 = vmatpush1.xpose.msra.mxu0 0.0
      %2261 = vmatprep.subr.mxu0 0.0
      %2262 = vmatpush1.xpose.msra.mxu0 0.0
      %2263 = vmatprep.subr.mxu0 0.0
      %2264 = vmatpush1.xpose.msra.mxu0 0.0
      %2265 = vmatprep.subr.mxu0 0.0
      %2266 = vmatpush1.xpose.msra.mxu0 0.0
      %2267 = vmatprep.subr.mxu0 0.0
      %2268 = vmatpush1.xpose.msra.mxu0 0.0
      %2269 = vmatprep.subr.mxu0 0.0
      %2270 = vmatpush1.xpose.msra.mxu0 0.0
      %2271 = vmatprep.subr.mxu0 0.0
      %2272 = vmatpush1.xpose.msra.mxu0 0.0
      %2273 = vmatprep.subr.mxu0 0.0
      %2274 = vmatpush1.xpose.msra.mxu0 0.0
      %2275 = vmatprep.subr.mxu0 0.0
      %2276 = vmatpush1.xpose.msra.mxu0 0.0
      %2277 = vmatprep.subr.mxu0 0.0
      %2278 = vmatpush1.xpose.msra.mxu0 0.0
      %2279 = vmatprep.subr.mxu0 0.0
      %2280 = vmatpush1.xpose.msra.mxu0 0.0
      %2281 = vmatprep.subr.mxu0 0.0
      %2282 = vmatpush1.xpose.msra.mxu0 0.0
      %2283 = vmatprep.subr.mxu0 0.0
      %2284 = vmatpush1.xpose.msra.mxu0 0.0
      %2285 = vmatprep.subr.mxu0 0.0
      %2286 = vmatpush1.xpose.msra.mxu0 0.0
      %2287 = vmatprep.subr.mxu0 0.0
      %2288 = vmatpush1.xpose.msra.mxu0 0.0
      %2289 = vmatprep.subr.mxu0 0.0
      %2290 = vmatpush1.xpose.msra.mxu0 0.0
      %2291 = vmatprep.mubr.f32.mxu0 0.0
      %2292 = vmatmul.mubr.f32.gmra.mrb[0].mxu0 %v2062
      %v2293 = vpop.f32.mrb[0].mxu0
      %v2294 = vadd.f32 0.0, %v2293
      %v2295 = vpop.f32.mrb[0].mxu0
      %2296 = vdwg.mxu0
      %2298 = vset.pattern.permute.xlu0 0
      %2299 = vperm.xlu0 %2298, %v2224
      %v2300 = vpop.permute.xlu0 %2299
      %v2302 = vlaneseq
      %v2303 = vshrl.u32 %v2302, 7
      %v2304 = vsub.s32 0, %v2303
      %v2305 = vrot.slane %v2294, %v2304
      %v2306 = vadd.f32 %v2300, %v2305
      %vm2307 = vcmp.gt.f32.partialorder %v2306, 0.0
      %v2308 = vmul.f32 %v2306, 0.2
      %v2309 = vsel %vm2307, %v2306, %v2308
      %v2310 = vsel %vm73, %v2309, -inf
      %2311 = vmax.xlane.f32.xlu0 %v2310
      %v2312 = vpop.xlane.xlu0 %2311
      %v2313 = vsub.f32 %v2309, %v2312
      %v2314 = vmul.f32 %v2313, 1.442695
      %v2315 = vpow.pop %v2314
      %v2316 = vsel %vm73, %v2315, 0.0
      %2317 = vadd.xlane.f32.xlu0 %v2316
      %v2318 = vpop.xlane.xlu0 %2317
      %v2319 = vrcp.pop %v2318
      %v2320 = vmul.f32 %v2315, %v2319
      %v2322 = vsel %vm73, %v2320, 0
      %2324 = vmatprep.subr.mxu0 0.0
      %2325 = vmatpush1.msra.mxu0 %v2154
      %2326 = vmatprep.subr.mxu0 0.0
      %2327 = vmatpush1.msra.mxu0 0.0
      %2328 = vmatprep.subr.mxu0 0.0
      %2329 = vmatpush1.msra.mxu0 0.0
      %2330 = vmatprep.subr.mxu0 0.0
      %2331 = vmatpush1.msra.mxu0 0.0
      %2332 = vmatprep.subr.mxu0 0.0
      %2333 = vmatpush1.msra.mxu0 0.0
      %2334 = vmatprep.subr.mxu0 0.0
      %2335 = vmatpush1.msra.mxu0 0.0
      %2336 = vmatprep.subr.mxu0 0.0
      %2337 = vmatpush1.msra.mxu0 0.0
      %2338 = vmatprep.subr.mxu0 0.0
      %2339 = vmatpush1.msra.mxu0 0.0
      %2340 = vmatprep.subr.mxu0 0.0
      %2341 = vmatpush1.msra.mxu0 0.0
      %2342 = vmatprep.subr.mxu0 0.0
      %2343 = vmatpush1.msra.mxu0 0.0
      %2344 = vmatprep.subr.mxu0 0.0
      %2345 = vmatpush1.msra.mxu0 0.0
      %2346 = vmatprep.subr.mxu0 0.0
      %2347 = vmatpush1.msra.mxu0 0.0
      %2348 = vmatprep.subr.mxu0 0.0
      %2349 = vmatpush1.msra.mxu0 0.0
      %2350 = vmatprep.subr.mxu0 0.0
      %2351 = vmatpush1.msra.mxu0 0.0
      %2352 = vmatprep.subr.mxu0 0.0
      %2353 = vmatpush1.msra.mxu0 0.0
      %2354 = vmatprep.subr.mxu0 0.0
      %2355 = vmatpush1.msra.mxu0 0.0
      %2356 = vmatprep.subr.mxu0 0.0
      %2357 = vmatpush1.msra.mxu0 0.0
      %2358 = vmatprep.subr.mxu0 0.0
      %2359 = vmatpush1.msra.mxu0 0.0
      %2360 = vmatprep.subr.mxu0 0.0
      %2361 = vmatpush1.msra.mxu0 0.0
      %2362 = vmatprep.subr.mxu0 0.0
      %2363 = vmatpush1.msra.mxu0 0.0
      %2364 = vmatprep.subr.mxu0 0.0
      %2365 = vmatpush1.msra.mxu0 0.0
      %2366 = vmatprep.subr.mxu0 0.0
      %2367 = vmatpush1.msra.mxu0 0.0
      %2368 = vmatprep.subr.mxu0 0.0
      %2369 = vmatpush1.msra.mxu0 0.0
      %2370 = vmatprep.subr.mxu0 0.0
      %2371 = vmatpush1.msra.mxu0 0.0
      %2372 = vmatprep.subr.mxu0 0.0
      %2373 = vmatpush1.msra.mxu0 0.0
      %2374 = vmatprep.subr.mxu0 0.0
      %2375 = vmatpush1.msra.mxu0 0.0
      %2376 = vmatprep.subr.mxu0 0.0
      %2377 = vmatpush1.msra.mxu0 0.0
      %2378 = vmatprep.subr.mxu0 0.0
      %2379 = vmatpush1.msra.mxu0 0.0
      %2380 = vmatprep.subr.mxu0 0.0
      %2381 = vmatpush1.msra.mxu0 0.0
      %2382 = vmatprep.subr.mxu0 0.0
      %2383 = vmatpush1.msra.mxu0 0.0
      %2384 = vmatprep.subr.mxu0 0.0
      %2385 = vmatpush1.msra.mxu0 0.0
      %2386 = vmatprep.subr.mxu0 0.0
      %2387 = vmatpush1.msra.mxu0 0.0
      %2388 = vmatprep.mubr.f32.mxu0 0.0
      %2389 = vmatmul.mubr.f32.gmra.mrb[0].mxu0 %v2322
      %v2390 = vpop.f32.mrb[0].mxu0
      %v2391 = vadd.f32 0.0, %v2390
      %v2392 = vpop.f32.mrb[0].mxu0
      %2393 = vdwg.mxu0
      %vm2394 = vcmp.gt.f32.partialorder %v2391, 0.0
      %v2395 = vmul.f32 %v2391, 1.442695
      %v2396 = vpow.pop %v2395
      %v2397 = vsub.f32 %v2396, 1.0
      %v2398 = vsel %vm2394, %v2391, %v2397
      %2399 = vset.pattern.permute.xlu0 1
      %2400 = vperm.xlu0 %2399, %v2224
      %v2401 = vpop.permute.xlu0 %2400
      %v2403 = vlaneseq
      %v2404 = vshrl.u32 %v2403, 7
      %v2405 = vsub.s32 1, %v2404
      %v2406 = vrot.slane %v2294, %v2405
      %v2407 = vadd.f32 %v2401, %v2406
      %vm2408 = vcmp.gt.f32.partialorder %v2407, 0.0
      %v2409 = vmul.f32 %v2407, 0.2
      %v2410 = vsel %vm2408, %v2407, %v2409
      %v2411 = vsel %vm73, %v2410, -inf
      %2412 = vmax.xlane.f32.xlu0 %v2411
      %v2413 = vpop.xlane.xlu0 %2412
      %v2414 = vsub.f32 %v2410, %v2413
      %v2415 = vmul.f32 %v2414, 1.442695
      %v2416 = vpow.pop %v2415
      %v2417 = vsel %vm73, %v2416, 0.0
      %2418 = vadd.xlane.f32.xlu0 %v2417
      %v2419 = vpop.xlane.xlu0 %2418
      %v2420 = vrcp.pop %v2419
      %v2421 = vmul.f32 %v2416, %v2420
      %2423 = vrot.lane.b32.xlu0 %v2154, 96
      %v2424 = vpop.permute.xlu0 %2423
      %v2427 = vsel %vm73, %v2421, 0
      %2429 = vmatprep.subr.mxu0 0.0
      %2430 = vmatpush1.msra.mxu0 %v2424
      %2431 = vmatprep.subr.mxu0 0.0
      %2432 = vmatpush1.msra.mxu0 0.0
      %2433 = vmatprep.subr.mxu0 0.0
      %2434 = vmatpush1.msra.mxu0 0.0
      %2435 = vmatprep.subr.mxu0 0.0
      %2436 = vmatpush1.msra.mxu0 0.0
      %2437 = vmatprep.subr.mxu0 0.0
      %2438 = vmatpush1.msra.mxu0 0.0
      %2439 = vmatprep.subr.mxu0 0.0
      %2440 = vmatpush1.msra.mxu0 0.0
      %2441 = vmatprep.subr.mxu0 0.0
      %2442 = vmatpush1.msra.mxu0 0.0
      %2443 = vmatprep.subr.mxu0 0.0
      %2444 = vmatpush1.msra.mxu0 0.0
      %2445 = vmatprep.subr.mxu0 0.0
      %2446 = vmatpush1.msra.mxu0 0.0
      %2447 = vmatprep.subr.mxu0 0.0
      %2448 = vmatpush1.msra.mxu0 0.0
      %2449 = vmatprep.subr.mxu0 0.0
      %2450 = vmatpush1.msra.mxu0 0.0
      %2451 = vmatprep.subr.mxu0 0.0
      %2452 = vmatpush1.msra.mxu0 0.0
      %2453 = vmatprep.subr.mxu0 0.0
      %2454 = vmatpush1.msra.mxu0 0.0
      %2455 = vmatprep.subr.mxu0 0.0
      %2456 = vmatpush1.msra.mxu0 0.0
      %2457 = vmatprep.subr.mxu0 0.0
      %2458 = vmatpush1.msra.mxu0 0.0
      %2459 = vmatprep.subr.mxu0 0.0
      %2460 = vmatpush1.msra.mxu0 0.0
      %2461 = vmatprep.subr.mxu0 0.0
      %2462 = vmatpush1.msra.mxu0 0.0
      %2463 = vmatprep.subr.mxu0 0.0
      %2464 = vmatpush1.msra.mxu0 0.0
      %2465 = vmatprep.subr.mxu0 0.0
      %2466 = vmatpush1.msra.mxu0 0.0
      %2467 = vmatprep.subr.mxu0 0.0
      %2468 = vmatpush1.msra.mxu0 0.0
      %2469 = vmatprep.subr.mxu0 0.0
      %2470 = vmatpush1.msra.mxu0 0.0
      %2471 = vmatprep.subr.mxu0 0.0
      %2472 = vmatpush1.msra.mxu0 0.0
      %2473 = vmatprep.subr.mxu0 0.0
      %2474 = vmatpush1.msra.mxu0 0.0
      %2475 = vmatprep.subr.mxu0 0.0
      %2476 = vmatpush1.msra.mxu0 0.0
      %2477 = vmatprep.subr.mxu0 0.0
      %2478 = vmatpush1.msra.mxu0 0.0
      %2479 = vmatprep.subr.mxu0 0.0
      %2480 = vmatpush1.msra.mxu0 0.0
      %2481 = vmatprep.subr.mxu0 0.0
      %2482 = vmatpush1.msra.mxu0 0.0
      %2483 = vmatprep.subr.mxu0 0.0
      %2484 = vmatpush1.msra.mxu0 0.0
      %2485 = vmatprep.subr.mxu0 0.0
      %2486 = vmatpush1.msra.mxu0 0.0
      %2487 = vmatprep.subr.mxu0 0.0
      %2488 = vmatpush1.msra.mxu0 0.0
      %2489 = vmatprep.subr.mxu0 0.0
      %2490 = vmatpush1.msra.mxu0 0.0
      %2491 = vmatprep.subr.mxu0 0.0
      %2492 = vmatpush1.msra.mxu0 0.0
      %2493 = vmatprep.mubr.f32.mxu0 0.0
      %2494 = vmatmul.mubr.f32.gmra.mrb[0].mxu0 %v2427
      %v2495 = vpop.f32.mrb[0].mxu0
      %v2496 = vadd.f32 0.0, %v2495
      %v2497 = vpop.f32.mrb[0].mxu0
      %2498 = vdwg.mxu0
      %vm2499 = vcmp.gt.f32.partialorder %v2496, 0.0
      %v2500 = vmul.f32 %v2496, 1.442695
      %v2501 = vpow.pop %v2500
      %v2502 = vsub.f32 %v2501, 1.0
      %v2503 = vsel %vm2499, %v2496, %v2502
      %2504 = vset.pattern.permute.xlu0 2
      %2505 = vperm.xlu0 %2504, %v2224
      %v2506 = vpop.permute.xlu0 %2505
      %v2508 = vlaneseq
      %v2509 = vshrl.u32 %v2508, 7
      %v2510 = vsub.s32 2, %v2509
      %v2511 = vrot.slane %v2294, %v2510
      %v2512 = vadd.f32 %v2506, %v2511
      %vm2513 = vcmp.gt.f32.partialorder %v2512, 0.0
      %v2514 = vmul.f32 %v2512, 0.2
      %v2515 = vsel %vm2513, %v2512, %v2514
      %v2516 = vsel %vm73, %v2515, -inf
      %2517 = vmax.xlane.f32.xlu0 %v2516
      %v2518 = vpop.xlane.xlu0 %2517
      %v2519 = vsub.f32 %v2515, %v2518
      %v2520 = vmul.f32 %v2519, 1.442695
      %v2521 = vpow.pop %v2520
      %v2522 = vsel %vm73, %v2521, 0.0
      %2523 = vadd.xlane.f32.xlu0 %v2522
      %v2524 = vpop.xlane.xlu0 %2523
      %v2525 = vrcp.pop %v2524
      %v2526 = vmul.f32 %v2521, %v2525
      %2527 = vrot.lane.b32.xlu0 %v2154, 64
      %v2528 = vpop.permute.xlu0 %2527
      %v2531 = vsel %vm73, %v2526, 0
      %2533 = vmatprep.subr.mxu0 0.0
      %2534 = vmatpush1.msra.mxu0 %v2528
      %2535 = vmatprep.subr.mxu0 0.0
      %2536 = vmatpush1.msra.mxu0 0.0
      %2537 = vmatprep.subr.mxu0 0.0
      %2538 = vmatpush1.msra.mxu0 0.0
      %2539 = vmatprep.subr.mxu0 0.0
      %2540 = vmatpush1.msra.mxu0 0.0
      %2541 = vmatprep.subr.mxu0 0.0
      %2542 = vmatpush1.msra.mxu0 0.0
      %2543 = vmatprep.subr.mxu0 0.0
      %2544 = vmatpush1.msra.mxu0 0.0
      %2545 = vmatprep.subr.mxu0 0.0
      %2546 = vmatpush1.msra.mxu0 0.0
      %2547 = vmatprep.subr.mxu0 0.0
      %2548 = vmatpush1.msra.mxu0 0.0
      %2549 = vmatprep.subr.mxu0 0.0
      %2550 = vmatpush1.msra.mxu0 0.0
      %2551 = vmatprep.subr.mxu0 0.0
      %2552 = vmatpush1.msra.mxu0 0.0
      %2553 = vmatprep.subr.mxu0 0.0
      %2554 = vmatpush1.msra.mxu0 0.0
      %2555 = vmatprep.subr.mxu0 0.0
      %2556 = vmatpush1.msra.mxu0 0.0
      %2557 = vmatprep.subr.mxu0 0.0
      %2558 = vmatpush1.msra.mxu0 0.0
      %2559 = vmatprep.subr.mxu0 0.0
      %2560 = vmatpush1.msra.mxu0 0.0
      %2561 = vmatprep.subr.mxu0 0.0
      %2562 = vmatpush1.msra.mxu0 0.0
      %2563 = vmatprep.subr.mxu0 0.0
      %2564 = vmatpush1.msra.mxu0 0.0
      %2565 = vmatprep.subr.mxu0 0.0
      %2566 = vmatpush1.msra.mxu0 0.0
      %2567 = vmatprep.subr.mxu0 0.0
      %2568 = vmatpush1.msra.mxu0 0.0
      %2569 = vmatprep.subr.mxu0 0.0
      %2570 = vmatpush1.msra.mxu0 0.0
      %2571 = vmatprep.subr.mxu0 0.0
      %2572 = vmatpush1.msra.mxu0 0.0
      %2573 = vmatprep.subr.mxu0 0.0
      %2574 = vmatpush1.msra.mxu0 0.0
      %2575 = vmatprep.subr.mxu0 0.0
      %2576 = vmatpush1.msra.mxu0 0.0
      %2577 = vmatprep.subr.mxu0 0.0
      %2578 = vmatpush1.msra.mxu0 0.0
      %2579 = vmatprep.subr.mxu0 0.0
      %2580 = vmatpush1.msra.mxu0 0.0
      %2581 = vmatprep.subr.mxu0 0.0
      %2582 = vmatpush1.msra.mxu0 0.0
      %2583 = vmatprep.subr.mxu0 0.0
      %2584 = vmatpush1.msra.mxu0 0.0
      %2585 = vmatprep.subr.mxu0 0.0
      %2586 = vmatpush1.msra.mxu0 0.0
      %2587 = vmatprep.subr.mxu0 0.0
      %2588 = vmatpush1.msra.mxu0 0.0
      %2589 = vmatprep.subr.mxu0 0.0
      %2590 = vmatpush1.msra.mxu0 0.0
      %2591 = vmatprep.subr.mxu0 0.0
      %2592 = vmatpush1.msra.mxu0 0.0
      %2593 = vmatprep.subr.mxu0 0.0
      %2594 = vmatpush1.msra.mxu0 0.0
      %2595 = vmatprep.subr.mxu0 0.0
      %2596 = vmatpush1.msra.mxu0 0.0
      %2597 = vmatprep.mubr.f32.mxu0 0.0
      %2598 = vmatmul.mubr.f32.gmra.mrb[0].mxu0 %v2531
      %v2599 = vpop.f32.mrb[0].mxu0
      %v2600 = vadd.f32 0.0, %v2599
      %v2601 = vpop.f32.mrb[0].mxu0
      %2602 = vdwg.mxu0
      %vm2603 = vcmp.gt.f32.partialorder %v2600, 0.0
      %v2604 = vmul.f32 %v2600, 1.442695
      %v2605 = vpow.pop %v2604
      %v2606 = vsub.f32 %v2605, 1.0
      %v2607 = vsel %vm2603, %v2600, %v2606
      %2608 = vset.pattern.permute.xlu0 3
      %2609 = vperm.xlu0 %2608, %v2224
      %v2610 = vpop.permute.xlu0 %2609
      %v2612 = vlaneseq
      %v2613 = vshrl.u32 %v2612, 7
      %v2614 = vsub.s32 3, %v2613
      %v2615 = vrot.slane %v2294, %v2614
      %v2616 = vadd.f32 %v2610, %v2615
      %vm2617 = vcmp.gt.f32.partialorder %v2616, 0.0
      %v2618 = vmul.f32 %v2616, 0.2
      %v2619 = vsel %vm2617, %v2616, %v2618
      %v2620 = vsel %vm73, %v2619, -inf
      %2621 = vmax.xlane.f32.xlu0 %v2620
      %v2622 = vpop.xlane.xlu0 %2621
      %v2623 = vsub.f32 %v2619, %v2622
      %v2624 = vmul.f32 %v2623, 1.442695
      %v2625 = vpow.pop %v2624
      %v2626 = vsel %vm73, %v2625, 0.0
      %2627 = vadd.xlane.f32.xlu0 %v2626
      %v2628 = vpop.xlane.xlu0 %2627
      %v2629 = vrcp.pop %v2628
      %v2630 = vmul.f32 %v2625, %v2629
      %2631 = vrot.lane.b32.xlu0 %v2154, 32
      %v2632 = vpop.permute.xlu0 %2631
      %v2635 = vsel %vm73, %v2630, 0
      %2637 = vmatprep.subr.mxu0 0.0
      %2638 = vmatpush1.msra.mxu0 %v2632
      %2639 = vmatprep.subr.mxu0 0.0
      %2640 = vmatpush1.msra.mxu0 0.0
      %2641 = vmatprep.subr.mxu0 0.0
      %2642 = vmatpush1.msra.mxu0 0.0
      %2643 = vmatprep.subr.mxu0 0.0
      %2644 = vmatpush1.msra.mxu0 0.0
      %2645 = vmatprep.subr.mxu0 0.0
      %2646 = vmatpush1.msra.mxu0 0.0
      %2647 = vmatprep.subr.mxu0 0.0
      %2648 = vmatpush1.msra.mxu0 0.0
      %2649 = vmatprep.subr.mxu0 0.0
      %2650 = vmatpush1.msra.mxu0 0.0
      %2651 = vmatprep.subr.mxu0 0.0
      %2652 = vmatpush1.msra.mxu0 0.0
      %2653 = vmatprep.subr.mxu0 0.0
      %2654 = vmatpush1.msra.mxu0 0.0
      %2655 = vmatprep.subr.mxu0 0.0
      %2656 = vmatpush1.msra.mxu0 0.0
      %2657 = vmatprep.subr.mxu0 0.0
      %2658 = vmatpush1.msra.mxu0 0.0
      %2659 = vmatprep.subr.mxu0 0.0
      %2660 = vmatpush1.msra.mxu0 0.0
      %2661 = vmatprep.subr.mxu0 0.0
      %2662 = vmatpush1.msra.mxu0 0.0
      %2663 = vmatprep.subr.mxu0 0.0
      %2664 = vmatpush1.msra.mxu0 0.0
      %2665 = vmatprep.subr.mxu0 0.0
      %2666 = vmatpush1.msra.mxu0 0.0
      %2667 = vmatprep.subr.mxu0 0.0
      %2668 = vmatpush1.msra.mxu0 0.0
      %2669 = vmatprep.subr.mxu0 0.0
      %2670 = vmatpush1.msra.mxu0 0.0
      %2671 = vmatprep.subr.mxu0 0.0
      %2672 = vmatpush1.msra.mxu0 0.0
      %2673 = vmatprep.subr.mxu0 0.0
      %2674 = vmatpush1.msra.mxu0 0.0
      %2675 = vmatprep.subr.mxu0 0.0
      %2676 = vmatpush1.msra.mxu0 0.0
      %2677 = vmatprep.subr.mxu0 0.0
      %2678 = vmatpush1.msra.mxu0 0.0
      %2679 = vmatprep.subr.mxu0 0.0
      %2680 = vmatpush1.msra.mxu0 0.0
      %2681 = vmatprep.subr.mxu0 0.0
      %2682 = vmatpush1.msra.mxu0 0.0
      %2683 = vmatprep.subr.mxu0 0.0
      %2684 = vmatpush1.msra.mxu0 0.0
      %2685 = vmatprep.subr.mxu0 0.0
      %2686 = vmatpush1.msra.mxu0 0.0
      %2687 = vmatprep.subr.mxu0 0.0
      %2688 = vmatpush1.msra.mxu0 0.0
      %2689 = vmatprep.subr.mxu0 0.0
      %2690 = vmatpush1.msra.mxu0 0.0
      %2691 = vmatprep.subr.mxu0 0.0
      %2692 = vmatpush1.msra.mxu0 0.0
      %2693 = vmatprep.subr.mxu0 0.0
      %2694 = vmatpush1.msra.mxu0 0.0
      %2695 = vmatprep.subr.mxu0 0.0
      %2696 = vmatpush1.msra.mxu0 0.0
      %2697 = vmatprep.subr.mxu0 0.0
      %2698 = vmatpush1.msra.mxu0 0.0
      %2699 = vmatprep.subr.mxu0 0.0
      %2700 = vmatpush1.msra.mxu0 0.0
      %2701 = vmatprep.mubr.f32.mxu0 0.0
      %2702 = vmatmul.mubr.f32.gmra.mrb[0].mxu0 %v2635
      %v2703 = vpop.f32.mrb[0].mxu0
      %v2704 = vadd.f32 0.0, %v2703
      %v2705 = vpop.f32.mrb[0].mxu0
      %2706 = vdwg.mxu0
      %vm2707 = vcmp.gt.f32.partialorder %v2704, 0.0
      %v2708 = vmul.f32 %v2704, 1.442695
      %v2709 = vpow.pop %v2708
      %v2710 = vsub.f32 %v2709, 1.0
      %v2711 = vsel %vm2707, %v2704, %v2710
      %2713 = vrot.lane.b32.xlu0 %v2503, 32
      %v2714 = vpop.permute.xlu0 %2713
      %2717 = vrot.lane.b32.xlu0 %v2607, 64
      %v2718 = vpop.permute.xlu0 %2717
      %2721 = vrot.lane.b32.xlu0 %v2711, 96
      %v2722 = vpop.permute.xlu0 %2721
      %v2724 = vsel %vm714, %v2398, %v2714
      %v2725 = vsel %vm716, %v2724, %v2718
      %v2726 = vsel %vm718, %v2725, %v2722
      %2727 = vmatprep.subr.mxu0 0.0
      %2728 = vmatpush1.msra.mxu0 %v2064
      %2729 = vmatprep.subr.mxu0 0.0
      %2730 = vmatpush1.msra.mxu0 %v2065
      %2731 = vmatprep.subr.mxu0 0.0
      %2732 = vmatpush1.msra.mxu0 %v2066
      %2733 = vmatprep.subr.mxu0 0.0
      %2734 = vmatpush1.msra.mxu0 %v2067
      %2735 = vmatprep.subr.mxu0 0.0
      %2736 = vmatpush1.msra.mxu0 %v2068
      %2737 = vmatprep.subr.mxu0 0.0
      %2738 = vmatpush1.msra.mxu0 %v2069
      %2739 = vmatprep.subr.mxu0 0.0
      %2740 = vmatpush1.msra.mxu0 %v2070
      %2741 = vmatprep.subr.mxu0 0.0
      %2742 = vmatpush1.msra.mxu0 %v2071
      %2743 = vmatprep.subr.mxu0 0.0
      %2744 = vmatpush1.msra.mxu0 %v2072
      %2745 = vmatprep.subr.mxu0 0.0
      %2746 = vmatpush1.msra.mxu0 %v2073
      %2747 = vmatprep.subr.mxu0 0.0
      %2748 = vmatpush1.msra.mxu0 %v2074
      %2749 = vmatprep.subr.mxu0 0.0
      %2750 = vmatpush1.msra.mxu0 %v2075
      %2751 = vmatprep.subr.mxu0 0.0
      %2752 = vmatpush1.msra.mxu0 %v2076
      %2753 = vmatprep.subr.mxu0 0.0
      %2754 = vmatpush1.msra.mxu0 %v2077
      %2755 = vmatprep.subr.mxu0 0.0
      %2756 = vmatpush1.msra.mxu0 %v2078
      %2757 = vmatprep.subr.mxu0 0.0
      %2758 = vmatpush1.msra.mxu0 %v2079
      %2759 = vmatprep.subr.mxu0 0.0
      %2760 = vmatpush1.msra.mxu0 0.0
      %2761 = vmatprep.subr.mxu0 0.0
      %2762 = vmatpush1.msra.mxu0 0.0
      %2763 = vmatprep.subr.mxu0 0.0
      %2764 = vmatpush1.msra.mxu0 0.0
      %2765 = vmatprep.subr.mxu0 0.0
      %2766 = vmatpush1.msra.mxu0 0.0
      %2767 = vmatprep.subr.mxu0 0.0
      %2768 = vmatpush1.msra.mxu0 0.0
      %2769 = vmatprep.subr.mxu0 0.0
      %2770 = vmatpush1.msra.mxu0 0.0
      %2771 = vmatprep.subr.mxu0 0.0
      %2772 = vmatpush1.msra.mxu0 0.0
      %2773 = vmatprep.subr.mxu0 0.0
      %2774 = vmatpush1.msra.mxu0 0.0
      %2775 = vmatprep.subr.mxu0 0.0
      %2776 = vmatpush1.msra.mxu0 0.0
      %2777 = vmatprep.subr.mxu0 0.0
      %2778 = vmatpush1.msra.mxu0 0.0
      %2779 = vmatprep.subr.mxu0 0.0
      %2780 = vmatpush1.msra.mxu0 0.0
      %2781 = vmatprep.subr.mxu0 0.0
      %2782 = vmatpush1.msra.mxu0 0.0
      %2783 = vmatprep.subr.mxu0 0.0
      %2784 = vmatpush1.msra.mxu0 0.0
      %2785 = vmatprep.subr.mxu0 0.0
      %2786 = vmatpush1.msra.mxu0 0.0
      %2787 = vmatprep.subr.mxu0 0.0
      %2788 = vmatpush1.msra.mxu0 0.0
      %2789 = vmatprep.subr.mxu0 0.0
      %2790 = vmatpush1.msra.mxu0 0.0
      %2791 = vmatprep.mubr.f32.mxu0 0.0
      %2792 = vmatmul.mubr.f32.gmra.mrb[0].mxu0 %v2726
      %v2793 = vpop.f32.mrb[0].mxu0
      %v2794 = vadd.f32 0.0, %v2793
      %v2795 = vpop.f32.mrb[0].mxu0
      %2796 = vdwg.mxu0
      %v2798 = vsel %vm73, %v2794, 0
      %2800 = vmatprep.subr.mxu0 0.0
      %2801 = vmatpush1.msra.mxu0 %v2081
      %2802 = vmatprep.subr.mxu0 0.0
      %2803 = vmatpush1.msra.mxu0 0.0
      %2804 = vmatprep.subr.mxu0 0.0
      %2805 = vmatpush1.msra.mxu0 0.0
      %2806 = vmatprep.subr.mxu0 0.0
      %2807 = vmatpush1.msra.mxu0 0.0
      %2808 = vmatprep.subr.mxu0 0.0
      %2809 = vmatpush1.msra.mxu0 0.0
      %2810 = vmatprep.subr.mxu0 0.0
      %2811 = vmatpush1.msra.mxu0 0.0
      %2812 = vmatprep.subr.mxu0 0.0
      %2813 = vmatpush1.msra.mxu0 0.0
      %2814 = vmatprep.subr.mxu0 0.0
      %2815 = vmatpush1.msra.mxu0 0.0
      %2816 = vmatprep.subr.mxu0 0.0
      %2817 = vmatpush1.msra.mxu0 0.0
      %2818 = vmatprep.subr.mxu0 0.0
      %2819 = vmatpush1.msra.mxu0 0.0
      %2820 = vmatprep.subr.mxu0 0.0
      %2821 = vmatpush1.msra.mxu0 0.0
      %2822 = vmatprep.subr.mxu0 0.0
      %2823 = vmatpush1.msra.mxu0 0.0
      %2824 = vmatprep.subr.mxu0 0.0
      %2825 = vmatpush1.msra.mxu0 0.0
      %2826 = vmatprep.subr.mxu0 0.0
      %2827 = vmatpush1.msra.mxu0 0.0
      %2828 = vmatprep.subr.mxu0 0.0
      %2829 = vmatpush1.msra.mxu0 0.0
      %2830 = vmatprep.subr.mxu0 0.0
      %2831 = vmatpush1.msra.mxu0 0.0
      %2832 = vmatprep.subr.mxu0 0.0
      %2833 = vmatpush1.msra.mxu0 0.0
      %2834 = vmatprep.subr.mxu0 0.0
      %2835 = vmatpush1.msra.mxu0 0.0
      %2836 = vmatprep.subr.mxu0 0.0
      %2837 = vmatpush1.msra.mxu0 0.0
      %2838 = vmatprep.subr.mxu0 0.0
      %2839 = vmatpush1.msra.mxu0 0.0
      %2840 = vmatprep.subr.mxu0 0.0
      %2841 = vmatpush1.msra.mxu0 0.0
      %2842 = vmatprep.subr.mxu0 0.0
      %2843 = vmatpush1.msra.mxu0 0.0
      %2844 = vmatprep.subr.mxu0 0.0
      %2845 = vmatpush1.msra.mxu0 0.0
      %2846 = vmatprep.subr.mxu0 0.0
      %2847 = vmatpush1.msra.mxu0 0.0
      %2848 = vmatprep.subr.mxu0 0.0
      %2849 = vmatpush1.msra.mxu0 0.0
      %2850 = vmatprep.subr.mxu0 0.0
      %2851 = vmatpush1.msra.mxu0 0.0
      %2852 = vmatprep.subr.mxu0 0.0
      %2853 = vmatpush1.msra.mxu0 0.0
      %2854 = vmatprep.subr.mxu0 0.0
      %2855 = vmatpush1.msra.mxu0 0.0
      %2856 = vmatprep.subr.mxu0 0.0
      %2857 = vmatpush1.msra.mxu0 0.0
      %2858 = vmatprep.subr.mxu0 0.0
      %2859 = vmatpush1.msra.mxu0 0.0
      %2860 = vmatprep.subr.mxu0 0.0
      %2861 = vmatpush1.msra.mxu0 0.0
      %2862 = vmatprep.subr.mxu0 0.0
      %2863 = vmatpush1.msra.mxu0 0.0
      %2864 = vmatprep.mubr.f32.mxu0 0.0
      %2865 = vmatmul.mubr.f32.gmra.mrb[0].mxu0 %v2798
      %v2866 = vpop.f32.mrb[0].mxu0
      %v2867 = vadd.f32 0.0, %v2866
      %v2868 = vpop.f32.mrb[0].mxu0
      %2869 = vdwg.mxu0
      %v2871 = vsel %vm73, %v2083, 0
      %2873 = vmatprep.subr.mxu0 0.0
      %2874 = vmatpush1.xpose.msra.mxu0 %v2798
      %2875 = vmatprep.subr.mxu0 0.0
      %2876 = vmatpush1.xpose.msra.mxu0 0.0
      %2877 = vmatprep.subr.mxu0 0.0
      %2878 = vmatpush1.xpose.msra.mxu0 0.0
      %2879 = vmatprep.subr.mxu0 0.0
      %2880 = vmatpush1.xpose.msra.mxu0 0.0
      %2881 = vmatprep.subr.mxu0 0.0
      %2882 = vmatpush1.xpose.msra.mxu0 0.0
      %2883 = vmatprep.subr.mxu0 0.0
      %2884 = vmatpush1.xpose.msra.mxu0 0.0
      %2885 = vmatprep.subr.mxu0 0.0
      %2886 = vmatpush1.xpose.msra.mxu0 0.0
      %2887 = vmatprep.subr.mxu0 0.0
      %2888 = vmatpush1.xpose.msra.mxu0 0.0
      %2889 = vmatprep.subr.mxu0 0.0
      %2890 = vmatpush1.xpose.msra.mxu0 0.0
      %2891 = vmatprep.subr.mxu0 0.0
      %2892 = vmatpush1.xpose.msra.mxu0 0.0
      %2893 = vmatprep.subr.mxu0 0.0
      %2894 = vmatpush1.xpose.msra.mxu0 0.0
      %2895 = vmatprep.subr.mxu0 0.0
      %2896 = vmatpush1.xpose.msra.mxu0 0.0
      %2897 = vmatprep.subr.mxu0 0.0
      %2898 = vmatpush1.xpose.msra.mxu0 0.0
      %2899 = vmatprep.subr.mxu0 0.0
      %2900 = vmatpush1.xpose.msra.mxu0 0.0
      %2901 = vmatprep.subr.mxu0 0.0
      %2902 = vmatpush1.xpose.msra.mxu0 0.0
      %2903 = vmatprep.subr.mxu0 0.0
      %2904 = vmatpush1.xpose.msra.mxu0 0.0
      %2905 = vmatprep.subr.mxu0 0.0
      %2906 = vmatpush1.xpose.msra.mxu0 0.0
      %2907 = vmatprep.subr.mxu0 0.0
      %2908 = vmatpush1.xpose.msra.mxu0 0.0
      %2909 = vmatprep.subr.mxu0 0.0
      %2910 = vmatpush1.xpose.msra.mxu0 0.0
      %2911 = vmatprep.subr.mxu0 0.0
      %2912 = vmatpush1.xpose.msra.mxu0 0.0
      %2913 = vmatprep.subr.mxu0 0.0
      %2914 = vmatpush1.xpose.msra.mxu0 0.0
      %2915 = vmatprep.subr.mxu0 0.0
      %2916 = vmatpush1.xpose.msra.mxu0 0.0
      %2917 = vmatprep.subr.mxu0 0.0
      %2918 = vmatpush1.xpose.msra.mxu0 0.0
      %2919 = vmatprep.subr.mxu0 0.0
      %2920 = vmatpush1.xpose.msra.mxu0 0.0
      %2921 = vmatprep.subr.mxu0 0.0
      %2922 = vmatpush1.xpose.msra.mxu0 0.0
      %2923 = vmatprep.subr.mxu0 0.0
      %2924 = vmatpush1.xpose.msra.mxu0 0.0
      %2925 = vmatprep.subr.mxu0 0.0
      %2926 = vmatpush1.xpose.msra.mxu0 0.0
      %2927 = vmatprep.subr.mxu0 0.0
      %2928 = vmatpush1.xpose.msra.mxu0 0.0
      %2929 = vmatprep.subr.mxu0 0.0
      %2930 = vmatpush1.xpose.msra.mxu0 0.0
      %2931 = vmatprep.subr.mxu0 0.0
      %2932 = vmatpush1.xpose.msra.mxu0 0.0
      %2933 = vmatprep.subr.mxu0 0.0
      %2934 = vmatpush1.xpose.msra.mxu0 0.0
      %2935 = vmatprep.subr.mxu0 0.0
      %2936 = vmatpush1.xpose.msra.mxu0 0.0
      %2937 = vmatprep.mubr.f32.mxu0 0.0
      %2938 = vmatmul.mubr.f32.gmra.mrb[0].mxu0 %v2871
      %v2939 = vpop.f32.mrb[0].mxu0
      %v2940 = vadd.f32 0.0, %v2939
      %v2941 = vpop.f32.mrb[0].mxu0
      %2942 = vdwg.mxu0
      %2944 = vset.pattern.permute.xlu0 0
      %2945 = vperm.xlu0 %2944, %v2867
      %v2946 = vpop.permute.xlu0 %2945
      %v2948 = vlaneseq
      %v2949 = vshrl.u32 %v2948, 7
      %v2950 = vsub.s32 0, %v2949
      %v2951 = vrot.slane %v2940, %v2950
      %v2952 = vadd.f32 %v2946, %v2951
      %vm2953 = vcmp.gt.f32.partialorder %v2952, 0.0
      %v2954 = vmul.f32 %v2952, 0.2
      %v2955 = vsel %vm2953, %v2952, %v2954
      %v2956 = vsel %vm73, %v2955, -inf
      %2957 = vmax.xlane.f32.xlu0 %v2956
      %v2958 = vpop.xlane.xlu0 %2957
      %v2959 = vsub.f32 %v2955, %v2958
      %v2960 = vmul.f32 %v2959, 1.442695
      %v2961 = vpow.pop %v2960
      %v2962 = vsel %vm73, %v2961, 0.0
      %2963 = vadd.xlane.f32.xlu0 %v2962
      %v2964 = vpop.xlane.xlu0 %2963
      %v2965 = vrcp.pop %v2964
      %v2966 = vmul.f32 %v2961, %v2965
      %v2968 = vsel %vm73, %v2966, 0
      %2970 = vmatprep.subr.mxu0 0.0
      %2971 = vmatpush1.msra.mxu0 %v2794
      %2972 = vmatprep.subr.mxu0 0.0
      %2973 = vmatpush1.msra.mxu0 0.0
      %2974 = vmatprep.subr.mxu0 0.0
      %2975 = vmatpush1.msra.mxu0 0.0
      %2976 = vmatprep.subr.mxu0 0.0
      %2977 = vmatpush1.msra.mxu0 0.0
      %2978 = vmatprep.subr.mxu0 0.0
      %2979 = vmatpush1.msra.mxu0 0.0
      %2980 = vmatprep.subr.mxu0 0.0
      %2981 = vmatpush1.msra.mxu0 0.0
      %2982 = vmatprep.subr.mxu0 0.0
      %2983 = vmatpush1.msra.mxu0 0.0
      %2984 = vmatprep.subr.mxu0 0.0
      %2985 = vmatpush1.msra.mxu0 0.0
      %2986 = vmatprep.subr.mxu0 0.0
      %2987 = vmatpush1.msra.mxu0 0.0
      %2988 = vmatprep.subr.mxu0 0.0
      %2989 = vmatpush1.msra.mxu0 0.0
      %2990 = vmatprep.subr.mxu0 0.0
      %2991 = vmatpush1.msra.mxu0 0.0
      %2992 = vmatprep.subr.mxu0 0.0
      %2993 = vmatpush1.msra.mxu0 0.0
      %2994 = vmatprep.subr.mxu0 0.0
      %2995 = vmatpush1.msra.mxu0 0.0
      %2996 = vmatprep.subr.mxu0 0.0
      %2997 = vmatpush1.msra.mxu0 0.0
      %2998 = vmatprep.subr.mxu0 0.0
      %2999 = vmatpush1.msra.mxu0 0.0
      %3000 = vmatprep.subr.mxu0 0.0
      %3001 = vmatpush1.msra.mxu0 0.0
      %3002 = vmatprep.subr.mxu0 0.0
      %3003 = vmatpush1.msra.mxu0 0.0
      %3004 = vmatprep.subr.mxu0 0.0
      %3005 = vmatpush1.msra.mxu0 0.0
      %3006 = vmatprep.subr.mxu0 0.0
      %3007 = vmatpush1.msra.mxu0 0.0
      %3008 = vmatprep.subr.mxu0 0.0
      %3009 = vmatpush1.msra.mxu0 0.0
      %3010 = vmatprep.subr.mxu0 0.0
      %3011 = vmatpush1.msra.mxu0 0.0
      %3012 = vmatprep.subr.mxu0 0.0
      %3013 = vmatpush1.msra.mxu0 0.0
      %3014 = vmatprep.subr.mxu0 0.0
      %3015 = vmatpush1.msra.mxu0 0.0
      %3016 = vmatprep.subr.mxu0 0.0
      %3017 = vmatpush1.msra.mxu0 0.0
      %3018 = vmatprep.subr.mxu0 0.0
      %3019 = vmatpush1.msra.mxu0 0.0
      %3020 = vmatprep.subr.mxu0 0.0
      %3021 = vmatpush1.msra.mxu0 0.0
      %3022 = vmatprep.subr.mxu0 0.0
      %3023 = vmatpush1.msra.mxu0 0.0
      %3024 = vmatprep.subr.mxu0 0.0
      %3025 = vmatpush1.msra.mxu0 0.0
      %3026 = vmatprep.subr.mxu0 0.0
      %3027 = vmatpush1.msra.mxu0 0.0
      %3028 = vmatprep.subr.mxu0 0.0
      %3029 = vmatpush1.msra.mxu0 0.0
      %3030 = vmatprep.subr.mxu0 0.0
      %3031 = vmatpush1.msra.mxu0 0.0
      %3032 = vmatprep.subr.mxu0 0.0
      %3033 = vmatpush1.msra.mxu0 0.0
      %3034 = vmatprep.mubr.f32.mxu0 0.0
      %3035 = vmatmul.mubr.f32.gmra.mrb[0].mxu0 %v2968
      %v3036 = vpop.f32.mrb[0].mxu0
      %v3037 = vadd.f32 0.0, %v3036
      %v3038 = vpop.f32.mrb[0].mxu0
      %3039 = vdwg.mxu0
      %vm3040 = vcmp.gt.f32.partialorder %v3037, 0.0
      %v3041 = vmul.f32 %v3037, 1.442695
      %v3042 = vpow.pop %v3041
      %v3043 = vsub.f32 %v3042, 1.0
      %v3044 = vsel %vm3040, %v3037, %v3043
      %v3045 = vadd.f32 %v36, %v3044
      %s3046 = scalar_lea.vmem [#allocation2], %s34
      %3047 = vst.msk [vmem:[%s3046] sm:$0xff] %vm73, %v3045
    $region34: #{tpu_custom_call.1} parent=1 // loop_footer
      %s32 = sadd.s32 1, %s28
    $region35: #{tpu_custom_call.1} parent=1 // loop_footer_branch
      %27 = sbr.rel target = $region31
    $region36: #{tpu_custom_call.1} parent=1 // loop_exit
      _
    // Predicated region
    $region37: #{tpu_custom_call.1} parent=1 // pred_check
      _
    $region38: #{tpu_custom_call.1} parent=1 // pred_check_branch
      %3049 = sbr.rel (0) target = $region40
    $region39: #{tpu_custom_call.1} parent=1 // pred_region
      %s3051 = ssub.s32 768, 768
      %3052 = vsyncadd [#allocation3], %s3051
      %s3053 = sshll.u32 [#allocation2], 4
      %s3054 = int_to_ptr.vmem [resolvable:$true] %s3053
      %3059 = dma.vmem_to_hbm [thread:$0]  %s3054, 768, %s7, [#allocation3], 128, 128, 8
    $region40: #{tpu_custom_call.1} parent=1 // pred_fallthru
      _
    // Predicated region
    $region41: #{tpu_custom_call.1} parent=1 // pred_check
      _
    $region42: #{tpu_custom_call.1} parent=1 // pred_check_branch
      %3061 = sbr.rel (0) target = $region44
    $region43: #{tpu_custom_call.1} parent=1 // pred_region
      %3062 = dma.done [#allocation3], 768
    $region44: #{tpu_custom_call.1} parent=1 // pred_fallthru
      _
    %3063 = vsyncpa [#allocation3], 1

</llo_original>
